<compile_context>
chip_gen: v7x
topology: tpu7x:2x2x1
jax: 0.10.0
libtpu: 0.0.40
codegen_flags: <defaults>
</compile_context>

<pallas_src>
import dataclasses
import functools
import math

import jax
import jax.numpy as jnp
from jax.experimental import pallas as pl
from jax.experimental.pallas import tpu as pltpu


P = 128  # TPU lane width; all activations and slab columns are padded to this.


# ----------------------------- config ---------------------------------------

@dataclasses.dataclass
class RevolutionaryAIConfig:
    hidden_size: int = 32
    num_attention_heads: int = 16
    intermediate_size: int = 128
    reasoning_depth: int = 2
    tree_search_depth: int = 1


# ----------------------------- slab layout -----------------------------------

def make_layout(H):
    """Static row layout of the packed weight / bias slabs.

    Weights are stored with K = 128 rows when their input is a 128-lane-padded hidden
    activation (pad rows are zero), or K = H rows for the attention output projections
    (their input is the H-wide merged head output).  N is always padded to 128 columns.
    """
    w_defs = [
        ("dec_self_wqkv", P), ("dec_self_wo", H),
        ("dec_cross_wq", P), ("dec_cross_wkv", P), ("dec_cross_wo", H),
        ("dec_ffn_w1", P), ("dec_ffn_w2", P),
        ("enc_self_wqkv", P), ("enc_self_wo", H),
        ("enc_ffn_w1", P), ("enc_ffn_w2", P),
        ("pathbranch_w", P),
    ]
    w_layout, off = {}, 0
    for name, k in w_defs:
        w_layout[name] = (off, k)
        off += k
    b_names = [
        "dec_self_bqkv", "dec_self_bo", "dec_n1_g", "dec_n1_b",
        "dec_cross_bq", "dec_cross_bkv", "dec_cross_bo", "dec_n2_g", "dec_n2_b",
        "dec_ffn_b1", "dec_ffn_b2", "dec_n3_g", "dec_n3_b",
        "enc_self_bqkv", "enc_self_bo", "enc_n1_g", "enc_n1_b",
        "enc_ffn_b1", "enc_ffn_b2", "enc_n2_g", "enc_n2_b",
        "pathbranch_b",
    ]
    b_layout = {name: i for i, name in enumerate(b_names)}
    return w_layout, b_layout, off, len(b_names)


def pack_params(params, H):
    """Pack all module parameters into one bf16 weight slab + one f32 bias slab."""
    w_layout, b_layout, w_rows, b_rows = make_layout(H)
    w_slab = jnp.zeros((w_rows, P), jnp.float32)
    for name, (off, _) in w_layout.items():
        mat = params[name]
        k, n = mat.shape
        w_slab = w_slab.at[off:off + k, :n].set(mat)
    b_slab = jnp.zeros((b_rows, P), jnp.float32)
    for name, row in b_layout.items():
        vec = params[name]
        b_slab = b_slab.at[row, :vec.shape[0]].set(vec)
    return w_slab.astype(jnp.bfloat16), b_slab


# ----------------------------- fused kernel ----------------------------------

def _reasoning_engine_kernel(q_ref, ctx_ref, w_ref, b_ref, out_ref, stats_ref, *,
                             w_layout, b_layout, H, nh_dec, nh_enc, depth, tree_depth):
    B, Sq, _ = q_ref.shape
    Sc = ctx_ref.shape[1]

    def w(name):                                   # (K, 128) bf16 weight block
        off, k = w_layout[name]
        return w_ref[pl.ds(off, k), :]

    def b(name):                                   # (1, 128) f32 bias / LN row
        return b_ref[pl.ds(b_layout[name], 1), :]

    def dot_wb(x2, wname, bname):
        # (rows, K) f32 -> (rows, 128) f32; bf16 MXU inputs, f32 accumulation.
        return jnp.dot(x2.astype(jnp.bfloat16), w(wname),
                       preferred_element_type=jnp.float32) + b(bname)

    def layer_norm(x, prefix):
        # x is 128-lane padded with exactly-zero pad lanes, so sums over the full lane dim
        # equal sums over the H real lanes; gamma/beta (zero on pad lanes) re-zero the pads.
        inv_h = 1.0 / H
        mu = jnp.sum(x, axis=-1, keepdims=True) * inv_h
        ex2 = jnp.sum(x * x, axis=-1, keepdims=True) * inv_h
        var = ex2 - mu * mu
        xn = (x - mu) * jax.lax.rsqrt(var + 1e-5)
        return xn * b(prefix + "_g") + b(prefix + "_b")

    def heads(mat2, S, col0, nh, hd):
        # Per-head (B, S, hd) views of a packed (B*S, 128) projection result.
        return [mat2[:, col0 + h * hd: col0 + (h + 1) * hd].reshape(B, S, hd)
                for h in range(nh)]

    def attend(qh, kh, vh, hd):
        s = jnp.einsum("bqd,bkd->bqk", qh.astype(jnp.bfloat16), kh.astype(jnp.bfloat16),
                       preferred_element_type=jnp.float32) * (1.0 / math.sqrt(hd))
        s = s - jnp.max(s, axis=-1, keepdims=True)
        e = jnp.exp(s)
        p = e * pl.reciprocal(jnp.sum(e, axis=-1, keepdims=True), approx=True)
        return jnp.einsum("bqk,bkd->bqd", p.astype(jnp.bfloat16), vh.astype(jnp.bfloat16),
                          preferred_element_type=jnp.float32)

    def out_proj(head_outs, S, wname, bname):
        a = head_outs[0] if len(head_outs) == 1 else jnp.concatenate(head_outs, axis=-1)
        return dot_wb(a.reshape(B * S, H), wname, bname).reshape(B, S, P)

    def self_attn(x, S, nh, prefix):
        hd = H // nh
        qkv = dot_wb(x.reshape(B * S, P), prefix + "_wqkv", prefix + "_bqkv")   # packed QKV
        qh = heads(qkv, S, 0, nh, hd)
        kh = heads(qkv, S, H, nh, hd)
        vh = heads(qkv, S, 2 * H, nh, hd)
        return out_proj([attend(qh[h], kh[h], vh[h], hd) for h in range(nh)],
                        S, prefix + "_wo", prefix + "_bo")

    def cross_attn(x, k_heads, v_heads, nh):
        hd = H // nh
        qp = dot_wb(x.reshape(B * Sq, P), "dec_cross_wq", "dec_cross_bq")
        qh = heads(qp, Sq, 0, nh, hd)
        return out_proj([attend(qh[h], k_heads[h], v_heads[h], hd) for h in range(nh)],
                        Sq, "dec_cross_wo", "dec_cross_bo")

    def ffn(x, prefix):
        h1 = jnp.maximum(dot_wb(x.reshape(B * Sq, P), prefix + "_w1", prefix + "_b1"), 0.0)
        return dot_wb(h1, prefix + "_w2", prefix + "_b2").reshape(B, Sq, P)

    q = q_ref[...]                                  # (B, Sq, 128) f32, zero beyond lane H
    ctx = ctx_ref[...]                              # (B, Sc, 128)
    q_scaled = q * 0.1                              # hoisted out of the depth loop

    # Loop-invariant cross-attention K/V of `context` (hoisted out of the depth loop).
    hd_dec = H // nh_dec
    kv_c = dot_wb(ctx.reshape(B * Sc, P), "dec_cross_wkv", "dec_cross_bkv")
    k_cross = heads(kv_c, Sc, 0, nh_dec, hd_dec)
    v_cross = heads(kv_c, Sc, H, nh_dec, hd_dec)

    lane = jax.lax.broadcasted_iota(jnp.int32, (1, P), 1)
    stat_rows = []
    cur = q
    for step in range(depth):                       # static unroll (reasoning_depth = 2)
        # nn.TransformerDecoderLayer (post-norm, ReLU, eval-mode dropout = identity)
        x = layer_norm(cur + self_attn(cur, Sq, nh_dec, "dec_self"), "dec_n1")
        x = layer_norm(x + cross_attn(x, k_cross, v_cross, nh_dec), "dec_n2")
        thought = layer_norm(x + ffn(x, "dec_ffn"), "dec_n3")

        # Per-step reasoning statistics (fused epilogue; no `thoughts` HBM output).
        pb = dot_wb(thought.reshape(B * Sq, P), "pathbranch_w", "pathbranch_b")
        thought_quality = jnp.mean(pb[:, 0:1])
        bl = pb[:, 1:1 + tree_depth]
        be = jnp.exp(bl - jnp.max(bl, axis=-1, keepdims=True))
        bp = be * pl.reciprocal(jnp.sum(be, axis=-1, keepdims=True), approx=True)
        branch_conf = jnp.mean(jnp.max(bp, axis=-1, keepdims=True))
        focus = jnp.mean(jnp.sqrt(jnp.sum(thought * thought, axis=-1, keepdims=True)))
        stat_rows.append(jnp.where(lane == 0, thought_quality, 0.0)
                         + jnp.where(lane == 1, branch_conf, 0.0)
                         + jnp.where(lane == 2, focus, 0.0))

        cur = thought + q_scaled                    # residual feedback (after the stats)

    # nn.TransformerEncoderLayer (logic_processor), post-norm.
    y = layer_norm(cur + self_attn(cur, Sq, nh_enc, "enc_self"), "enc_n1")
    y = layer_norm(y + ffn(y, "enc_ffn"), "enc_n2")

    out_ref[...] = y.reshape(B * Sq, P).astype(out_ref.dtype)   # lane-dense (B*Sq, 128) store
    stats_ref[...] = jnp.concatenate(stat_rows, axis=0)         # (depth, 128)


# ----------------------------- forward wrapper --------------------------------

def reasoning_engine_forward(w_slab, b_slab, query, context, *, H, nh_dec, nh_enc,
                             depth, tree_depth):
    B, Sq, Hq = query.shape
    assert Hq == H and H <= P and H % nh_dec == 0 and H % nh_enc == 0
    # 128-lane zero padding of the inputs (layout plumbing, outside the kernel).
    qp = jnp.pad(query, ((0, 0), (0, 0), (0, P - H)))
    cp = jnp.pad(context, ((0, 0), (0, 0), (0, P - H)))
    w_layout, b_layout, _, _ = make_layout(H)
    kernel = functools.partial(
        _reasoning_engine_kernel, w_layout=w_layout, b_layout=b_layout, H=H,
        nh_dec=nh_dec, nh_enc=nh_enc, depth=depth, tree_depth=tree_depth)
    # No grid: single invocation; all weights/activations resident in VMEM.
    out_pad, stats_pad = pl.pallas_call(
        kernel,
        out_shape=(jax.ShapeDtypeStruct((B * Sq, P), query.dtype),   # symbolic (padded)
                   jax.ShapeDtypeStruct((depth, P), jnp.float32)),   # per-step stats
        compiler_params=pltpu.CompilerParams(vmem_limit_bytes=4 * 1024 * 1024),
    )(qp, cp, w_slab, b_slab)
    symbolic = out_pad[:, :H].reshape(B, Sq, H)
    stats = stats_pad[:, :3]                         # [quality, confidence, focus]
    return symbolic, stats


# ----------------------------- parameters ------------------------------------

def init_reasoning_engine(key, cfg: RevolutionaryAIConfig):
    H = cfg.hidden_size
    dec_ff = cfg.intermediate_size // 4
    enc_ff = 2 * H
    T = cfg.tree_search_depth

    reasoning_heads = max(1, cfg.num_attention_heads // 8)
    while H % reasoning_heads != 0:
        reasoning_heads -= 1
    logic_heads = min(16, max(1, H // 64))
    while H % logic_heads != 0:
        logic_heads -= 1

    s = 0.05
    shapes = [
        ("dec_self_wqkv", (H, 3 * H)), ("dec_self_bqkv", (3 * H,)),
        ("dec_self_wo", (H, H)), ("dec_self_bo", (H,)),
        ("dec_cross_wq", (H, H)), ("dec_cross_bq", (H,)),
        ("dec_cross_wkv", (H, 2 * H)), ("dec_cross_bkv", (2 * H,)),
        ("dec_cross_wo", (H, H)), ("dec_cross_bo", (H,)),
        ("dec_ffn_w1", (H, dec_ff)), ("dec_ffn_b1", (dec_ff,)),
        ("dec_ffn_w2", (dec_ff, H)), ("dec_ffn_b2", (H,)),
        ("enc_self_wqkv", (H, 3 * H)), ("enc_self_bqkv", (3 * H,)),
        ("enc_self_wo", (H, H)), ("enc_self_bo", (H,)),
        ("enc_ffn_w1", (H, enc_ff)), ("enc_ffn_b1", (enc_ff,)),
        ("enc_ffn_w2", (enc_ff, H)), ("enc_ffn_b2", (H,)),
        ("pathbranch_w", (H, 1 + T)), ("pathbranch_b", (1 + T,)),   # path(1) | branch(T)
    ]
    keys = jax.random.split(key, len(shapes))
    params = {name: s * jax.random.normal(k, shp, jnp.float32)
              for (name, shp), k in zip(shapes, keys)}
    for ln in ("dec_n1", "dec_n2", "dec_n3", "enc_n1", "enc_n2"):
        params[ln + "_g"] = jnp.ones((H,), jnp.float32)
        params[ln + "_b"] = jnp.zeros((H,), jnp.float32)
    # TODO(synk): symbol_encoder (nn.Embedding(10000, H)) is unused in the reference forward
    # pass and is intentionally not materialized.
    return params, reasoning_heads, logic_heads


# ----------------------------- main ------------------------------------------

if __name__ == "__main__":
    cfg = RevolutionaryAIConfig(hidden_size=32, num_attention_heads=16,
                                intermediate_size=128, reasoning_depth=2,
                                tree_search_depth=1)
    B, S_Q, S_CTX, H = 2, 8, 8, cfg.hidden_size

    root = jax.random.PRNGKey(0)
    k_q, k_c, k_p = jax.random.split(root, 3)
    query = jax.random.normal(k_q, (B, S_Q, H), jnp.float32)
    context = jax.random.normal(k_c, (B, S_CTX, H), jnp.float32)

    params, nh_dec, nh_enc = init_reasoning_engine(k_p, cfg)
    w_slab, b_slab = pack_params(params, H)          # packed once, outside the jit

    fwd = jax.jit(functools.partial(
        reasoning_engine_forward, H=H, nh_dec=nh_dec, nh_enc=nh_enc,
        depth=cfg.reasoning_depth, tree_depth=cfg.tree_search_depth))

    symbolic, stats = fwd(w_slab, b_slab, query, context)
    symbolic = jax.block_until_ready(symbolic)
    stats_host = jax.device_get(stats)               # single device->host transfer

    reasoning_steps = [
        {"step": s,
         "thought_quality": float(stats_host[s, 0]),
         "branch_confidence": float(stats_host[s, 1]),
         "reasoning_focus": float(stats_host[s, 2])}
        for s in range(cfg.reasoning_depth)
    ]

    assert symbolic.shape == (B, S_Q, H)
    assert len(reasoning_steps) == cfg.reasoning_depth
    assert bool(jnp.all(jnp.isfinite(symbolic)))
    assert all(math.isfinite(v) for d in reasoning_steps
               for k, v in d.items() if k != "step")
    print("KERNEL_OK")
</pallas_src>

<mosaic_0001>
module attributes {stable_mosaic.version = 11 : i64} {
  func.func @_reasoning_engine_kernel(%arg0: memref<2x8x128xf32, #tpu.memory_space<vmem>>, %arg1: memref<2x8x128xf32, #tpu.memory_space<vmem>>, %arg2: memref<1248x128xbf16, #tpu.memory_space<vmem>>, %arg3: memref<22x128xf32, #tpu.memory_space<vmem>>, %arg4: memref<16x128xf32, #tpu.memory_space<vmem>>, %arg5: memref<2x128xf32, #tpu.memory_space<vmem>>) attributes {dimension_semantics = [], scalar_prefetch = 0 : i64, scratch_operands = 0 : i64, tpu.core_type = #tpu.core_type<tc>} {
    %c0 = arith.constant 0 : index
    %c0_0 = arith.constant 0 : index
    %c0_1 = arith.constant 0 : index
    %0 = vector.load %arg0[%c0, %c0_0, %c0_1] : memref<2x8x128xf32, #tpu.memory_space<vmem>>, vector<2x8x128xf32>
    %c0_2 = arith.constant 0 : index
    %c0_3 = arith.constant 0 : index
    %c0_4 = arith.constant 0 : index
    %1 = vector.load %arg1[%c0_2, %c0_3, %c0_4] : memref<2x8x128xf32, #tpu.memory_space<vmem>>, vector<2x8x128xf32>
    %cst = arith.constant 1.000000e-01 : f32
    %2 = vector.broadcast %cst : f32 to vector<2x8x128xf32>
    %3 = arith.mulf %0, %2 : vector<2x8x128xf32>
    %4 = vector.shape_cast %1 : vector<2x8x128xf32> to vector<16x128xf32>
    %5 = arith.truncf %4 : vector<16x128xf32> to vector<16x128xbf16>
    %c288 = arith.constant 288 : index
    %c0_5 = arith.constant 0 : index
    %6 = vector.load %arg2[%c288, %c0_5] : memref<1248x128xbf16, #tpu.memory_space<vmem>>, vector<128x128xbf16>
    %cst_6 = arith.constant dense<0.000000e+00> : vector<16x128xf32>
    %7 = tpu.matmul %5, %6, %cst_6 {dimension_numbers = #tpu.dot_dimension_numbers<[1], [0], [0], [1], [0, 0, 1, 1], [], []>} : vector<16x128xbf16>, vector<128x128xbf16>, vector<16x128xf32> -> vector<16x128xf32>
    %c5 = arith.constant 5 : index
    %c0_7 = arith.constant 0 : index
    %8 = vector.load %arg3[%c5, %c0_7] : memref<22x128xf32, #tpu.memory_space<vmem>>, vector<1x128xf32>
    %9 = vector.broadcast %8 : vector<1x128xf32> to vector<16x128xf32>
    %10 = arith.addf %7, %9 : vector<16x128xf32>
    %11 = vector.extract_strided_slice %10 {offsets = [0, 0], sizes = [16, 16], strides = [1, 1]} : vector<16x128xf32> to vector<16x16xf32>
    %12 = vector.shape_cast %11 : vector<16x16xf32> to vector<2x8x16xf32>
    %13 = vector.extract_strided_slice %10 {offsets = [0, 16], sizes = [16, 16], strides = [1, 1]} : vector<16x128xf32> to vector<16x16xf32>
    %14 = vector.shape_cast %13 : vector<16x16xf32> to vector<2x8x16xf32>
    %15 = vector.extract_strided_slice %10 {offsets = [0, 32], sizes = [16, 16], strides = [1, 1]} : vector<16x128xf32> to vector<16x16xf32>
    %16 = vector.shape_cast %15 : vector<16x16xf32> to vector<2x8x16xf32>
    %17 = vector.extract_strided_slice %10 {offsets = [0, 48], sizes = [16, 16], strides = [1, 1]} : vector<16x128xf32> to vector<16x16xf32>
    %18 = vector.shape_cast %17 : vector<16x16xf32> to vector<2x8x16xf32>
    %19 = tpu.iota {dimensions = array<i32: 1>} : vector<1x128xi32>
    %20 = vector.shape_cast %0 : vector<2x8x128xf32> to vector<16x128xf32>
    %21 = arith.truncf %20 : vector<16x128xf32> to vector<16x128xbf16>
    %c0_8 = arith.constant 0 : index
    %c0_9 = arith.constant 0 : index
    %22 = vector.load %arg2[%c0_8, %c0_9] : memref<1248x128xbf16, #tpu.memory_space<vmem>>, vector<128x128xbf16>
    %cst_10 = arith.constant dense<0.000000e+00> : vector<16x128xf32>
    %23 = tpu.matmul %21, %22, %cst_10 {dimension_numbers = #tpu.dot_dimension_numbers<[1], [0], [0], [1], [0, 0, 1, 1], [], []>} : vector<16x128xbf16>, vector<128x128xbf16>, vector<16x128xf32> -> vector<16x128xf32>
    %c0_11 = arith.constant 0 : index
    %c0_12 = arith.constant 0 : index
    %24 = vector.load %arg3[%c0_11, %c0_12] : memref<22x128xf32, #tpu.memory_space<vmem>>, vector<1x128xf32>
    %25 = vector.broadcast %24 : vector<1x128xf32> to vector<16x128xf32>
    %26 = arith.addf %23, %25 : vector<16x128xf32>
    %27 = vector.extract_strided_slice %26 {offsets = [0, 0], sizes = [16, 16], strides = [1, 1]} : vector<16x128xf32> to vector<16x16xf32>
    %28 = vector.shape_cast %27 : vector<16x16xf32> to vector<2x8x16xf32>
    %29 = vector.extract_strided_slice %26 {offsets = [0, 16], sizes = [16, 16], strides = [1, 1]} : vector<16x128xf32> to vector<16x16xf32>
    %30 = vector.shape_cast %29 : vector<16x16xf32> to vector<2x8x16xf32>
    %31 = vector.extract_strided_slice %26 {offsets = [0, 32], sizes = [16, 16], strides = [1, 1]} : vector<16x128xf32> to vector<16x16xf32>
    %32 = vector.shape_cast %31 : vector<16x16xf32> to vector<2x8x16xf32>
    %33 = vector.extract_strided_slice %26 {offsets = [0, 48], sizes = [16, 16], strides = [1, 1]} : vector<16x128xf32> to vector<16x16xf32>
    %34 = vector.shape_cast %33 : vector<16x16xf32> to vector<2x8x16xf32>
    %35 = vector.extract_strided_slice %26 {offsets = [0, 64], sizes = [16, 16], strides = [1, 1]} : vector<16x128xf32> to vector<16x16xf32>
    %36 = vector.shape_cast %35 : vector<16x16xf32> to vector<2x8x16xf32>
    %37 = vector.extract_strided_slice %26 {offsets = [0, 80], sizes = [16, 16], strides = [1, 1]} : vector<16x128xf32> to vector<16x16xf32>
    %38 = vector.shape_cast %37 : vector<16x16xf32> to vector<2x8x16xf32>
    %39 = arith.truncf %28 : vector<2x8x16xf32> to vector<2x8x16xbf16>
    %40 = arith.truncf %32 : vector<2x8x16xf32> to vector<2x8x16xbf16>
    "tpu.trace_start"() <{level = 10 : i32, message = "bqd,bkd->bqk"}> : () -> ()
    %cst_13 = arith.constant dense<0.000000e+00> : vector<2x8x8xf32>
    %41 = tpu.matmul %39, %40, %cst_13 {dimension_numbers = #tpu.dot_dimension_numbers<[2], [2], [1], [1], [0, 0, 0, 1, 1, 1], [0], [0]>} : vector<2x8x16xbf16>, vector<2x8x16xbf16>, vector<2x8x8xf32> -> vector<2x8x8xf32>
    "tpu.trace_stop"() : () -> ()
    %cst_14 = arith.constant 2.500000e-01 : f32
    %42 = vector.broadcast %cst_14 : f32 to vector<2x8x8xf32>
    %43 = arith.mulf %41, %42 : vector<2x8x8xf32>
    %cst_15 = arith.constant dense<0xFF800000> : vector<2x8xf32>
    %44 = vector.multi_reduction <maximumf>, %43, %cst_15 [2] : vector<2x8x8xf32> to vector<2x8xf32>
    %45 = vector.shape_cast %44 : vector<2x8xf32> to vector<2x8x1xf32>
    %46 = vector.broadcast %45 : vector<2x8x1xf32> to vector<2x8x8xf32>
    %47 = arith.subf %43, %46 : vector<2x8x8xf32>
    %48 = math.exp %47 : vector<2x8x8xf32>
    %cst_16 = arith.constant dense<0.000000e+00> : vector<2x8xf32>
    %49 = vector.multi_reduction <add>, %48, %cst_16 [2] : vector<2x8x8xf32> to vector<2x8xf32>
    %50 = vector.shape_cast %49 : vector<2x8xf32> to vector<2x8x1xf32>
    %51 = tpu.reciprocal %50 {approx = true} : vector<2x8x1xf32> -> vector<2x8x1xf32>
    %52 = vector.broadcast %51 : vector<2x8x1xf32> to vector<2x8x8xf32>
    %53 = arith.mulf %48, %52 : vector<2x8x8xf32>
    %54 = arith.truncf %53 : vector<2x8x8xf32> to vector<2x8x8xbf16>
    %55 = arith.truncf %36 : vector<2x8x16xf32> to vector<2x8x16xbf16>
    "tpu.trace_start"() <{level = 10 : i32, message = "bqk,bkd->bqd"}> : () -> ()
    %cst_17 = arith.constant dense<0.000000e+00> : vector<2x8x16xf32>
    %56 = tpu.matmul %54, %55, %cst_17 {dimension_numbers = #tpu.dot_dimension_numbers<[2], [1], [1], [2], [0, 0, 0, 1, 1, 2], [0], [0]>} : vector<2x8x8xbf16>, vector<2x8x16xbf16>, vector<2x8x16xf32> -> vector<2x8x16xf32>
    "tpu.trace_stop"() : () -> ()
    %57 = arith.truncf %30 : vector<2x8x16xf32> to vector<2x8x16xbf16>
    %58 = arith.truncf %34 : vector<2x8x16xf32> to vector<2x8x16xbf16>
    "tpu.trace_start"() <{level = 10 : i32, message = "bqd,bkd->bqk"}> : () -> ()
    %cst_18 = arith.constant dense<0.000000e+00> : vector<2x8x8xf32>
    %59 = tpu.matmul %57, %58, %cst_18 {dimension_numbers = #tpu.dot_dimension_numbers<[2], [2], [1], [1], [0, 0, 0, 1, 1, 1], [0], [0]>} : vector<2x8x16xbf16>, vector<2x8x16xbf16>, vector<2x8x8xf32> -> vector<2x8x8xf32>
    "tpu.trace_stop"() : () -> ()
    %cst_19 = arith.constant 2.500000e-01 : f32
    %60 = vector.broadcast %cst_19 : f32 to vector<2x8x8xf32>
    %61 = arith.mulf %59, %60 : vector<2x8x8xf32>
    %cst_20 = arith.constant dense<0xFF800000> : vector<2x8xf32>
    %62 = vector.multi_reduction <maximumf>, %61, %cst_20 [2] : vector<2x8x8xf32> to vector<2x8xf32>
    %63 = vector.shape_cast %62 : vector<2x8xf32> to vector<2x8x1xf32>
    %64 = vector.broadcast %63 : vector<2x8x1xf32> to vector<2x8x8xf32>
    %65 = arith.subf %61, %64 : vector<2x8x8xf32>
    %66 = math.exp %65 : vector<2x8x8xf32>
    %cst_21 = arith.constant dense<0.000000e+00> : vector<2x8xf32>
    %67 = vector.multi_reduction <add>, %66, %cst_21 [2] : vector<2x8x8xf32> to vector<2x8xf32>
    %68 = vector.shape_cast %67 : vector<2x8xf32> to vector<2x8x1xf32>
    %69 = tpu.reciprocal %68 {approx = true} : vector<2x8x1xf32> -> vector<2x8x1xf32>
    %70 = vector.broadcast %69 : vector<2x8x1xf32> to vector<2x8x8xf32>
    %71 = arith.mulf %66, %70 : vector<2x8x8xf32>
    %72 = arith.truncf %71 : vector<2x8x8xf32> to vector<2x8x8xbf16>
    %73 = arith.truncf %38 : vector<2x8x16xf32> to vector<2x8x16xbf16>
    "tpu.trace_start"() <{level = 10 : i32, message = "bqk,bkd->bqd"}> : () -> ()
    %cst_22 = arith.constant dense<0.000000e+00> : vector<2x8x16xf32>
    %74 = tpu.matmul %72, %73, %cst_22 {dimension_numbers = #tpu.dot_dimension_numbers<[2], [1], [1], [2], [0, 0, 0, 1, 1, 2], [0], [0]>} : vector<2x8x8xbf16>, vector<2x8x16xbf16>, vector<2x8x16xf32> -> vector<2x8x16xf32>
    "tpu.trace_stop"() : () -> ()
    %75 = tpu.concatenate %56, %74 in 2 : vector<2x8x16xf32>, vector<2x8x16xf32> -> vector<2x8x32xf32>
    %76 = vector.shape_cast %75 : vector<2x8x32xf32> to vector<16x32xf32>
    %77 = arith.truncf %76 : vector<16x32xf32> to vector<16x32xbf16>
    %c128 = arith.constant 128 : index
    %c0_23 = arith.constant 0 : index
    %78 = vector.load %arg2[%c128, %c0_23] : memref<1248x128xbf16, #tpu.memory_space<vmem>>, vector<32x128xbf16>
    %cst_24 = arith.constant dense<0.000000e+00> : vector<16x128xf32>
    %79 = tpu.matmul %77, %78, %cst_24 {dimension_numbers = #tpu.dot_dimension_numbers<[1], [0], [0], [1], [0, 0, 1, 1], [], []>} : vector<16x32xbf16>, vector<32x128xbf16>, vector<16x128xf32> -> vector<16x128xf32>
    %c1 = arith.constant 1 : index
    %c0_25 = arith.constant 0 : index
    %80 = vector.load %arg3[%c1, %c0_25] : memref<22x128xf32, #tpu.memory_space<vmem>>, vector<1x128xf32>
    %81 = vector.broadcast %80 : vector<1x128xf32> to vector<16x128xf32>
    %82 = arith.addf %79, %81 : vector<16x128xf32>
    %83 = vector.shape_cast %82 : vector<16x128xf32> to vector<2x8x128xf32>
    %84 = arith.addf %0, %83 : vector<2x8x128xf32>
    %cst_26 = arith.constant dense<0.000000e+00> : vector<2x8xf32>
    %85 = vector.multi_reduction <add>, %84, %cst_26 [2] : vector<2x8x128xf32> to vector<2x8xf32>
    %86 = vector.shape_cast %85 : vector<2x8xf32> to vector<2x8x1xf32>
    %cst_27 = arith.constant 3.125000e-02 : f32
    %87 = vector.broadcast %cst_27 : f32 to vector<2x8x1xf32>
    %88 = arith.mulf %86, %87 : vector<2x8x1xf32>
    %89 = arith.mulf %84, %84 : vector<2x8x128xf32>
    %cst_28 = arith.constant dense<0.000000e+00> : vector<2x8xf32>
    %90 = vector.multi_reduction <add>, %89, %cst_28 [2] : vector<2x8x128xf32> to vector<2x8xf32>
    %91 = vector.shape_cast %90 : vector<2x8xf32> to vector<2x8x1xf32>
    %cst_29 = arith.constant 3.125000e-02 : f32
    %92 = vector.broadcast %cst_29 : f32 to vector<2x8x1xf32>
    %93 = arith.mulf %91, %92 : vector<2x8x1xf32>
    %94 = arith.mulf %88, %88 : vector<2x8x1xf32>
    %95 = arith.subf %93, %94 : vector<2x8x1xf32>
    %96 = vector.broadcast %88 : vector<2x8x1xf32> to vector<2x8x128xf32>
    %97 = arith.subf %84, %96 : vector<2x8x128xf32>
    %cst_30 = arith.constant 9.99999974E-6 : f32
    %98 = vector.broadcast %cst_30 : f32 to vector<2x8x1xf32>
    %99 = arith.addf %95, %98 : vector<2x8x1xf32>
    %100 = math.rsqrt %99 : vector<2x8x1xf32>
    %101 = vector.broadcast %100 : vector<2x8x1xf32> to vector<2x8x128xf32>
    %102 = arith.mulf %97, %101 : vector<2x8x128xf32>
    %c2 = arith.constant 2 : index
    %c0_31 = arith.constant 0 : index
    %103 = vector.load %arg3[%c2, %c0_31] : memref<22x128xf32, #tpu.memory_space<vmem>>, vector<1x128xf32>
    %104 = vector.shape_cast %103 : vector<1x128xf32> to vector<1x1x128xf32>
    %105 = vector.broadcast %104 : vector<1x1x128xf32> to vector<2x8x128xf32>
    %106 = arith.mulf %102, %105 : vector<2x8x128xf32>
    %c3 = arith.constant 3 : index
    %c0_32 = arith.constant 0 : index
    %107 = vector.load %arg3[%c3, %c0_32] : memref<22x128xf32, #tpu.memory_space<vmem>>, vector<1x128xf32>
    %108 = vector.shape_cast %107 : vector<1x128xf32> to vector<1x1x128xf32>
    %109 = vector.broadcast %108 : vector<1x1x128xf32> to vector<2x8x128xf32>
    %110 = arith.addf %106, %109 : vector<2x8x128xf32>
    %111 = vector.shape_cast %110 : vector<2x8x128xf32> to vector<16x128xf32>
    %112 = arith.truncf %111 : vector<16x128xf32> to vector<16x128xbf16>
    %c160 = arith.constant 160 : index
    %c0_33 = arith.constant 0 : index
    %113 = vector.load %arg2[%c160, %c0_33] : memref<1248x128xbf16, #tpu.memory_space<vmem>>, vector<128x128xbf16>
    %cst_34 = arith.constant dense<0.000000e+00> : vector<16x128xf32>
    %114 = tpu.matmul %112, %113, %cst_34 {dimension_numbers = #tpu.dot_dimension_numbers<[1], [0], [0], [1], [0, 0, 1, 1], [], []>} : vector<16x128xbf16>, vector<128x128xbf16>, vector<16x128xf32> -> vector<16x128xf32>
    %c4 = arith.constant 4 : index
    %c0_35 = arith.constant 0 : index
    %115 = vector.load %arg3[%c4, %c0_35] : memref<22x128xf32, #tpu.memory_space<vmem>>, vector<1x128xf32>
    %116 = vector.broadcast %115 : vector<1x128xf32> to vector<16x128xf32>
    %117 = arith.addf %114, %116 : vector<16x128xf32>
    %118 = vector.extract_strided_slice %117 {offsets = [0, 0], sizes = [16, 16], strides = [1, 1]} : vector<16x128xf32> to vector<16x16xf32>
    %119 = vector.shape_cast %118 : vector<16x16xf32> to vector<2x8x16xf32>
    %120 = vector.extract_strided_slice %117 {offsets = [0, 16], sizes = [16, 16], strides = [1, 1]} : vector<16x128xf32> to vector<16x16xf32>
    %121 = vector.shape_cast %120 : vector<16x16xf32> to vector<2x8x16xf32>
    %122 = arith.truncf %119 : vector<2x8x16xf32> to vector<2x8x16xbf16>
    %123 = arith.truncf %12 : vector<2x8x16xf32> to vector<2x8x16xbf16>
    "tpu.trace_start"() <{level = 10 : i32, message = "bqd,bkd->bqk"}> : () -> ()
    %cst_36 = arith.constant dense<0.000000e+00> : vector<2x8x8xf32>
    %124 = tpu.matmul %122, %123, %cst_36 {dimension_numbers = #tpu.dot_dimension_numbers<[2], [2], [1], [1], [0, 0, 0, 1, 1, 1], [0], [0]>} : vector<2x8x16xbf16>, vector<2x8x16xbf16>, vector<2x8x8xf32> -> vector<2x8x8xf32>
    "tpu.trace_stop"() : () -> ()
    %cst_37 = arith.constant 2.500000e-01 : f32
    %125 = vector.broadcast %cst_37 : f32 to vector<2x8x8xf32>
    %126 = arith.mulf %124, %125 : vector<2x8x8xf32>
    %cst_38 = arith.constant dense<0xFF800000> : vector<2x8xf32>
    %127 = vector.multi_reduction <maximumf>, %126, %cst_38 [2] : vector<2x8x8xf32> to vector<2x8xf32>
    %128 = vector.shape_cast %127 : vector<2x8xf32> to vector<2x8x1xf32>
    %129 = vector.broadcast %128 : vector<2x8x1xf32> to vector<2x8x8xf32>
    %130 = arith.subf %126, %129 : vector<2x8x8xf32>
    %131 = math.exp %130 : vector<2x8x8xf32>
    %cst_39 = arith.constant dense<0.000000e+00> : vector<2x8xf32>
    %132 = vector.multi_reduction <add>, %131, %cst_39 [2] : vector<2x8x8xf32> to vector<2x8xf32>
    %133 = vector.shape_cast %132 : vector<2x8xf32> to vector<2x8x1xf32>
    %134 = tpu.reciprocal %133 {approx = true} : vector<2x8x1xf32> -> vector<2x8x1xf32>
    %135 = vector.broadcast %134 : vector<2x8x1xf32> to vector<2x8x8xf32>
    %136 = arith.mulf %131, %135 : vector<2x8x8xf32>
    %137 = arith.truncf %136 : vector<2x8x8xf32> to vector<2x8x8xbf16>
    %138 = arith.truncf %16 : vector<2x8x16xf32> to vector<2x8x16xbf16>
    "tpu.trace_start"() <{level = 10 : i32, message = "bqk,bkd->bqd"}> : () -> ()
    %cst_40 = arith.constant dense<0.000000e+00> : vector<2x8x16xf32>
    %139 = tpu.matmul %137, %138, %cst_40 {dimension_numbers = #tpu.dot_dimension_numbers<[2], [1], [1], [2], [0, 0, 0, 1, 1, 2], [0], [0]>} : vector<2x8x8xbf16>, vector<2x8x16xbf16>, vector<2x8x16xf32> -> vector<2x8x16xf32>
    "tpu.trace_stop"() : () -> ()
    %140 = arith.truncf %121 : vector<2x8x16xf32> to vector<2x8x16xbf16>
    %141 = arith.truncf %14 : vector<2x8x16xf32> to vector<2x8x16xbf16>
    "tpu.trace_start"() <{level = 10 : i32, message = "bqd,bkd->bqk"}> : () -> ()
    %cst_41 = arith.constant dense<0.000000e+00> : vector<2x8x8xf32>
    %142 = tpu.matmul %140, %141, %cst_41 {dimension_numbers = #tpu.dot_dimension_numbers<[2], [2], [1], [1], [0, 0, 0, 1, 1, 1], [0], [0]>} : vector<2x8x16xbf16>, vector<2x8x16xbf16>, vector<2x8x8xf32> -> vector<2x8x8xf32>
    "tpu.trace_stop"() : () -> ()
    %cst_42 = arith.constant 2.500000e-01 : f32
    %143 = vector.broadcast %cst_42 : f32 to vector<2x8x8xf32>
    %144 = arith.mulf %142, %143 : vector<2x8x8xf32>
    %cst_43 = arith.constant dense<0xFF800000> : vector<2x8xf32>
    %145 = vector.multi_reduction <maximumf>, %144, %cst_43 [2] : vector<2x8x8xf32> to vector<2x8xf32>
    %146 = vector.shape_cast %145 : vector<2x8xf32> to vector<2x8x1xf32>
    %147 = vector.broadcast %146 : vector<2x8x1xf32> to vector<2x8x8xf32>
    %148 = arith.subf %144, %147 : vector<2x8x8xf32>
    %149 = math.exp %148 : vector<2x8x8xf32>
    %cst_44 = arith.constant dense<0.000000e+00> : vector<2x8xf32>
    %150 = vector.multi_reduction <add>, %149, %cst_44 [2] : vector<2x8x8xf32> to vector<2x8xf32>
    %151 = vector.shape_cast %150 : vector<2x8xf32> to vector<2x8x1xf32>
    %152 = tpu.reciprocal %151 {approx = true} : vector<2x8x1xf32> -> vector<2x8x1xf32>
    %153 = vector.broadcast %152 : vector<2x8x1xf32> to vector<2x8x8xf32>
    %154 = arith.mulf %149, %153 : vector<2x8x8xf32>
    %155 = arith.truncf %154 : vector<2x8x8xf32> to vector<2x8x8xbf16>
    %156 = arith.truncf %18 : vector<2x8x16xf32> to vector<2x8x16xbf16>
    "tpu.trace_start"() <{level = 10 : i32, message = "bqk,bkd->bqd"}> : () -> ()
    %cst_45 = arith.constant dense<0.000000e+00> : vector<2x8x16xf32>
    %157 = tpu.matmul %155, %156, %cst_45 {dimension_numbers = #tpu.dot_dimension_numbers<[2], [1], [1], [2], [0, 0, 0, 1, 1, 2], [0], [0]>} : vector<2x8x8xbf16>, vector<2x8x16xbf16>, vector<2x8x16xf32> -> vector<2x8x16xf32>
    "tpu.trace_stop"() : () -> ()
    %158 = tpu.concatenate %139, %157 in 2 : vector<2x8x16xf32>, vector<2x8x16xf32> -> vector<2x8x32xf32>
    %159 = vector.shape_cast %158 : vector<2x8x32xf32> to vector<16x32xf32>
    %160 = arith.truncf %159 : vector<16x32xf32> to vector<16x32xbf16>
    %c416 = arith.constant 416 : index
    %c0_46 = arith.constant 0 : index
    %161 = vector.load %arg2[%c416, %c0_46] : memref<1248x128xbf16, #tpu.memory_space<vmem>>, vector<32x128xbf16>
    %cst_47 = arith.constant dense<0.000000e+00> : vector<16x128xf32>
    %162 = tpu.matmul %160, %161, %cst_47 {dimension_numbers = #tpu.dot_dimension_numbers<[1], [0], [0], [1], [0, 0, 1, 1], [], []>} : vector<16x32xbf16>, vector<32x128xbf16>, vector<16x128xf32> -> vector<16x128xf32>
    %c6 = arith.constant 6 : index
    %c0_48 = arith.constant 0 : index
    %163 = vector.load %arg3[%c6, %c0_48] : memref<22x128xf32, #tpu.memory_space<vmem>>, vector<1x128xf32>
    %164 = vector.broadcast %163 : vector<1x128xf32> to vector<16x128xf32>
    %165 = arith.addf %162, %164 : vector<16x128xf32>
    %166 = vector.shape_cast %165 : vector<16x128xf32> to vector<2x8x128xf32>
    %167 = arith.addf %110, %166 : vector<2x8x128xf32>
    %cst_49 = arith.constant dense<0.000000e+00> : vector<2x8xf32>
    %168 = vector.multi_reduction <add>, %167, %cst_49 [2] : vector<2x8x128xf32> to vector<2x8xf32>
    %169 = vector.shape_cast %168 : vector<2x8xf32> to vector<2x8x1xf32>
    %cst_50 = arith.constant 3.125000e-02 : f32
    %170 = vector.broadcast %cst_50 : f32 to vector<2x8x1xf32>
    %171 = arith.mulf %169, %170 : vector<2x8x1xf32>
    %172 = arith.mulf %167, %167 : vector<2x8x128xf32>
    %cst_51 = arith.constant dense<0.000000e+00> : vector<2x8xf32>
    %173 = vector.multi_reduction <add>, %172, %cst_51 [2] : vector<2x8x128xf32> to vector<2x8xf32>
    %174 = vector.shape_cast %173 : vector<2x8xf32> to vector<2x8x1xf32>
    %cst_52 = arith.constant 3.125000e-02 : f32
    %175 = vector.broadcast %cst_52 : f32 to vector<2x8x1xf32>
    %176 = arith.mulf %174, %175 : vector<2x8x1xf32>
    %177 = arith.mulf %171, %171 : vector<2x8x1xf32>
    %178 = arith.subf %176, %177 : vector<2x8x1xf32>
    %179 = vector.broadcast %171 : vector<2x8x1xf32> to vector<2x8x128xf32>
    %180 = arith.subf %167, %179 : vector<2x8x128xf32>
    %cst_53 = arith.constant 9.99999974E-6 : f32
    %181 = vector.broadcast %cst_53 : f32 to vector<2x8x1xf32>
    %182 = arith.addf %178, %181 : vector<2x8x1xf32>
    %183 = math.rsqrt %182 : vector<2x8x1xf32>
    %184 = vector.broadcast %183 : vector<2x8x1xf32> to vector<2x8x128xf32>
    %185 = arith.mulf %180, %184 : vector<2x8x128xf32>
    %c7 = arith.constant 7 : index
    %c0_54 = arith.constant 0 : index
    %186 = vector.load %arg3[%c7, %c0_54] : memref<22x128xf32, #tpu.memory_space<vmem>>, vector<1x128xf32>
    %187 = vector.shape_cast %186 : vector<1x128xf32> to vector<1x1x128xf32>
    %188 = vector.broadcast %187 : vector<1x1x128xf32> to vector<2x8x128xf32>
    %189 = arith.mulf %185, %188 : vector<2x8x128xf32>
    %c8 = arith.constant 8 : index
    %c0_55 = arith.constant 0 : index
    %190 = vector.load %arg3[%c8, %c0_55] : memref<22x128xf32, #tpu.memory_space<vmem>>, vector<1x128xf32>
    %191 = vector.shape_cast %190 : vector<1x128xf32> to vector<1x1x128xf32>
    %192 = vector.broadcast %191 : vector<1x1x128xf32> to vector<2x8x128xf32>
    %193 = arith.addf %189, %192 : vector<2x8x128xf32>
    %194 = vector.shape_cast %193 : vector<2x8x128xf32> to vector<16x128xf32>
    %195 = arith.truncf %194 : vector<16x128xf32> to vector<16x128xbf16>
    %c448 = arith.constant 448 : index
    %c0_56 = arith.constant 0 : index
    %196 = vector.load %arg2[%c448, %c0_56] : memref<1248x128xbf16, #tpu.memory_space<vmem>>, vector<128x128xbf16>
    %cst_57 = arith.constant dense<0.000000e+00> : vector<16x128xf32>
    %197 = tpu.matmul %195, %196, %cst_57 {dimension_numbers = #tpu.dot_dimension_numbers<[1], [0], [0], [1], [0, 0, 1, 1], [], []>} : vector<16x128xbf16>, vector<128x128xbf16>, vector<16x128xf32> -> vector<16x128xf32>
    %c9 = arith.constant 9 : index
    %c0_58 = arith.constant 0 : index
    %198 = vector.load %arg3[%c9, %c0_58] : memref<22x128xf32, #tpu.memory_space<vmem>>, vector<1x128xf32>
    %199 = vector.broadcast %198 : vector<1x128xf32> to vector<16x128xf32>
    %200 = arith.addf %197, %199 : vector<16x128xf32>
    %cst_59 = arith.constant 0.000000e+00 : f32
    %201 = vector.broadcast %cst_59 : f32 to vector<16x128xf32>
    %202 = arith.maximumf %200, %201 : vector<16x128xf32>
    %203 = arith.truncf %202 : vector<16x128xf32> to vector<16x128xbf16>
    %c576 = arith.constant 576 : index
    %c0_60 = arith.constant 0 : index
    %204 = vector.load %arg2[%c576, %c0_60] : memref<1248x128xbf16, #tpu.memory_space<vmem>>, vector<128x128xbf16>
    %cst_61 = arith.constant dense<0.000000e+00> : vector<16x128xf32>
    %205 = tpu.matmul %203, %204, %cst_61 {dimension_numbers = #tpu.dot_dimension_numbers<[1], [0], [0], [1], [0, 0, 1, 1], [], []>} : vector<16x128xbf16>, vector<128x128xbf16>, vector<16x128xf32> -> vector<16x128xf32>
    %c10 = arith.constant 10 : index
    %c0_62 = arith.constant 0 : index
    %206 = vector.load %arg3[%c10, %c0_62] : memref<22x128xf32, #tpu.memory_space<vmem>>, vector<1x128xf32>
    %207 = vector.broadcast %206 : vector<1x128xf32> to vector<16x128xf32>
    %208 = arith.addf %205, %207 : vector<16x128xf32>
    %209 = vector.shape_cast %208 : vector<16x128xf32> to vector<2x8x128xf32>
    %210 = arith.addf %193, %209 : vector<2x8x128xf32>
    %cst_63 = arith.constant dense<0.000000e+00> : vector<2x8xf32>
    %211 = vector.multi_reduction <add>, %210, %cst_63 [2] : vector<2x8x128xf32> to vector<2x8xf32>
    %212 = vector.shape_cast %211 : vector<2x8xf32> to vector<2x8x1xf32>
    %cst_64 = arith.constant 3.125000e-02 : f32
    %213 = vector.broadcast %cst_64 : f32 to vector<2x8x1xf32>
    %214 = arith.mulf %212, %213 : vector<2x8x1xf32>
    %215 = arith.mulf %210, %210 : vector<2x8x128xf32>
    %cst_65 = arith.constant dense<0.000000e+00> : vector<2x8xf32>
    %216 = vector.multi_reduction <add>, %215, %cst_65 [2] : vector<2x8x128xf32> to vector<2x8xf32>
    %217 = vector.shape_cast %216 : vector<2x8xf32> to vector<2x8x1xf32>
    %cst_66 = arith.constant 3.125000e-02 : f32
    %218 = vector.broadcast %cst_66 : f32 to vector<2x8x1xf32>
    %219 = arith.mulf %217, %218 : vector<2x8x1xf32>
    %220 = arith.mulf %214, %214 : vector<2x8x1xf32>
    %221 = arith.subf %219, %220 : vector<2x8x1xf32>
    %222 = vector.broadcast %214 : vector<2x8x1xf32> to vector<2x8x128xf32>
    %223 = arith.subf %210, %222 : vector<2x8x128xf32>
    %cst_67 = arith.constant 9.99999974E-6 : f32
    %224 = vector.broadcast %cst_67 : f32 to vector<2x8x1xf32>
    %225 = arith.addf %221, %224 : vector<2x8x1xf32>
    %226 = math.rsqrt %225 : vector<2x8x1xf32>
    %227 = vector.broadcast %226 : vector<2x8x1xf32> to vector<2x8x128xf32>
    %228 = arith.mulf %223, %227 : vector<2x8x128xf32>
    %c11 = arith.constant 11 : index
    %c0_68 = arith.constant 0 : index
    %229 = vector.load %arg3[%c11, %c0_68] : memref<22x128xf32, #tpu.memory_space<vmem>>, vector<1x128xf32>
    %230 = vector.shape_cast %229 : vector<1x128xf32> to vector<1x1x128xf32>
    %231 = vector.broadcast %230 : vector<1x1x128xf32> to vector<2x8x128xf32>
    %232 = arith.mulf %228, %231 : vector<2x8x128xf32>
    %c12 = arith.constant 12 : index
    %c0_69 = arith.constant 0 : index
    %233 = vector.load %arg3[%c12, %c0_69] : memref<22x128xf32, #tpu.memory_space<vmem>>, vector<1x128xf32>
    %234 = vector.shape_cast %233 : vector<1x128xf32> to vector<1x1x128xf32>
    %235 = vector.broadcast %234 : vector<1x1x128xf32> to vector<2x8x128xf32>
    %236 = arith.addf %232, %235 : vector<2x8x128xf32>
    %237 = vector.shape_cast %236 : vector<2x8x128xf32> to vector<16x128xf32>
    %238 = arith.truncf %237 : vector<16x128xf32> to vector<16x128xbf16>
    %c1120 = arith.constant 1120 : index
    %c0_70 = arith.constant 0 : index
    %239 = vector.load %arg2[%c1120, %c0_70] : memref<1248x128xbf16, #tpu.memory_space<vmem>>, vector<128x128xbf16>
    %cst_71 = arith.constant dense<0.000000e+00> : vector<16x128xf32>
    %240 = tpu.matmul %238, %239, %cst_71 {dimension_numbers = #tpu.dot_dimension_numbers<[1], [0], [0], [1], [0, 0, 1, 1], [], []>} : vector<16x128xbf16>, vector<128x128xbf16>, vector<16x128xf32> -> vector<16x128xf32>
    %c21 = arith.constant 21 : index
    %c0_72 = arith.constant 0 : index
    %241 = vector.load %arg3[%c21, %c0_72] : memref<22x128xf32, #tpu.memory_space<vmem>>, vector<1x128xf32>
    %242 = vector.broadcast %241 : vector<1x128xf32> to vector<16x128xf32>
    %243 = arith.addf %240, %242 : vector<16x128xf32>
    %244 = vector.extract_strided_slice %243 {offsets = [0, 0], sizes = [16, 1], strides = [1, 1]} : vector<16x128xf32> to vector<16x1xf32>
    %245 = vector.shape_cast %244 : vector<16x1xf32> to vector<1x16x1xf32>
    %cst_73 = arith.constant dense<0.000000e+00> : vector<1xf32>
    %246 = vector.multi_reduction <add>, %245, %cst_73 [1, 2] : vector<1x16x1xf32> to vector<1xf32>
    %247 = vector.shape_cast %246 : vector<1xf32> to vector<1x1x1xf32>
    %248 = vector.extract %247[0, 0, 0] : f32 from vector<1x1x1xf32>
    %cst_74 = arith.constant 1.600000e+01 : f32
    %249 = arith.divf %248, %cst_74 : f32
    %250 = vector.extract_strided_slice %243 {offsets = [0, 1], sizes = [16, 1], strides = [1, 1]} : vector<16x128xf32> to vector<16x1xf32>
    %cst_75 = arith.constant dense<0xFF800000> : vector<16xf32>
    %251 = vector.multi_reduction <maximumf>, %250, %cst_75 [1] : vector<16x1xf32> to vector<16xf32>
    %252 = vector.shape_cast %251 : vector<16xf32> to vector<16x1xf32>
    %253 = arith.subf %250, %252 : vector<16x1xf32>
    %254 = math.exp %253 : vector<16x1xf32>
    %cst_76 = arith.constant dense<0.000000e+00> : vector<16xf32>
    %255 = vector.multi_reduction <add>, %254, %cst_76 [1] : vector<16x1xf32> to vector<16xf32>
    %256 = vector.shape_cast %255 : vector<16xf32> to vector<16x1xf32>
    %257 = tpu.reciprocal %256 {approx = true} : vector<16x1xf32> -> vector<16x1xf32>
    %258 = arith.mulf %254, %257 : vector<16x1xf32>
    %cst_77 = arith.constant dense<0xFF800000> : vector<16xf32>
    %259 = vector.multi_reduction <maximumf>, %258, %cst_77 [1] : vector<16x1xf32> to vector<16xf32>
    %260 = vector.shape_cast %259 : vector<16xf32> to vector<16x1xf32>
    %261 = vector.shape_cast %260 : vector<16x1xf32> to vector<1x16x1xf32>
    %cst_78 = arith.constant dense<0.000000e+00> : vector<1xf32>
    %262 = vector.multi_reduction <add>, %261, %cst_78 [1, 2] : vector<1x16x1xf32> to vector<1xf32>
    %263 = vector.shape_cast %262 : vector<1xf32> to vector<1x1x1xf32>
    %264 = vector.extract %263[0, 0, 0] : f32 from vector<1x1x1xf32>
    %cst_79 = arith.constant 1.600000e+01 : f32
    %265 = arith.divf %264, %cst_79 : f32
    %266 = arith.mulf %236, %236 : vector<2x8x128xf32>
    %cst_80 = arith.constant dense<0.000000e+00> : vector<2x8xf32>
    %267 = vector.multi_reduction <add>, %266, %cst_80 [2] : vector<2x8x128xf32> to vector<2x8xf32>
    %268 = vector.shape_cast %267 : vector<2x8xf32> to vector<2x8x1xf32>
    %269 = math.sqrt %268 : vector<2x8x1xf32>
    %270 = vector.shape_cast %269 : vector<2x8x1xf32> to vector<1x2x8x1xf32>
    %cst_81 = arith.constant dense<0.000000e+00> : vector<1xf32>
    %271 = vector.multi_reduction <add>, %270, %cst_81 [1, 2, 3] : vector<1x2x8x1xf32> to vector<1xf32>
    %272 = vector.shape_cast %271 : vector<1xf32> to vector<1x1x1x1xf32>
    %273 = vector.extract %272[0, 0, 0, 0] : f32 from vector<1x1x1x1xf32>
    %cst_82 = arith.constant 1.600000e+01 : f32
    %274 = arith.divf %273, %cst_82 : f32
    %c0_i32 = arith.constant 0 : i32
    %275 = vector.broadcast %c0_i32 : i32 to vector<1x128xi32>
    %276 = arith.cmpi eq, %19, %275 : vector<1x128xi32>
    %cst_83 = arith.constant 0.000000e+00 : f32
    %277 = vector.broadcast %249 : f32 to vector<1x128xf32>
    %278 = vector.broadcast %cst_83 : f32 to vector<1x128xf32>
    %279 = arith.select %276, %277, %278 : vector<1x128xi1>, vector<1x128xf32>
    %c1_i32 = arith.constant 1 : i32
    %280 = vector.broadcast %c1_i32 : i32 to vector<1x128xi32>
    %281 = arith.cmpi eq, %19, %280 : vector<1x128xi32>
    %cst_84 = arith.constant 0.000000e+00 : f32
    %282 = vector.broadcast %265 : f32 to vector<1x128xf32>
    %283 = vector.broadcast %cst_84 : f32 to vector<1x128xf32>
    %284 = arith.select %281, %282, %283 : vector<1x128xi1>, vector<1x128xf32>
    %285 = arith.addf %279, %284 : vector<1x128xf32>
    %c2_i32 = arith.constant 2 : i32
    %286 = vector.broadcast %c2_i32 : i32 to vector<1x128xi32>
    %287 = arith.cmpi eq, %19, %286 : vector<1x128xi32>
    %cst_85 = arith.constant 0.000000e+00 : f32
    %288 = vector.broadcast %274 : f32 to vector<1x128xf32>
    %289 = vector.broadcast %cst_85 : f32 to vector<1x128xf32>
    %290 = arith.select %287, %288, %289 : vector<1x128xi1>, vector<1x128xf32>
    %291 = arith.addf %285, %290 : vector<1x128xf32>
    %292 = arith.addf %236, %3 : vector<2x8x128xf32>
    %293 = vector.shape_cast %292 : vector<2x8x128xf32> to vector<16x128xf32>
    %294 = arith.truncf %293 : vector<16x128xf32> to vector<16x128xbf16>
    %c0_86 = arith.constant 0 : index
    %c0_87 = arith.constant 0 : index
    %295 = vector.load %arg2[%c0_86, %c0_87] : memref<1248x128xbf16, #tpu.memory_space<vmem>>, vector<128x128xbf16>
    %cst_88 = arith.constant dense<0.000000e+00> : vector<16x128xf32>
    %296 = tpu.matmul %294, %295, %cst_88 {dimension_numbers = #tpu.dot_dimension_numbers<[1], [0], [0], [1], [0, 0, 1, 1], [], []>} : vector<16x128xbf16>, vector<128x128xbf16>, vector<16x128xf32> -> vector<16x128xf32>
    %c0_89 = arith.constant 0 : index
    %c0_90 = arith.constant 0 : index
    %297 = vector.load %arg3[%c0_89, %c0_90] : memref<22x128xf32, #tpu.memory_space<vmem>>, vector<1x128xf32>
    %298 = vector.broadcast %297 : vector<1x128xf32> to vector<16x128xf32>
    %299 = arith.addf %296, %298 : vector<16x128xf32>
    %300 = vector.extract_strided_slice %299 {offsets = [0, 0], sizes = [16, 16], strides = [1, 1]} : vector<16x128xf32> to vector<16x16xf32>
    %301 = vector.shape_cast %300 : vector<16x16xf32> to vector<2x8x16xf32>
    %302 = vector.extract_strided_slice %299 {offsets = [0, 16], sizes = [16, 16], strides = [1, 1]} : vector<16x128xf32> to vector<16x16xf32>
    %303 = vector.shape_cast %302 : vector<16x16xf32> to vector<2x8x16xf32>
    %304 = vector.extract_strided_slice %299 {offsets = [0, 32], sizes = [16, 16], strides = [1, 1]} : vector<16x128xf32> to vector<16x16xf32>
    %305 = vector.shape_cast %304 : vector<16x16xf32> to vector<2x8x16xf32>
    %306 = vector.extract_strided_slice %299 {offsets = [0, 48], sizes = [16, 16], strides = [1, 1]} : vector<16x128xf32> to vector<16x16xf32>
    %307 = vector.shape_cast %306 : vector<16x16xf32> to vector<2x8x16xf32>
    %308 = vector.extract_strided_slice %299 {offsets = [0, 64], sizes = [16, 16], strides = [1, 1]} : vector<16x128xf32> to vector<16x16xf32>
    %309 = vector.shape_cast %308 : vector<16x16xf32> to vector<2x8x16xf32>
    %310 = vector.extract_strided_slice %299 {offsets = [0, 80], sizes = [16, 16], strides = [1, 1]} : vector<16x128xf32> to vector<16x16xf32>
    %311 = vector.shape_cast %310 : vector<16x16xf32> to vector<2x8x16xf32>
    %312 = arith.truncf %301 : vector<2x8x16xf32> to vector<2x8x16xbf16>
    %313 = arith.truncf %305 : vector<2x8x16xf32> to vector<2x8x16xbf16>
    "tpu.trace_start"() <{level = 10 : i32, message = "bqd,bkd->bqk"}> : () -> ()
    %cst_91 = arith.constant dense<0.000000e+00> : vector<2x8x8xf32>
    %314 = tpu.matmul %312, %313, %cst_91 {dimension_numbers = #tpu.dot_dimension_numbers<[2], [2], [1], [1], [0, 0, 0, 1, 1, 1], [0], [0]>} : vector<2x8x16xbf16>, vector<2x8x16xbf16>, vector<2x8x8xf32> -> vector<2x8x8xf32>
    "tpu.trace_stop"() : () -> ()
    %cst_92 = arith.constant 2.500000e-01 : f32
    %315 = vector.broadcast %cst_92 : f32 to vector<2x8x8xf32>
    %316 = arith.mulf %314, %315 : vector<2x8x8xf32>
    %cst_93 = arith.constant dense<0xFF800000> : vector<2x8xf32>
    %317 = vector.multi_reduction <maximumf>, %316, %cst_93 [2] : vector<2x8x8xf32> to vector<2x8xf32>
    %318 = vector.shape_cast %317 : vector<2x8xf32> to vector<2x8x1xf32>
    %319 = vector.broadcast %318 : vector<2x8x1xf32> to vector<2x8x8xf32>
    %320 = arith.subf %316, %319 : vector<2x8x8xf32>
    %321 = math.exp %320 : vector<2x8x8xf32>
    %cst_94 = arith.constant dense<0.000000e+00> : vector<2x8xf32>
    %322 = vector.multi_reduction <add>, %321, %cst_94 [2] : vector<2x8x8xf32> to vector<2x8xf32>
    %323 = vector.shape_cast %322 : vector<2x8xf32> to vector<2x8x1xf32>
    %324 = tpu.reciprocal %323 {approx = true} : vector<2x8x1xf32> -> vector<2x8x1xf32>
    %325 = vector.broadcast %324 : vector<2x8x1xf32> to vector<2x8x8xf32>
    %326 = arith.mulf %321, %325 : vector<2x8x8xf32>
    %327 = arith.truncf %326 : vector<2x8x8xf32> to vector<2x8x8xbf16>
    %328 = arith.truncf %309 : vector<2x8x16xf32> to vector<2x8x16xbf16>
    "tpu.trace_start"() <{level = 10 : i32, message = "bqk,bkd->bqd"}> : () -> ()
    %cst_95 = arith.constant dense<0.000000e+00> : vector<2x8x16xf32>
    %329 = tpu.matmul %327, %328, %cst_95 {dimension_numbers = #tpu.dot_dimension_numbers<[2], [1], [1], [2], [0, 0, 0, 1, 1, 2], [0], [0]>} : vector<2x8x8xbf16>, vector<2x8x16xbf16>, vector<2x8x16xf32> -> vector<2x8x16xf32>
    "tpu.trace_stop"() : () -> ()
    %330 = arith.truncf %303 : vector<2x8x16xf32> to vector<2x8x16xbf16>
    %331 = arith.truncf %307 : vector<2x8x16xf32> to vector<2x8x16xbf16>
    "tpu.trace_start"() <{level = 10 : i32, message = "bqd,bkd->bqk"}> : () -> ()
    %cst_96 = arith.constant dense<0.000000e+00> : vector<2x8x8xf32>
    %332 = tpu.matmul %330, %331, %cst_96 {dimension_numbers = #tpu.dot_dimension_numbers<[2], [2], [1], [1], [0, 0, 0, 1, 1, 1], [0], [0]>} : vector<2x8x16xbf16>, vector<2x8x16xbf16>, vector<2x8x8xf32> -> vector<2x8x8xf32>
    "tpu.trace_stop"() : () -> ()
    %cst_97 = arith.constant 2.500000e-01 : f32
    %333 = vector.broadcast %cst_97 : f32 to vector<2x8x8xf32>
    %334 = arith.mulf %332, %333 : vector<2x8x8xf32>
    %cst_98 = arith.constant dense<0xFF800000> : vector<2x8xf32>
    %335 = vector.multi_reduction <maximumf>, %334, %cst_98 [2] : vector<2x8x8xf32> to vector<2x8xf32>
    %336 = vector.shape_cast %335 : vector<2x8xf32> to vector<2x8x1xf32>
    %337 = vector.broadcast %336 : vector<2x8x1xf32> to vector<2x8x8xf32>
    %338 = arith.subf %334, %337 : vector<2x8x8xf32>
    %339 = math.exp %338 : vector<2x8x8xf32>
    %cst_99 = arith.constant dense<0.000000e+00> : vector<2x8xf32>
    %340 = vector.multi_reduction <add>, %339, %cst_99 [2] : vector<2x8x8xf32> to vector<2x8xf32>
    %341 = vector.shape_cast %340 : vector<2x8xf32> to vector<2x8x1xf32>
    %342 = tpu.reciprocal %341 {approx = true} : vector<2x8x1xf32> -> vector<2x8x1xf32>
    %343 = vector.broadcast %342 : vector<2x8x1xf32> to vector<2x8x8xf32>
    %344 = arith.mulf %339, %343 : vector<2x8x8xf32>
    %345 = arith.truncf %344 : vector<2x8x8xf32> to vector<2x8x8xbf16>
    %346 = arith.truncf %311 : vector<2x8x16xf32> to vector<2x8x16xbf16>
    "tpu.trace_start"() <{level = 10 : i32, message = "bqk,bkd->bqd"}> : () -> ()
    %cst_100 = arith.constant dense<0.000000e+00> : vector<2x8x16xf32>
    %347 = tpu.matmul %345, %346, %cst_100 {dimension_numbers = #tpu.dot_dimension_numbers<[2], [1], [1], [2], [0, 0, 0, 1, 1, 2], [0], [0]>} : vector<2x8x8xbf16>, vector<2x8x16xbf16>, vector<2x8x16xf32> -> vector<2x8x16xf32>
    "tpu.trace_stop"() : () -> ()
    %348 = tpu.concatenate %329, %347 in 2 : vector<2x8x16xf32>, vector<2x8x16xf32> -> vector<2x8x32xf32>
    %349 = vector.shape_cast %348 : vector<2x8x32xf32> to vector<16x32xf32>
    %350 = arith.truncf %349 : vector<16x32xf32> to vector<16x32xbf16>
    %c128_101 = arith.constant 128 : index
    %c0_102 = arith.constant 0 : index
    %351 = vector.load %arg2[%c128_101, %c0_102] : memref<1248x128xbf16, #tpu.memory_space<vmem>>, vector<32x128xbf16>
    %cst_103 = arith.constant dense<0.000000e+00> : vector<16x128xf32>
    %352 = tpu.matmul %350, %351, %cst_103 {dimension_numbers = #tpu.dot_dimension_numbers<[1], [0], [0], [1], [0, 0, 1, 1], [], []>} : vector<16x32xbf16>, vector<32x128xbf16>, vector<16x128xf32> -> vector<16x128xf32>
    %c1_104 = arith.constant 1 : index
    %c0_105 = arith.constant 0 : index
    %353 = vector.load %arg3[%c1_104, %c0_105] : memref<22x128xf32, #tpu.memory_space<vmem>>, vector<1x128xf32>
    %354 = vector.broadcast %353 : vector<1x128xf32> to vector<16x128xf32>
    %355 = arith.addf %352, %354 : vector<16x128xf32>
    %356 = vector.shape_cast %355 : vector<16x128xf32> to vector<2x8x128xf32>
    %357 = arith.addf %292, %356 : vector<2x8x128xf32>
    %cst_106 = arith.constant dense<0.000000e+00> : vector<2x8xf32>
    %358 = vector.multi_reduction <add>, %357, %cst_106 [2] : vector<2x8x128xf32> to vector<2x8xf32>
    %359 = vector.shape_cast %358 : vector<2x8xf32> to vector<2x8x1xf32>
    %cst_107 = arith.constant 3.125000e-02 : f32
    %360 = vector.broadcast %cst_107 : f32 to vector<2x8x1xf32>
    %361 = arith.mulf %359, %360 : vector<2x8x1xf32>
    %362 = arith.mulf %357, %357 : vector<2x8x128xf32>
    %cst_108 = arith.constant dense<0.000000e+00> : vector<2x8xf32>
    %363 = vector.multi_reduction <add>, %362, %cst_108 [2] : vector<2x8x128xf32> to vector<2x8xf32>
    %364 = vector.shape_cast %363 : vector<2x8xf32> to vector<2x8x1xf32>
    %cst_109 = arith.constant 3.125000e-02 : f32
    %365 = vector.broadcast %cst_109 : f32 to vector<2x8x1xf32>
    %366 = arith.mulf %364, %365 : vector<2x8x1xf32>
    %367 = arith.mulf %361, %361 : vector<2x8x1xf32>
    %368 = arith.subf %366, %367 : vector<2x8x1xf32>
    %369 = vector.broadcast %361 : vector<2x8x1xf32> to vector<2x8x128xf32>
    %370 = arith.subf %357, %369 : vector<2x8x128xf32>
    %cst_110 = arith.constant 9.99999974E-6 : f32
    %371 = vector.broadcast %cst_110 : f32 to vector<2x8x1xf32>
    %372 = arith.addf %368, %371 : vector<2x8x1xf32>
    %373 = math.rsqrt %372 : vector<2x8x1xf32>
    %374 = vector.broadcast %373 : vector<2x8x1xf32> to vector<2x8x128xf32>
    %375 = arith.mulf %370, %374 : vector<2x8x128xf32>
    %c2_111 = arith.constant 2 : index
    %c0_112 = arith.constant 0 : index
    %376 = vector.load %arg3[%c2_111, %c0_112] : memref<22x128xf32, #tpu.memory_space<vmem>>, vector<1x128xf32>
    %377 = vector.shape_cast %376 : vector<1x128xf32> to vector<1x1x128xf32>
    %378 = vector.broadcast %377 : vector<1x1x128xf32> to vector<2x8x128xf32>
    %379 = arith.mulf %375, %378 : vector<2x8x128xf32>
    %c3_113 = arith.constant 3 : index
    %c0_114 = arith.constant 0 : index
    %380 = vector.load %arg3[%c3_113, %c0_114] : memref<22x128xf32, #tpu.memory_space<vmem>>, vector<1x128xf32>
    %381 = vector.shape_cast %380 : vector<1x128xf32> to vector<1x1x128xf32>
    %382 = vector.broadcast %381 : vector<1x1x128xf32> to vector<2x8x128xf32>
    %383 = arith.addf %379, %382 : vector<2x8x128xf32>
    %384 = vector.shape_cast %383 : vector<2x8x128xf32> to vector<16x128xf32>
    %385 = arith.truncf %384 : vector<16x128xf32> to vector<16x128xbf16>
    %c160_115 = arith.constant 160 : index
    %c0_116 = arith.constant 0 : index
    %386 = vector.load %arg2[%c160_115, %c0_116] : memref<1248x128xbf16, #tpu.memory_space<vmem>>, vector<128x128xbf16>
    %cst_117 = arith.constant dense<0.000000e+00> : vector<16x128xf32>
    %387 = tpu.matmul %385, %386, %cst_117 {dimension_numbers = #tpu.dot_dimension_numbers<[1], [0], [0], [1], [0, 0, 1, 1], [], []>} : vector<16x128xbf16>, vector<128x128xbf16>, vector<16x128xf32> -> vector<16x128xf32>
    %c4_118 = arith.constant 4 : index
    %c0_119 = arith.constant 0 : index
    %388 = vector.load %arg3[%c4_118, %c0_119] : memref<22x128xf32, #tpu.memory_space<vmem>>, vector<1x128xf32>
    %389 = vector.broadcast %388 : vector<1x128xf32> to vector<16x128xf32>
    %390 = arith.addf %387, %389 : vector<16x128xf32>
    %391 = vector.extract_strided_slice %390 {offsets = [0, 0], sizes = [16, 16], strides = [1, 1]} : vector<16x128xf32> to vector<16x16xf32>
    %392 = vector.shape_cast %391 : vector<16x16xf32> to vector<2x8x16xf32>
    %393 = vector.extract_strided_slice %390 {offsets = [0, 16], sizes = [16, 16], strides = [1, 1]} : vector<16x128xf32> to vector<16x16xf32>
    %394 = vector.shape_cast %393 : vector<16x16xf32> to vector<2x8x16xf32>
    %395 = arith.truncf %392 : vector<2x8x16xf32> to vector<2x8x16xbf16>
    %396 = arith.truncf %12 : vector<2x8x16xf32> to vector<2x8x16xbf16>
    "tpu.trace_start"() <{level = 10 : i32, message = "bqd,bkd->bqk"}> : () -> ()
    %cst_120 = arith.constant dense<0.000000e+00> : vector<2x8x8xf32>
    %397 = tpu.matmul %395, %396, %cst_120 {dimension_numbers = #tpu.dot_dimension_numbers<[2], [2], [1], [1], [0, 0, 0, 1, 1, 1], [0], [0]>} : vector<2x8x16xbf16>, vector<2x8x16xbf16>, vector<2x8x8xf32> -> vector<2x8x8xf32>
    "tpu.trace_stop"() : () -> ()
    %cst_121 = arith.constant 2.500000e-01 : f32
    %398 = vector.broadcast %cst_121 : f32 to vector<2x8x8xf32>
    %399 = arith.mulf %397, %398 : vector<2x8x8xf32>
    %cst_122 = arith.constant dense<0xFF800000> : vector<2x8xf32>
    %400 = vector.multi_reduction <maximumf>, %399, %cst_122 [2] : vector<2x8x8xf32> to vector<2x8xf32>
    %401 = vector.shape_cast %400 : vector<2x8xf32> to vector<2x8x1xf32>
    %402 = vector.broadcast %401 : vector<2x8x1xf32> to vector<2x8x8xf32>
    %403 = arith.subf %399, %402 : vector<2x8x8xf32>
    %404 = math.exp %403 : vector<2x8x8xf32>
    %cst_123 = arith.constant dense<0.000000e+00> : vector<2x8xf32>
    %405 = vector.multi_reduction <add>, %404, %cst_123 [2] : vector<2x8x8xf32> to vector<2x8xf32>
    %406 = vector.shape_cast %405 : vector<2x8xf32> to vector<2x8x1xf32>
    %407 = tpu.reciprocal %406 {approx = true} : vector<2x8x1xf32> -> vector<2x8x1xf32>
    %408 = vector.broadcast %407 : vector<2x8x1xf32> to vector<2x8x8xf32>
    %409 = arith.mulf %404, %408 : vector<2x8x8xf32>
    %410 = arith.truncf %409 : vector<2x8x8xf32> to vector<2x8x8xbf16>
    %411 = arith.truncf %16 : vector<2x8x16xf32> to vector<2x8x16xbf16>
    "tpu.trace_start"() <{level = 10 : i32, message = "bqk,bkd->bqd"}> : () -> ()
    %cst_124 = arith.constant dense<0.000000e+00> : vector<2x8x16xf32>
    %412 = tpu.matmul %410, %411, %cst_124 {dimension_numbers = #tpu.dot_dimension_numbers<[2], [1], [1], [2], [0, 0, 0, 1, 1, 2], [0], [0]>} : vector<2x8x8xbf16>, vector<2x8x16xbf16>, vector<2x8x16xf32> -> vector<2x8x16xf32>
    "tpu.trace_stop"() : () -> ()
    %413 = arith.truncf %394 : vector<2x8x16xf32> to vector<2x8x16xbf16>
    %414 = arith.truncf %14 : vector<2x8x16xf32> to vector<2x8x16xbf16>
    "tpu.trace_start"() <{level = 10 : i32, message = "bqd,bkd->bqk"}> : () -> ()
    %cst_125 = arith.constant dense<0.000000e+00> : vector<2x8x8xf32>
    %415 = tpu.matmul %413, %414, %cst_125 {dimension_numbers = #tpu.dot_dimension_numbers<[2], [2], [1], [1], [0, 0, 0, 1, 1, 1], [0], [0]>} : vector<2x8x16xbf16>, vector<2x8x16xbf16>, vector<2x8x8xf32> -> vector<2x8x8xf32>
    "tpu.trace_stop"() : () -> ()
    %cst_126 = arith.constant 2.500000e-01 : f32
    %416 = vector.broadcast %cst_126 : f32 to vector<2x8x8xf32>
    %417 = arith.mulf %415, %416 : vector<2x8x8xf32>
    %cst_127 = arith.constant dense<0xFF800000> : vector<2x8xf32>
    %418 = vector.multi_reduction <maximumf>, %417, %cst_127 [2] : vector<2x8x8xf32> to vector<2x8xf32>
    %419 = vector.shape_cast %418 : vector<2x8xf32> to vector<2x8x1xf32>
    %420 = vector.broadcast %419 : vector<2x8x1xf32> to vector<2x8x8xf32>
    %421 = arith.subf %417, %420 : vector<2x8x8xf32>
    %422 = math.exp %421 : vector<2x8x8xf32>
    %cst_128 = arith.constant dense<0.000000e+00> : vector<2x8xf32>
    %423 = vector.multi_reduction <add>, %422, %cst_128 [2] : vector<2x8x8xf32> to vector<2x8xf32>
    %424 = vector.shape_cast %423 : vector<2x8xf32> to vector<2x8x1xf32>
    %425 = tpu.reciprocal %424 {approx = true} : vector<2x8x1xf32> -> vector<2x8x1xf32>
    %426 = vector.broadcast %425 : vector<2x8x1xf32> to vector<2x8x8xf32>
    %427 = arith.mulf %422, %426 : vector<2x8x8xf32>
    %428 = arith.truncf %427 : vector<2x8x8xf32> to vector<2x8x8xbf16>
    %429 = arith.truncf %18 : vector<2x8x16xf32> to vector<2x8x16xbf16>
    "tpu.trace_start"() <{level = 10 : i32, message = "bqk,bkd->bqd"}> : () -> ()
    %cst_129 = arith.constant dense<0.000000e+00> : vector<2x8x16xf32>
    %430 = tpu.matmul %428, %429, %cst_129 {dimension_numbers = #tpu.dot_dimension_numbers<[2], [1], [1], [2], [0, 0, 0, 1, 1, 2], [0], [0]>} : vector<2x8x8xbf16>, vector<2x8x16xbf16>, vector<2x8x16xf32> -> vector<2x8x16xf32>
    "tpu.trace_stop"() : () -> ()
    %431 = tpu.concatenate %412, %430 in 2 : vector<2x8x16xf32>, vector<2x8x16xf32> -> vector<2x8x32xf32>
    %432 = vector.shape_cast %431 : vector<2x8x32xf32> to vector<16x32xf32>
    %433 = arith.truncf %432 : vector<16x32xf32> to vector<16x32xbf16>
    %c416_130 = arith.constant 416 : index
    %c0_131 = arith.constant 0 : index
    %434 = vector.load %arg2[%c416_130, %c0_131] : memref<1248x128xbf16, #tpu.memory_space<vmem>>, vector<32x128xbf16>
    %cst_132 = arith.constant dense<0.000000e+00> : vector<16x128xf32>
    %435 = tpu.matmul %433, %434, %cst_132 {dimension_numbers = #tpu.dot_dimension_numbers<[1], [0], [0], [1], [0, 0, 1, 1], [], []>} : vector<16x32xbf16>, vector<32x128xbf16>, vector<16x128xf32> -> vector<16x128xf32>
    %c6_133 = arith.constant 6 : index
    %c0_134 = arith.constant 0 : index
    %436 = vector.load %arg3[%c6_133, %c0_134] : memref<22x128xf32, #tpu.memory_space<vmem>>, vector<1x128xf32>
    %437 = vector.broadcast %436 : vector<1x128xf32> to vector<16x128xf32>
    %438 = arith.addf %435, %437 : vector<16x128xf32>
    %439 = vector.shape_cast %438 : vector<16x128xf32> to vector<2x8x128xf32>
    %440 = arith.addf %383, %439 : vector<2x8x128xf32>
    %cst_135 = arith.constant dense<0.000000e+00> : vector<2x8xf32>
    %441 = vector.multi_reduction <add>, %440, %cst_135 [2] : vector<2x8x128xf32> to vector<2x8xf32>
    %442 = vector.shape_cast %441 : vector<2x8xf32> to vector<2x8x1xf32>
    %cst_136 = arith.constant 3.125000e-02 : f32
    %443 = vector.broadcast %cst_136 : f32 to vector<2x8x1xf32>
    %444 = arith.mulf %442, %443 : vector<2x8x1xf32>
    %445 = arith.mulf %440, %440 : vector<2x8x128xf32>
    %cst_137 = arith.constant dense<0.000000e+00> : vector<2x8xf32>
    %446 = vector.multi_reduction <add>, %445, %cst_137 [2] : vector<2x8x128xf32> to vector<2x8xf32>
    %447 = vector.shape_cast %446 : vector<2x8xf32> to vector<2x8x1xf32>
    %cst_138 = arith.constant 3.125000e-02 : f32
    %448 = vector.broadcast %cst_138 : f32 to vector<2x8x1xf32>
    %449 = arith.mulf %447, %448 : vector<2x8x1xf32>
    %450 = arith.mulf %444, %444 : vector<2x8x1xf32>
    %451 = arith.subf %449, %450 : vector<2x8x1xf32>
    %452 = vector.broadcast %444 : vector<2x8x1xf32> to vector<2x8x128xf32>
    %453 = arith.subf %440, %452 : vector<2x8x128xf32>
    %cst_139 = arith.constant 9.99999974E-6 : f32
    %454 = vector.broadcast %cst_139 : f32 to vector<2x8x1xf32>
    %455 = arith.addf %451, %454 : vector<2x8x1xf32>
    %456 = math.rsqrt %455 : vector<2x8x1xf32>
    %457 = vector.broadcast %456 : vector<2x8x1xf32> to vector<2x8x128xf32>
    %458 = arith.mulf %453, %457 : vector<2x8x128xf32>
    %c7_140 = arith.constant 7 : index
    %c0_141 = arith.constant 0 : index
    %459 = vector.load %arg3[%c7_140, %c0_141] : memref<22x128xf32, #tpu.memory_space<vmem>>, vector<1x128xf32>
    %460 = vector.shape_cast %459 : vector<1x128xf32> to vector<1x1x128xf32>
    %461 = vector.broadcast %460 : vector<1x1x128xf32> to vector<2x8x128xf32>
    %462 = arith.mulf %458, %461 : vector<2x8x128xf32>
    %c8_142 = arith.constant 8 : index
    %c0_143 = arith.constant 0 : index
    %463 = vector.load %arg3[%c8_142, %c0_143] : memref<22x128xf32, #tpu.memory_space<vmem>>, vector<1x128xf32>
    %464 = vector.shape_cast %463 : vector<1x128xf32> to vector<1x1x128xf32>
    %465 = vector.broadcast %464 : vector<1x1x128xf32> to vector<2x8x128xf32>
    %466 = arith.addf %462, %465 : vector<2x8x128xf32>
    %467 = vector.shape_cast %466 : vector<2x8x128xf32> to vector<16x128xf32>
    %468 = arith.truncf %467 : vector<16x128xf32> to vector<16x128xbf16>
    %c448_144 = arith.constant 448 : index
    %c0_145 = arith.constant 0 : index
    %469 = vector.load %arg2[%c448_144, %c0_145] : memref<1248x128xbf16, #tpu.memory_space<vmem>>, vector<128x128xbf16>
    %cst_146 = arith.constant dense<0.000000e+00> : vector<16x128xf32>
    %470 = tpu.matmul %468, %469, %cst_146 {dimension_numbers = #tpu.dot_dimension_numbers<[1], [0], [0], [1], [0, 0, 1, 1], [], []>} : vector<16x128xbf16>, vector<128x128xbf16>, vector<16x128xf32> -> vector<16x128xf32>
    %c9_147 = arith.constant 9 : index
    %c0_148 = arith.constant 0 : index
    %471 = vector.load %arg3[%c9_147, %c0_148] : memref<22x128xf32, #tpu.memory_space<vmem>>, vector<1x128xf32>
    %472 = vector.broadcast %471 : vector<1x128xf32> to vector<16x128xf32>
    %473 = arith.addf %470, %472 : vector<16x128xf32>
    %cst_149 = arith.constant 0.000000e+00 : f32
    %474 = vector.broadcast %cst_149 : f32 to vector<16x128xf32>
    %475 = arith.maximumf %473, %474 : vector<16x128xf32>
    %476 = arith.truncf %475 : vector<16x128xf32> to vector<16x128xbf16>
    %c576_150 = arith.constant 576 : index
    %c0_151 = arith.constant 0 : index
    %477 = vector.load %arg2[%c576_150, %c0_151] : memref<1248x128xbf16, #tpu.memory_space<vmem>>, vector<128x128xbf16>
    %cst_152 = arith.constant dense<0.000000e+00> : vector<16x128xf32>
    %478 = tpu.matmul %476, %477, %cst_152 {dimension_numbers = #tpu.dot_dimension_numbers<[1], [0], [0], [1], [0, 0, 1, 1], [], []>} : vector<16x128xbf16>, vector<128x128xbf16>, vector<16x128xf32> -> vector<16x128xf32>
    %c10_153 = arith.constant 10 : index
    %c0_154 = arith.constant 0 : index
    %479 = vector.load %arg3[%c10_153, %c0_154] : memref<22x128xf32, #tpu.memory_space<vmem>>, vector<1x128xf32>
    %480 = vector.broadcast %479 : vector<1x128xf32> to vector<16x128xf32>
    %481 = arith.addf %478, %480 : vector<16x128xf32>
    %482 = vector.shape_cast %481 : vector<16x128xf32> to vector<2x8x128xf32>
    %483 = arith.addf %466, %482 : vector<2x8x128xf32>
    %cst_155 = arith.constant dense<0.000000e+00> : vector<2x8xf32>
    %484 = vector.multi_reduction <add>, %483, %cst_155 [2] : vector<2x8x128xf32> to vector<2x8xf32>
    %485 = vector.shape_cast %484 : vector<2x8xf32> to vector<2x8x1xf32>
    %cst_156 = arith.constant 3.125000e-02 : f32
    %486 = vector.broadcast %cst_156 : f32 to vector<2x8x1xf32>
    %487 = arith.mulf %485, %486 : vector<2x8x1xf32>
    %488 = arith.mulf %483, %483 : vector<2x8x128xf32>
    %cst_157 = arith.constant dense<0.000000e+00> : vector<2x8xf32>
    %489 = vector.multi_reduction <add>, %488, %cst_157 [2] : vector<2x8x128xf32> to vector<2x8xf32>
    %490 = vector.shape_cast %489 : vector<2x8xf32> to vector<2x8x1xf32>
    %cst_158 = arith.constant 3.125000e-02 : f32
    %491 = vector.broadcast %cst_158 : f32 to vector<2x8x1xf32>
    %492 = arith.mulf %490, %491 : vector<2x8x1xf32>
    %493 = arith.mulf %487, %487 : vector<2x8x1xf32>
    %494 = arith.subf %492, %493 : vector<2x8x1xf32>
    %495 = vector.broadcast %487 : vector<2x8x1xf32> to vector<2x8x128xf32>
    %496 = arith.subf %483, %495 : vector<2x8x128xf32>
    %cst_159 = arith.constant 9.99999974E-6 : f32
    %497 = vector.broadcast %cst_159 : f32 to vector<2x8x1xf32>
    %498 = arith.addf %494, %497 : vector<2x8x1xf32>
    %499 = math.rsqrt %498 : vector<2x8x1xf32>
    %500 = vector.broadcast %499 : vector<2x8x1xf32> to vector<2x8x128xf32>
    %501 = arith.mulf %496, %500 : vector<2x8x128xf32>
    %c11_160 = arith.constant 11 : index
    %c0_161 = arith.constant 0 : index
    %502 = vector.load %arg3[%c11_160, %c0_161] : memref<22x128xf32, #tpu.memory_space<vmem>>, vector<1x128xf32>
    %503 = vector.shape_cast %502 : vector<1x128xf32> to vector<1x1x128xf32>
    %504 = vector.broadcast %503 : vector<1x1x128xf32> to vector<2x8x128xf32>
    %505 = arith.mulf %501, %504 : vector<2x8x128xf32>
    %c12_162 = arith.constant 12 : index
    %c0_163 = arith.constant 0 : index
    %506 = vector.load %arg3[%c12_162, %c0_163] : memref<22x128xf32, #tpu.memory_space<vmem>>, vector<1x128xf32>
    %507 = vector.shape_cast %506 : vector<1x128xf32> to vector<1x1x128xf32>
    %508 = vector.broadcast %507 : vector<1x1x128xf32> to vector<2x8x128xf32>
    %509 = arith.addf %505, %508 : vector<2x8x128xf32>
    %510 = vector.shape_cast %509 : vector<2x8x128xf32> to vector<16x128xf32>
    %511 = arith.truncf %510 : vector<16x128xf32> to vector<16x128xbf16>
    %c1120_164 = arith.constant 1120 : index
    %c0_165 = arith.constant 0 : index
    %512 = vector.load %arg2[%c1120_164, %c0_165] : memref<1248x128xbf16, #tpu.memory_space<vmem>>, vector<128x128xbf16>
    %cst_166 = arith.constant dense<0.000000e+00> : vector<16x128xf32>
    %513 = tpu.matmul %511, %512, %cst_166 {dimension_numbers = #tpu.dot_dimension_numbers<[1], [0], [0], [1], [0, 0, 1, 1], [], []>} : vector<16x128xbf16>, vector<128x128xbf16>, vector<16x128xf32> -> vector<16x128xf32>
    %c21_167 = arith.constant 21 : index
    %c0_168 = arith.constant 0 : index
    %514 = vector.load %arg3[%c21_167, %c0_168] : memref<22x128xf32, #tpu.memory_space<vmem>>, vector<1x128xf32>
    %515 = vector.broadcast %514 : vector<1x128xf32> to vector<16x128xf32>
    %516 = arith.addf %513, %515 : vector<16x128xf32>
    %517 = vector.extract_strided_slice %516 {offsets = [0, 0], sizes = [16, 1], strides = [1, 1]} : vector<16x128xf32> to vector<16x1xf32>
    %518 = vector.shape_cast %517 : vector<16x1xf32> to vector<1x16x1xf32>
    %cst_169 = arith.constant dense<0.000000e+00> : vector<1xf32>
    %519 = vector.multi_reduction <add>, %518, %cst_169 [1, 2] : vector<1x16x1xf32> to vector<1xf32>
    %520 = vector.shape_cast %519 : vector<1xf32> to vector<1x1x1xf32>
    %521 = vector.extract %520[0, 0, 0] : f32 from vector<1x1x1xf32>
    %cst_170 = arith.constant 1.600000e+01 : f32
    %522 = arith.divf %521, %cst_170 : f32
    %523 = vector.extract_strided_slice %516 {offsets = [0, 1], sizes = [16, 1], strides = [1, 1]} : vector<16x128xf32> to vector<16x1xf32>
    %cst_171 = arith.constant dense<0xFF800000> : vector<16xf32>
    %524 = vector.multi_reduction <maximumf>, %523, %cst_171 [1] : vector<16x1xf32> to vector<16xf32>
    %525 = vector.shape_cast %524 : vector<16xf32> to vector<16x1xf32>
    %526 = arith.subf %523, %525 : vector<16x1xf32>
    %527 = math.exp %526 : vector<16x1xf32>
    %cst_172 = arith.constant dense<0.000000e+00> : vector<16xf32>
    %528 = vector.multi_reduction <add>, %527, %cst_172 [1] : vector<16x1xf32> to vector<16xf32>
    %529 = vector.shape_cast %528 : vector<16xf32> to vector<16x1xf32>
    %530 = tpu.reciprocal %529 {approx = true} : vector<16x1xf32> -> vector<16x1xf32>
    %531 = arith.mulf %527, %530 : vector<16x1xf32>
    %cst_173 = arith.constant dense<0xFF800000> : vector<16xf32>
    %532 = vector.multi_reduction <maximumf>, %531, %cst_173 [1] : vector<16x1xf32> to vector<16xf32>
    %533 = vector.shape_cast %532 : vector<16xf32> to vector<16x1xf32>
    %534 = vector.shape_cast %533 : vector<16x1xf32> to vector<1x16x1xf32>
    %cst_174 = arith.constant dense<0.000000e+00> : vector<1xf32>
    %535 = vector.multi_reduction <add>, %534, %cst_174 [1, 2] : vector<1x16x1xf32> to vector<1xf32>
    %536 = vector.shape_cast %535 : vector<1xf32> to vector<1x1x1xf32>
    %537 = vector.extract %536[0, 0, 0] : f32 from vector<1x1x1xf32>
    %cst_175 = arith.constant 1.600000e+01 : f32
    %538 = arith.divf %537, %cst_175 : f32
    %539 = arith.mulf %509, %509 : vector<2x8x128xf32>
    %cst_176 = arith.constant dense<0.000000e+00> : vector<2x8xf32>
    %540 = vector.multi_reduction <add>, %539, %cst_176 [2] : vector<2x8x128xf32> to vector<2x8xf32>
    %541 = vector.shape_cast %540 : vector<2x8xf32> to vector<2x8x1xf32>
    %542 = math.sqrt %541 : vector<2x8x1xf32>
    %543 = vector.shape_cast %542 : vector<2x8x1xf32> to vector<1x2x8x1xf32>
    %cst_177 = arith.constant dense<0.000000e+00> : vector<1xf32>
    %544 = vector.multi_reduction <add>, %543, %cst_177 [1, 2, 3] : vector<1x2x8x1xf32> to vector<1xf32>
    %545 = vector.shape_cast %544 : vector<1xf32> to vector<1x1x1x1xf32>
    %546 = vector.extract %545[0, 0, 0, 0] : f32 from vector<1x1x1x1xf32>
    %cst_178 = arith.constant 1.600000e+01 : f32
    %547 = arith.divf %546, %cst_178 : f32
    %c0_i32_179 = arith.constant 0 : i32
    %548 = vector.broadcast %c0_i32_179 : i32 to vector<1x128xi32>
    %549 = arith.cmpi eq, %19, %548 : vector<1x128xi32>
    %cst_180 = arith.constant 0.000000e+00 : f32
    %550 = vector.broadcast %522 : f32 to vector<1x128xf32>
    %551 = vector.broadcast %cst_180 : f32 to vector<1x128xf32>
    %552 = arith.select %549, %550, %551 : vector<1x128xi1>, vector<1x128xf32>
    %c1_i32_181 = arith.constant 1 : i32
    %553 = vector.broadcast %c1_i32_181 : i32 to vector<1x128xi32>
    %554 = arith.cmpi eq, %19, %553 : vector<1x128xi32>
    %cst_182 = arith.constant 0.000000e+00 : f32
    %555 = vector.broadcast %538 : f32 to vector<1x128xf32>
    %556 = vector.broadcast %cst_182 : f32 to vector<1x128xf32>
    %557 = arith.select %554, %555, %556 : vector<1x128xi1>, vector<1x128xf32>
    %558 = arith.addf %552, %557 : vector<1x128xf32>
    %c2_i32_183 = arith.constant 2 : i32
    %559 = vector.broadcast %c2_i32_183 : i32 to vector<1x128xi32>
    %560 = arith.cmpi eq, %19, %559 : vector<1x128xi32>
    %cst_184 = arith.constant 0.000000e+00 : f32
    %561 = vector.broadcast %547 : f32 to vector<1x128xf32>
    %562 = vector.broadcast %cst_184 : f32 to vector<1x128xf32>
    %563 = arith.select %560, %561, %562 : vector<1x128xi1>, vector<1x128xf32>
    %564 = arith.addf %558, %563 : vector<1x128xf32>
    %565 = arith.addf %509, %3 : vector<2x8x128xf32>
    %566 = vector.shape_cast %565 : vector<2x8x128xf32> to vector<16x128xf32>
    %567 = arith.truncf %566 : vector<16x128xf32> to vector<16x128xbf16>
    %c704 = arith.constant 704 : index
    %c0_185 = arith.constant 0 : index
    %568 = vector.load %arg2[%c704, %c0_185] : memref<1248x128xbf16, #tpu.memory_space<vmem>>, vector<128x128xbf16>
    %cst_186 = arith.constant dense<0.000000e+00> : vector<16x128xf32>
    %569 = tpu.matmul %567, %568, %cst_186 {dimension_numbers = #tpu.dot_dimension_numbers<[1], [0], [0], [1], [0, 0, 1, 1], [], []>} : vector<16x128xbf16>, vector<128x128xbf16>, vector<16x128xf32> -> vector<16x128xf32>
    %c13 = arith.constant 13 : index
    %c0_187 = arith.constant 0 : index
    %570 = vector.load %arg3[%c13, %c0_187] : memref<22x128xf32, #tpu.memory_space<vmem>>, vector<1x128xf32>
    %571 = vector.broadcast %570 : vector<1x128xf32> to vector<16x128xf32>
    %572 = arith.addf %569, %571 : vector<16x128xf32>
    %573 = vector.extract_strided_slice %572 {offsets = [0, 0], sizes = [16, 32], strides = [1, 1]} : vector<16x128xf32> to vector<16x32xf32>
    %574 = vector.shape_cast %573 : vector<16x32xf32> to vector<2x8x32xf32>
    %575 = vector.extract_strided_slice %572 {offsets = [0, 32], sizes = [16, 32], strides = [1, 1]} : vector<16x128xf32> to vector<16x32xf32>
    %576 = vector.shape_cast %575 : vector<16x32xf32> to vector<2x8x32xf32>
    %577 = vector.extract_strided_slice %572 {offsets = [0, 64], sizes = [16, 32], strides = [1, 1]} : vector<16x128xf32> to vector<16x32xf32>
    %578 = vector.shape_cast %577 : vector<16x32xf32> to vector<2x8x32xf32>
    %579 = arith.truncf %574 : vector<2x8x32xf32> to vector<2x8x32xbf16>
    %580 = arith.truncf %576 : vector<2x8x32xf32> to vector<2x8x32xbf16>
    "tpu.trace_start"() <{level = 10 : i32, message = "bqd,bkd->bqk"}> : () -> ()
    %cst_188 = arith.constant dense<0.000000e+00> : vector<2x8x8xf32>
    %581 = tpu.matmul %579, %580, %cst_188 {dimension_numbers = #tpu.dot_dimension_numbers<[2], [2], [1], [1], [0, 0, 0, 1, 1, 1], [0], [0]>} : vector<2x8x32xbf16>, vector<2x8x32xbf16>, vector<2x8x8xf32> -> vector<2x8x8xf32>
    "tpu.trace_stop"() : () -> ()
    %cst_189 = arith.constant 0.176776692 : f32
    %582 = vector.broadcast %cst_189 : f32 to vector<2x8x8xf32>
    %583 = arith.mulf %581, %582 : vector<2x8x8xf32>
    %cst_190 = arith.constant dense<0xFF800000> : vector<2x8xf32>
    %584 = vector.multi_reduction <maximumf>, %583, %cst_190 [2] : vector<2x8x8xf32> to vector<2x8xf32>
    %585 = vector.shape_cast %584 : vector<2x8xf32> to vector<2x8x1xf32>
    %586 = vector.broadcast %585 : vector<2x8x1xf32> to vector<2x8x8xf32>
    %587 = arith.subf %583, %586 : vector<2x8x8xf32>
    %588 = math.exp %587 : vector<2x8x8xf32>
    %cst_191 = arith.constant dense<0.000000e+00> : vector<2x8xf32>
    %589 = vector.multi_reduction <add>, %588, %cst_191 [2] : vector<2x8x8xf32> to vector<2x8xf32>
    %590 = vector.shape_cast %589 : vector<2x8xf32> to vector<2x8x1xf32>
    %591 = tpu.reciprocal %590 {approx = true} : vector<2x8x1xf32> -> vector<2x8x1xf32>
    %592 = vector.broadcast %591 : vector<2x8x1xf32> to vector<2x8x8xf32>
    %593 = arith.mulf %588, %592 : vector<2x8x8xf32>
    %594 = arith.truncf %593 : vector<2x8x8xf32> to vector<2x8x8xbf16>
    %595 = arith.truncf %578 : vector<2x8x32xf32> to vector<2x8x32xbf16>
    "tpu.trace_start"() <{level = 10 : i32, message = "bqk,bkd->bqd"}> : () -> ()
    %cst_192 = arith.constant dense<0.000000e+00> : vector<2x8x32xf32>
    %596 = tpu.matmul %594, %595, %cst_192 {dimension_numbers = #tpu.dot_dimension_numbers<[2], [1], [1], [2], [0, 0, 0, 1, 1, 2], [0], [0]>} : vector<2x8x8xbf16>, vector<2x8x32xbf16>, vector<2x8x32xf32> -> vector<2x8x32xf32>
    "tpu.trace_stop"() : () -> ()
    %597 = vector.shape_cast %596 : vector<2x8x32xf32> to vector<16x32xf32>
    %598 = arith.truncf %597 : vector<16x32xf32> to vector<16x32xbf16>
    %c832 = arith.constant 832 : index
    %c0_193 = arith.constant 0 : index
    %599 = vector.load %arg2[%c832, %c0_193] : memref<1248x128xbf16, #tpu.memory_space<vmem>>, vector<32x128xbf16>
    %cst_194 = arith.constant dense<0.000000e+00> : vector<16x128xf32>
    %600 = tpu.matmul %598, %599, %cst_194 {dimension_numbers = #tpu.dot_dimension_numbers<[1], [0], [0], [1], [0, 0, 1, 1], [], []>} : vector<16x32xbf16>, vector<32x128xbf16>, vector<16x128xf32> -> vector<16x128xf32>
    %c14 = arith.constant 14 : index
    %c0_195 = arith.constant 0 : index
    %601 = vector.load %arg3[%c14, %c0_195] : memref<22x128xf32, #tpu.memory_space<vmem>>, vector<1x128xf32>
    %602 = vector.broadcast %601 : vector<1x128xf32> to vector<16x128xf32>
    %603 = arith.addf %600, %602 : vector<16x128xf32>
    %604 = vector.shape_cast %603 : vector<16x128xf32> to vector<2x8x128xf32>
    %605 = arith.addf %565, %604 : vector<2x8x128xf32>
    %cst_196 = arith.constant dense<0.000000e+00> : vector<2x8xf32>
    %606 = vector.multi_reduction <add>, %605, %cst_196 [2] : vector<2x8x128xf32> to vector<2x8xf32>
    %607 = vector.shape_cast %606 : vector<2x8xf32> to vector<2x8x1xf32>
    %cst_197 = arith.constant 3.125000e-02 : f32
    %608 = vector.broadcast %cst_197 : f32 to vector<2x8x1xf32>
    %609 = arith.mulf %607, %608 : vector<2x8x1xf32>
    %610 = arith.mulf %605, %605 : vector<2x8x128xf32>
    %cst_198 = arith.constant dense<0.000000e+00> : vector<2x8xf32>
    %611 = vector.multi_reduction <add>, %610, %cst_198 [2] : vector<2x8x128xf32> to vector<2x8xf32>
    %612 = vector.shape_cast %611 : vector<2x8xf32> to vector<2x8x1xf32>
    %cst_199 = arith.constant 3.125000e-02 : f32
    %613 = vector.broadcast %cst_199 : f32 to vector<2x8x1xf32>
    %614 = arith.mulf %612, %613 : vector<2x8x1xf32>
    %615 = arith.mulf %609, %609 : vector<2x8x1xf32>
    %616 = arith.subf %614, %615 : vector<2x8x1xf32>
    %617 = vector.broadcast %609 : vector<2x8x1xf32> to vector<2x8x128xf32>
    %618 = arith.subf %605, %617 : vector<2x8x128xf32>
    %cst_200 = arith.constant 9.99999974E-6 : f32
    %619 = vector.broadcast %cst_200 : f32 to vector<2x8x1xf32>
    %620 = arith.addf %616, %619 : vector<2x8x1xf32>
    %621 = math.rsqrt %620 : vector<2x8x1xf32>
    %622 = vector.broadcast %621 : vector<2x8x1xf32> to vector<2x8x128xf32>
    %623 = arith.mulf %618, %622 : vector<2x8x128xf32>
    %c15 = arith.constant 15 : index
    %c0_201 = arith.constant 0 : index
    %624 = vector.load %arg3[%c15, %c0_201] : memref<22x128xf32, #tpu.memory_space<vmem>>, vector<1x128xf32>
    %625 = vector.shape_cast %624 : vector<1x128xf32> to vector<1x1x128xf32>
    %626 = vector.broadcast %625 : vector<1x1x128xf32> to vector<2x8x128xf32>
    %627 = arith.mulf %623, %626 : vector<2x8x128xf32>
    %c16 = arith.constant 16 : index
    %c0_202 = arith.constant 0 : index
    %628 = vector.load %arg3[%c16, %c0_202] : memref<22x128xf32, #tpu.memory_space<vmem>>, vector<1x128xf32>
    %629 = vector.shape_cast %628 : vector<1x128xf32> to vector<1x1x128xf32>
    %630 = vector.broadcast %629 : vector<1x1x128xf32> to vector<2x8x128xf32>
    %631 = arith.addf %627, %630 : vector<2x8x128xf32>
    %632 = vector.shape_cast %631 : vector<2x8x128xf32> to vector<16x128xf32>
    %633 = arith.truncf %632 : vector<16x128xf32> to vector<16x128xbf16>
    %c864 = arith.constant 864 : index
    %c0_203 = arith.constant 0 : index
    %634 = vector.load %arg2[%c864, %c0_203] : memref<1248x128xbf16, #tpu.memory_space<vmem>>, vector<128x128xbf16>
    %cst_204 = arith.constant dense<0.000000e+00> : vector<16x128xf32>
    %635 = tpu.matmul %633, %634, %cst_204 {dimension_numbers = #tpu.dot_dimension_numbers<[1], [0], [0], [1], [0, 0, 1, 1], [], []>} : vector<16x128xbf16>, vector<128x128xbf16>, vector<16x128xf32> -> vector<16x128xf32>
    %c17 = arith.constant 17 : index
    %c0_205 = arith.constant 0 : index
    %636 = vector.load %arg3[%c17, %c0_205] : memref<22x128xf32, #tpu.memory_space<vmem>>, vector<1x128xf32>
    %637 = vector.broadcast %636 : vector<1x128xf32> to vector<16x128xf32>
    %638 = arith.addf %635, %637 : vector<16x128xf32>
    %cst_206 = arith.constant 0.000000e+00 : f32
    %639 = vector.broadcast %cst_206 : f32 to vector<16x128xf32>
    %640 = arith.maximumf %638, %639 : vector<16x128xf32>
    %641 = arith.truncf %640 : vector<16x128xf32> to vector<16x128xbf16>
    %c992 = arith.constant 992 : index
    %c0_207 = arith.constant 0 : index
    %642 = vector.load %arg2[%c992, %c0_207] : memref<1248x128xbf16, #tpu.memory_space<vmem>>, vector<128x128xbf16>
    %cst_208 = arith.constant dense<0.000000e+00> : vector<16x128xf32>
    %643 = tpu.matmul %641, %642, %cst_208 {dimension_numbers = #tpu.dot_dimension_numbers<[1], [0], [0], [1], [0, 0, 1, 1], [], []>} : vector<16x128xbf16>, vector<128x128xbf16>, vector<16x128xf32> -> vector<16x128xf32>
    %c18 = arith.constant 18 : index
    %c0_209 = arith.constant 0 : index
    %644 = vector.load %arg3[%c18, %c0_209] : memref<22x128xf32, #tpu.memory_space<vmem>>, vector<1x128xf32>
    %645 = vector.broadcast %644 : vector<1x128xf32> to vector<16x128xf32>
    %646 = arith.addf %643, %645 : vector<16x128xf32>
    %647 = vector.shape_cast %646 : vector<16x128xf32> to vector<2x8x128xf32>
    %648 = arith.addf %631, %647 : vector<2x8x128xf32>
    %cst_210 = arith.constant dense<0.000000e+00> : vector<2x8xf32>
    %649 = vector.multi_reduction <add>, %648, %cst_210 [2] : vector<2x8x128xf32> to vector<2x8xf32>
    %650 = vector.shape_cast %649 : vector<2x8xf32> to vector<2x8x1xf32>
    %cst_211 = arith.constant 3.125000e-02 : f32
    %651 = vector.broadcast %cst_211 : f32 to vector<2x8x1xf32>
    %652 = arith.mulf %650, %651 : vector<2x8x1xf32>
    %653 = arith.mulf %648, %648 : vector<2x8x128xf32>
    %cst_212 = arith.constant dense<0.000000e+00> : vector<2x8xf32>
    %654 = vector.multi_reduction <add>, %653, %cst_212 [2] : vector<2x8x128xf32> to vector<2x8xf32>
    %655 = vector.shape_cast %654 : vector<2x8xf32> to vector<2x8x1xf32>
    %cst_213 = arith.constant 3.125000e-02 : f32
    %656 = vector.broadcast %cst_213 : f32 to vector<2x8x1xf32>
    %657 = arith.mulf %655, %656 : vector<2x8x1xf32>
    %658 = arith.mulf %652, %652 : vector<2x8x1xf32>
    %659 = arith.subf %657, %658 : vector<2x8x1xf32>
    %660 = vector.broadcast %652 : vector<2x8x1xf32> to vector<2x8x128xf32>
    %661 = arith.subf %648, %660 : vector<2x8x128xf32>
    %cst_214 = arith.constant 9.99999974E-6 : f32
    %662 = vector.broadcast %cst_214 : f32 to vector<2x8x1xf32>
    %663 = arith.addf %659, %662 : vector<2x8x1xf32>
    %664 = math.rsqrt %663 : vector<2x8x1xf32>
    %665 = vector.broadcast %664 : vector<2x8x1xf32> to vector<2x8x128xf32>
    %666 = arith.mulf %661, %665 : vector<2x8x128xf32>
    %c19 = arith.constant 19 : index
    %c0_215 = arith.constant 0 : index
    %667 = vector.load %arg3[%c19, %c0_215] : memref<22x128xf32, #tpu.memory_space<vmem>>, vector<1x128xf32>
    %668 = vector.shape_cast %667 : vector<1x128xf32> to vector<1x1x128xf32>
    %669 = vector.broadcast %668 : vector<1x1x128xf32> to vector<2x8x128xf32>
    %670 = arith.mulf %666, %669 : vector<2x8x128xf32>
    %c20 = arith.constant 20 : index
    %c0_216 = arith.constant 0 : index
    %671 = vector.load %arg3[%c20, %c0_216] : memref<22x128xf32, #tpu.memory_space<vmem>>, vector<1x128xf32>
    %672 = vector.shape_cast %671 : vector<1x128xf32> to vector<1x1x128xf32>
    %673 = vector.broadcast %672 : vector<1x1x128xf32> to vector<2x8x128xf32>
    %674 = arith.addf %670, %673 : vector<2x8x128xf32>
    %675 = vector.shape_cast %674 : vector<2x8x128xf32> to vector<16x128xf32>
    %c0_217 = arith.constant 0 : index
    %c0_218 = arith.constant 0 : index
    %676 = vector.load %arg4[%c0_217, %c0_218] : memref<16x128xf32, #tpu.memory_space<vmem>>, vector<16x128xf32>
    tpu.vector_store %arg4[%c0_217, %c0_218], %675 {strides = array<i32>} : memref<16x128xf32, #tpu.memory_space<vmem>>, vector<16x128xf32>,
    %677 = tpu.concatenate %291, %564 in 0 : vector<1x128xf32>, vector<1x128xf32> -> vector<2x128xf32>
    %c0_219 = arith.constant 0 : index
    %c0_220 = arith.constant 0 : index
    %678 = vector.load %arg5[%c0_219, %c0_220] : memref<2x128xf32, #tpu.memory_space<vmem>>, vector<2x128xf32>
    tpu.vector_store %arg5[%c0_219, %c0_220], %677 {strides = array<i32>} : memref<2x128xf32, #tpu.memory_space<vmem>>, vector<2x128xf32>,
    return
  }
}

</mosaic_0001>

<llo_original>
// kernel: reasoning_engine_forward.1
$region0: #{reasoning_engine_forward.1}
  #allocation0 [shape = 'u32[]', space=smem, size = 0x4, offset = 0x4, fixed_abs, tag = 'smem constant byte address 0x4 - core index']
  #allocation1 [shape = 'u32[144,128]{1,0:T(1,128)}', space=vmem, size = 0x12000, scoped, tag = 'internal scratch']
  %s0 = inlined_call_operand.vmem [shape: f32[2,8,128], index: 0, kind: input, shape index: {}]
  %s1 = inlined_call_operand.vmem [shape: f32[2,8,128], index: 1, kind: input, shape index: {}]
  %s2 = inlined_call_operand.hbm [shape: bf16[1248,128], index: 2, kind: input, shape index: {}]
  %s3 = inlined_call_operand.vmem [shape: f32[22,128], index: 3, kind: input, shape index: {}]
  %s4 = inlined_call_operand.vmem [shape: f32[16,128], index: 4, kind: output, shape index: {0}]
  %s5 = inlined_call_operand.hbm [shape: f32[2,128], index: 5, kind: output, shape index: {1}]
  %6 = xla_tuple %s4, %s5
  %s7 = sld [smem:[#allocation0]]
  $region38: #{reasoning_engine_forward.1} parent=0
    _
  %s9 = ssub.s32 1, %s7
  %s10 = scalar_select 0, %s9, %s7
  $region1: #{reasoning_engine_forward.1} parent=0
    #allocation2 [shape = 'u8[319488]{0}', space=vmem, size = 0x4e000, scoped, tag = 'input window, operand 2, single buffered']
    #allocation3 [shape = 's32[1]{0}', space=sflag, size = 0x4, scoped, tag = 'scoped memory for reasoning_engine_forward.1']
    #allocation4 [shape = 's32[1]{0}', space=sflag, size = 0x4, scoped, tag = 'scoped memory for reasoning_engine_forward.1']
    #allocation5 [shape = 'u8[1024]{0}', space=vmem, size = 0x400, scoped, tag = 'output window, operand 1, single buffered']
    %11 = vsyncpa [#allocation3], 0
    %12 = vsyncpa [#allocation4], 0
    // Predicated region
    $region2: #{reasoning_engine_forward.1} parent=1 // pred_check
      _
    $region3: #{reasoning_engine_forward.1} parent=1 // pred_check_branch
      %14 = sbr.rel (0) target = $region5
    $region4: #{reasoning_engine_forward.1} parent=1 // pred_region
      _
    $region5: #{reasoning_engine_forward.1} parent=1 // pred_fallthru
      _
    // Predicated region
    $region6: #{reasoning_engine_forward.1} parent=1 // pred_check
      _
    $region7: #{reasoning_engine_forward.1} parent=1 // pred_check_branch
      %16 = sbr.rel (0) target = $region9
    $region8: #{reasoning_engine_forward.1} parent=1 // pred_region
      _
    $region9: #{reasoning_engine_forward.1} parent=1 // pred_fallthru
      _
    // Predicated region
    $region10: #{reasoning_engine_forward.1} parent=1 // pred_check
      _
    $region11: #{reasoning_engine_forward.1} parent=1 // pred_check_branch
      %18 = sbr.rel (0) target = $region13
    $region12: #{reasoning_engine_forward.1} parent=1 // pred_region
      %s20 = ssub.s32 9984, 9984
      %21 = vsyncadd [#allocation3], %s20
      %s22 = sshll.u32 [#allocation2], 4
      %s23 = int_to_ptr.vmem [resolvable:$true] %s22
      %28 = dma.hbm_to_vmem [thread:$0]  %s2, 9984, %s23, [#allocation3], 64, 64, 4
    $region13: #{reasoning_engine_forward.1} parent=1 // pred_fallthru
      _
    // Predicated region
    $region14: #{reasoning_engine_forward.1} parent=1 // pred_check
      _
    $region15: #{reasoning_engine_forward.1} parent=1 // pred_check_branch
      %30 = sbr.rel (0) target = $region17
    $region16: #{reasoning_engine_forward.1} parent=1 // pred_region
      _
    $region17: #{reasoning_engine_forward.1} parent=1 // pred_fallthru
      _
    // Predicated region
    $region18: #{reasoning_engine_forward.1} parent=1 // pred_check
      _
    $region19: #{reasoning_engine_forward.1} parent=1 // pred_check_branch
      %32 = sbr.rel (0) target = $region21
    $region20: #{reasoning_engine_forward.1} parent=1 // pred_region
      %33 = dma.done [#allocation3], 9984
    $region21: #{reasoning_engine_forward.1} parent=1 // pred_fallthru
      _
    %v35 = vld [vmem:[%s0] sm:$0xff]
    %v36 = vld [vmem:[%s0 + $0x8] sm:$0xff]
    %v37 = vld [vmem:[%s1] sm:$0xff]
    %v38 = vld [vmem:[%s1 + $0x8] sm:$0xff]
    %v39 = vmul.f32 %v35, 0.1
    %v40 = vmul.f32 %v36, 0.1
    %v41 = vpack.c.bf16 %v38, %v37
    %v42 = vld [vmem:[#allocation2 + $0x90] sm:$0xf]
    %v43 = vld [vmem:[#allocation2 + $0x94] sm:$0xf]
    %v44 = vld [vmem:[#allocation2 + $0x98] sm:$0xf]
    %v45 = vld [vmem:[#allocation2 + $0x9c] sm:$0xf]
    %v46 = vld [vmem:[#allocation2 + $0xa0] sm:$0xf]
    %v47 = vld [vmem:[#allocation2 + $0xa4] sm:$0xf]
    %v48 = vld [vmem:[#allocation2 + $0xa8] sm:$0xf]
    %v49 = vld [vmem:[#allocation2 + $0xac] sm:$0xf]
    %v50 = vld [vmem:[#allocation2 + $0xb0] sm:$0xf]
    %v51 = vld [vmem:[#allocation2 + $0xb4] sm:$0xf]
    %v52 = vld [vmem:[#allocation2 + $0xb8] sm:$0xf]
    %v53 = vld [vmem:[#allocation2 + $0xbc] sm:$0xf]
    %v54 = vld [vmem:[#allocation2 + $0xc0] sm:$0xf]
    %v55 = vld [vmem:[#allocation2 + $0xc4] sm:$0xf]
    %v56 = vld [vmem:[#allocation2 + $0xc8] sm:$0xf]
    %v57 = vld [vmem:[#allocation2 + $0xcc] sm:$0xf]
    %v58 = vld [vmem:[%s3 + $0x5] sm:$0x1]
    %v59 = vlaneseq
    %v60 = vshrl.u32 %v59, 7
    %v61 = vsub.s32 0, %v60
    %v62 = vrot.slane %v58, %v61
    %v79 = vunpack.c.l.b16 %v42
    %v80 = vunpack.c.l.b16 %v43
    %v81 = vunpack.c.l.b16 %v44
    %v82 = vunpack.c.l.b16 %v45
    %v83 = vunpack.c.l.b16 %v46
    %v84 = vunpack.c.l.b16 %v47
    %v85 = vunpack.c.l.b16 %v48
    %v86 = vunpack.c.l.b16 %v49
    %v87 = vunpack.c.l.b16 %v50
    %v88 = vunpack.c.l.b16 %v51
    %v89 = vunpack.c.l.b16 %v52
    %v90 = vunpack.c.l.b16 %v53
    %v91 = vunpack.c.l.b16 %v54
    %v92 = vunpack.c.l.b16 %v55
    %v93 = vunpack.c.l.b16 %v56
    %v94 = vunpack.c.l.b16 %v57
    %v95 = vpack.c.b16 %v80, %v79
    %v96 = vpack.c.b16 %v82, %v81
    %v97 = vpack.c.b16 %v84, %v83
    %v98 = vpack.c.b16 %v86, %v85
    %v99 = vpack.c.b16 %v88, %v87
    %v100 = vpack.c.b16 %v90, %v89
    %v101 = vpack.c.b16 %v92, %v91
    %v102 = vpack.c.b16 %v94, %v93
    %111 = vmatprep.subr.bf16.mxu0 0
    %112 = vmatpush1.bf16.msra.mxu0 %v95
    %113 = vmatprep.subr.bf16.mxu0 0
    %114 = vmatpush1.bf16.msra.mxu0 %v96
    %115 = vmatprep.subr.bf16.mxu0 0
    %116 = vmatpush1.bf16.msra.mxu0 %v97
    %117 = vmatprep.subr.bf16.mxu0 0
    %118 = vmatpush1.bf16.msra.mxu0 %v98
    %119 = vmatprep.subr.bf16.mxu0 0
    %120 = vmatpush1.bf16.msra.mxu0 %v99
    %121 = vmatprep.subr.bf16.mxu0 0
    %122 = vmatpush1.bf16.msra.mxu0 %v100
    %123 = vmatprep.subr.bf16.mxu0 0
    %124 = vmatpush1.bf16.msra.mxu0 %v101
    %125 = vmatprep.subr.bf16.mxu0 0
    %126 = vmatpush1.bf16.msra.mxu0 %v102
    %127 = vmatprep.subr.bf16.mxu0 0
    %128 = vmatpush1.bf16.msra.mxu0 0
    %129 = vmatprep.subr.bf16.mxu0 0
    %130 = vmatpush1.bf16.msra.mxu0 0
    %131 = vmatprep.subr.bf16.mxu0 0
    %132 = vmatpush1.bf16.msra.mxu0 0
    %133 = vmatprep.subr.bf16.mxu0 0
    %134 = vmatpush1.bf16.msra.mxu0 0
    %135 = vmatprep.subr.bf16.mxu0 0
    %136 = vmatpush1.bf16.msra.mxu0 0
    %137 = vmatprep.subr.bf16.mxu0 0
    %138 = vmatpush1.bf16.msra.mxu0 0
    %139 = vmatprep.subr.bf16.mxu0 0
    %140 = vmatpush1.bf16.msra.mxu0 0
    %141 = vmatprep.subr.bf16.mxu0 0
    %142 = vmatpush1.bf16.msra.mxu0 0
    %143 = vmatprep.mubr.bf16.mxu0 0
    %144 = vmatmul.mubr.bf16.gmra.mrb[0].mxu0 %v41
    %v145 = vpop.f32.mrb[0].mxu0
    %v146 = vadd.f32 %v62, %v145
    %v147 = vpop.f32.mrb[0].mxu0
    %v148 = vpop.f32.mrb[0].mxu0
    %v149 = vadd.f32 %v62, %v148
    %v150 = vpop.f32.mrb[0].mxu0
    %151 = vdwg.mxu0
    %v152 = vlaneseq
    %v153 = vand.u32 %v152, 127
    %v154 = vpack.c.bf16 %v36, %v35
    %v155 = vld [vmem:[#allocation2] sm:$0xf]
    %v156 = vld [vmem:[#allocation2 + $0x4] sm:$0xf]
    %v157 = vld [vmem:[#allocation2 + $0x8] sm:$0xf]
    %v158 = vld [vmem:[#allocation2 + $0xc] sm:$0xf]
    %v159 = vld [vmem:[#allocation2 + $0x10] sm:$0xf]
    %v160 = vld [vmem:[#allocation2 + $0x14] sm:$0xf]
    %v161 = vld [vmem:[#allocation2 + $0x18] sm:$0xf]
    %v162 = vld [vmem:[#allocation2 + $0x1c] sm:$0xf]
    %v163 = vld [vmem:[#allocation2 + $0x20] sm:$0xf]
    %v164 = vld [vmem:[#allocation2 + $0x24] sm:$0xf]
    %v165 = vld [vmem:[#allocation2 + $0x28] sm:$0xf]
    %v166 = vld [vmem:[#allocation2 + $0x2c] sm:$0xf]
    %v167 = vld [vmem:[#allocation2 + $0x30] sm:$0xf]
    %v168 = vld [vmem:[#allocation2 + $0x34] sm:$0xf]
    %v169 = vld [vmem:[#allocation2 + $0x38] sm:$0xf]
    %v170 = vld [vmem:[#allocation2 + $0x3c] sm:$0xf]
    %v171 = vld [vmem:[%s3] sm:$0x1]
    %v172 = vlaneseq
    %v173 = vshrl.u32 %v172, 7
    %v174 = vsub.s32 0, %v173
    %v175 = vrot.slane %v171, %v174
    %v192 = vunpack.c.l.b16 %v155
    %v193 = vunpack.c.l.b16 %v156
    %v194 = vunpack.c.l.b16 %v157
    %v195 = vunpack.c.l.b16 %v158
    %v196 = vunpack.c.l.b16 %v159
    %v197 = vunpack.c.l.b16 %v160
    %v198 = vunpack.c.l.b16 %v161
    %v199 = vunpack.c.l.b16 %v162
    %v200 = vunpack.c.l.b16 %v163
    %v201 = vunpack.c.l.b16 %v164
    %v202 = vunpack.c.l.b16 %v165
    %v203 = vunpack.c.l.b16 %v166
    %v204 = vunpack.c.l.b16 %v167
    %v205 = vunpack.c.l.b16 %v168
    %v206 = vunpack.c.l.b16 %v169
    %v207 = vunpack.c.l.b16 %v170
    %v208 = vpack.c.b16 %v193, %v192
    %v209 = vpack.c.b16 %v195, %v194
    %v210 = vpack.c.b16 %v197, %v196
    %v211 = vpack.c.b16 %v199, %v198
    %v212 = vpack.c.b16 %v201, %v200
    %v213 = vpack.c.b16 %v203, %v202
    %v214 = vpack.c.b16 %v205, %v204
    %v215 = vpack.c.b16 %v207, %v206
    %224 = vmatprep.subr.bf16.mxu0 0
    %225 = vmatpush1.bf16.msra.mxu0 %v208
    %226 = vmatprep.subr.bf16.mxu0 0
    %227 = vmatpush1.bf16.msra.mxu0 %v209
    %228 = vmatprep.subr.bf16.mxu0 0
    %229 = vmatpush1.bf16.msra.mxu0 %v210
    %230 = vmatprep.subr.bf16.mxu0 0
    %231 = vmatpush1.bf16.msra.mxu0 %v211
    %232 = vmatprep.subr.bf16.mxu0 0
    %233 = vmatpush1.bf16.msra.mxu0 %v212
    %234 = vmatprep.subr.bf16.mxu0 0
    %235 = vmatpush1.bf16.msra.mxu0 %v213
    %236 = vmatprep.subr.bf16.mxu0 0
    %237 = vmatpush1.bf16.msra.mxu0 %v214
    %238 = vmatprep.subr.bf16.mxu0 0
    %239 = vmatpush1.bf16.msra.mxu0 %v215
    %240 = vmatprep.subr.bf16.mxu0 0
    %241 = vmatpush1.bf16.msra.mxu0 0
    %242 = vmatprep.subr.bf16.mxu0 0
    %243 = vmatpush1.bf16.msra.mxu0 0
    %244 = vmatprep.subr.bf16.mxu0 0
    %245 = vmatpush1.bf16.msra.mxu0 0
    %246 = vmatprep.subr.bf16.mxu0 0
    %247 = vmatpush1.bf16.msra.mxu0 0
    %248 = vmatprep.subr.bf16.mxu0 0
    %249 = vmatpush1.bf16.msra.mxu0 0
    %250 = vmatprep.subr.bf16.mxu0 0
    %251 = vmatpush1.bf16.msra.mxu0 0
    %252 = vmatprep.subr.bf16.mxu0 0
    %253 = vmatpush1.bf16.msra.mxu0 0
    %254 = vmatprep.subr.bf16.mxu0 0
    %255 = vmatpush1.bf16.msra.mxu0 0
    %256 = vmatprep.mubr.bf16.mxu0 0
    %257 = vmatmul.mubr.bf16.gmra.mrb[0].mxu0 %v154
    %v258 = vpop.f32.mrb[0].mxu0
    %v259 = vadd.f32 %v175, %v258
    %v260 = vpop.f32.mrb[0].mxu0
    %v261 = vpop.f32.mrb[0].mxu0
    %v262 = vadd.f32 %v175, %v261
    %v263 = vpop.f32.mrb[0].mxu0
    %264 = vdwg.mxu0
    %v265 = vpack.c.bf16 %v259, %v259
    %v266 = vpack.c.bf16 %v262, %v262
    %268 = vrot.lane.b32.xlu0 %v265, 96
    %v269 = vpop.permute.xlu0 %268
    %vm270 = vcmask 130048
    %v272 = vsel %vm270, %v265, 0
    %v275 = vsel %vm270, %v269, 0
    %277 = vmatprep.subr.bf16.mxu0 0
    %278 = vmatpush1.bf16.xpose.msra.mxu0 %v275
    %279 = vmatprep.subr.bf16.mxu0 0
    %280 = vmatpush1.bf16.xpose.msra.mxu0 0
    %281 = vmatprep.subr.bf16.mxu0 0
    %282 = vmatpush1.bf16.xpose.msra.mxu0 0
    %283 = vmatprep.subr.bf16.mxu0 0
    %284 = vmatpush1.bf16.xpose.msra.mxu0 0
    %285 = vmatprep.subr.bf16.mxu0 0
    %286 = vmatpush1.bf16.xpose.msra.mxu0 0
    %287 = vmatprep.subr.bf16.mxu0 0
    %288 = vmatpush1.bf16.xpose.msra.mxu0 0
    %289 = vmatprep.subr.bf16.mxu0 0
    %290 = vmatpush1.bf16.xpose.msra.mxu0 0
    %291 = vmatprep.subr.bf16.mxu0 0
    %292 = vmatpush1.bf16.xpose.msra.mxu0 0
    %293 = vmatprep.subr.bf16.mxu0 0
    %294 = vmatpush1.bf16.xpose.msra.mxu0 0
    %295 = vmatprep.subr.bf16.mxu0 0
    %296 = vmatpush1.bf16.xpose.msra.mxu0 0
    %297 = vmatprep.subr.bf16.mxu0 0
    %298 = vmatpush1.bf16.xpose.msra.mxu0 0
    %299 = vmatprep.subr.bf16.mxu0 0
    %300 = vmatpush1.bf16.xpose.msra.mxu0 0
    %301 = vmatprep.subr.bf16.mxu0 0
    %302 = vmatpush1.bf16.xpose.msra.mxu0 0
    %303 = vmatprep.subr.bf16.mxu0 0
    %304 = vmatpush1.bf16.xpose.msra.mxu0 0
    %305 = vmatprep.subr.bf16.mxu0 0
    %306 = vmatpush1.bf16.xpose.msra.mxu0 0
    %307 = vmatprep.subr.bf16.mxu0 0
    %308 = vmatpush1.bf16.xpose.msra.mxu0 0
    %309 = vmatprep.mubr.bf16.mxu0 0
    %310 = vmatmul.mubr.bf16.gmra.mrb[0].mxu0 %v272
    %v311 = vpop.f32.mrb[0].mxu0
    %v312 = vadd.f32 0.0, %v311
    %v313 = vpop.f32.mrb[0].mxu0
    %v314 = vpop.f32.mrb[0].mxu0
    %v315 = vpop.f32.mrb[0].mxu0
    %316 = vdwg.mxu0
    %318 = vrot.lane.b32.xlu0 %v266, 96
    %v319 = vpop.permute.xlu0 %318
    %v321 = vsel %vm270, %v266, 0
    %v324 = vsel %vm270, %v319, 0
    %326 = vmatprep.subr.bf16.mxu0 0
    %327 = vmatpush1.bf16.xpose.msra.mxu0 %v324
    %328 = vmatprep.subr.bf16.mxu0 0
    %329 = vmatpush1.bf16.xpose.msra.mxu0 0
    %330 = vmatprep.subr.bf16.mxu0 0
    %331 = vmatpush1.bf16.xpose.msra.mxu0 0
    %332 = vmatprep.subr.bf16.mxu0 0
    %333 = vmatpush1.bf16.xpose.msra.mxu0 0
    %334 = vmatprep.subr.bf16.mxu0 0
    %335 = vmatpush1.bf16.xpose.msra.mxu0 0
    %336 = vmatprep.subr.bf16.mxu0 0
    %337 = vmatpush1.bf16.xpose.msra.mxu0 0
    %338 = vmatprep.subr.bf16.mxu0 0
    %339 = vmatpush1.bf16.xpose.msra.mxu0 0
    %340 = vmatprep.subr.bf16.mxu0 0
    %341 = vmatpush1.bf16.xpose.msra.mxu0 0
    %342 = vmatprep.subr.bf16.mxu0 0
    %343 = vmatpush1.bf16.xpose.msra.mxu0 0
    %344 = vmatprep.subr.bf16.mxu0 0
    %345 = vmatpush1.bf16.xpose.msra.mxu0 0
    %346 = vmatprep.subr.bf16.mxu0 0
    %347 = vmatpush1.bf16.xpose.msra.mxu0 0
    %348 = vmatprep.subr.bf16.mxu0 0
    %349 = vmatpush1.bf16.xpose.msra.mxu0 0
    %350 = vmatprep.subr.bf16.mxu0 0
    %351 = vmatpush1.bf16.xpose.msra.mxu0 0
    %352 = vmatprep.subr.bf16.mxu0 0
    %353 = vmatpush1.bf16.xpose.msra.mxu0 0
    %354 = vmatprep.subr.bf16.mxu0 0
    %355 = vmatpush1.bf16.xpose.msra.mxu0 0
    %356 = vmatprep.subr.bf16.mxu0 0
    %357 = vmatpush1.bf16.xpose.msra.mxu0 0
    %358 = vmatprep.mubr.bf16.mxu0 0
    %359 = vmatmul.mubr.bf16.gmra.mrb[0].mxu0 %v321
    %v360 = vpop.f32.mrb[0].mxu0
    %v361 = vadd.f32 0.0, %v360
    %v362 = vpop.f32.mrb[0].mxu0
    %v363 = vpop.f32.mrb[0].mxu0
    %v364 = vpop.f32.mrb[0].mxu0
    %365 = vdwg.mxu0
    %v366 = vmul.f32 %v312, 0.25
    %v367 = vmul.f32 %v361, 0.25
    %vm368 = vcmask 64512
    %v369 = vsel %vm368, %v366, -inf
    %370 = vmax.xlane.f32.xlu0 %v369
    %v371 = vpop.xlane.xlu0 %370
    %v372 = vsel %vm368, %v367, -inf
    %373 = vmax.xlane.f32.xlu0 %v372
    %v374 = vpop.xlane.xlu0 %373
    %v375 = vsub.f32 %v366, %v371
    %v376 = vsub.f32 %v367, %v374
    %v377 = vmul.f32 %v375, 1.442695
    %v378 = vpow.pop %v377
    %v379 = vmul.f32 %v376, 1.442695
    %v380 = vpow.pop %v379
    %v381 = vsel %vm368, %v378, 0.0
    %382 = vadd.xlane.f32.xlu0 %v381
    %v383 = vpop.xlane.xlu0 %382
    %v384 = vsel %vm368, %v380, 0.0
    %385 = vadd.xlane.f32.xlu0 %v384
    %v386 = vpop.xlane.xlu0 %385
    %v387 = vrcp.pop %v383
    %v388 = vrcp.pop %v386
    %v389 = vmul.f32 %v378, %v387
    %v390 = vmul.f32 %v380, %v388
    %v391 = vpack.c.bf16 %v389, %v389
    %v392 = vpack.c.bf16 %v390, %v390
    %393 = vrot.lane.b32.xlu0 %v265, 64
    %v394 = vpop.permute.xlu0 %393
    %v396 = vsel %vm368, %v391, 0
    %vm398 = vcmask 1043456
    %v400 = vsel %vm398, %v394, 0
    %402 = vmatprep.subr.bf16.mxu0 0
    %403 = vmatpush1.bf16.msra.mxu0 %v400
    %404 = vmatprep.subr.bf16.mxu0 0
    %405 = vmatpush1.bf16.msra.mxu0 0
    %406 = vmatprep.subr.bf16.mxu0 0
    %407 = vmatpush1.bf16.msra.mxu0 0
    %408 = vmatprep.subr.bf16.mxu0 0
    %409 = vmatpush1.bf16.msra.mxu0 0
    %410 = vmatprep.subr.bf16.mxu0 0
    %411 = vmatpush1.bf16.msra.mxu0 0
    %412 = vmatprep.subr.bf16.mxu0 0
    %413 = vmatpush1.bf16.msra.mxu0 0
    %414 = vmatprep.subr.bf16.mxu0 0
    %415 = vmatpush1.bf16.msra.mxu0 0
    %416 = vmatprep.subr.bf16.mxu0 0
    %417 = vmatpush1.bf16.msra.mxu0 0
    %418 = vmatprep.subr.bf16.mxu0 0
    %419 = vmatpush1.bf16.msra.mxu0 0
    %420 = vmatprep.subr.bf16.mxu0 0
    %421 = vmatpush1.bf16.msra.mxu0 0
    %422 = vmatprep.subr.bf16.mxu0 0
    %423 = vmatpush1.bf16.msra.mxu0 0
    %424 = vmatprep.subr.bf16.mxu0 0
    %425 = vmatpush1.bf16.msra.mxu0 0
    %426 = vmatprep.subr.bf16.mxu0 0
    %427 = vmatpush1.bf16.msra.mxu0 0
    %428 = vmatprep.subr.bf16.mxu0 0
    %429 = vmatpush1.bf16.msra.mxu0 0
    %430 = vmatprep.subr.bf16.mxu0 0
    %431 = vmatpush1.bf16.msra.mxu0 0
    %432 = vmatprep.subr.bf16.mxu0 0
    %433 = vmatpush1.bf16.msra.mxu0 0
    %434 = vmatprep.mubr.bf16.mxu0 0
    %435 = vmatmul.mubr.bf16.gmra.mrb[0].mxu0 %v396
    %v436 = vpop.f32.mrb[0].mxu0
    %v437 = vadd.f32 0.0, %v436
    %v438 = vpop.f32.mrb[0].mxu0
    %v439 = vpop.f32.mrb[0].mxu0
    %v440 = vpop.f32.mrb[0].mxu0
    %441 = vdwg.mxu0
    %442 = vrot.lane.b32.xlu0 %v266, 64
    %v443 = vpop.permute.xlu0 %442
    %v445 = vsel %vm368, %v392, 0
    %v448 = vsel %vm398, %v443, 0
    %450 = vmatprep.subr.bf16.mxu0 0
    %451 = vmatpush1.bf16.msra.mxu0 %v448
    %452 = vmatprep.subr.bf16.mxu0 0
    %453 = vmatpush1.bf16.msra.mxu0 0
    %454 = vmatprep.subr.bf16.mxu0 0
    %455 = vmatpush1.bf16.msra.mxu0 0
    %456 = vmatprep.subr.bf16.mxu0 0
    %457 = vmatpush1.bf16.msra.mxu0 0
    %458 = vmatprep.subr.bf16.mxu0 0
    %459 = vmatpush1.bf16.msra.mxu0 0
    %460 = vmatprep.subr.bf16.mxu0 0
    %461 = vmatpush1.bf16.msra.mxu0 0
    %462 = vmatprep.subr.bf16.mxu0 0
    %463 = vmatpush1.bf16.msra.mxu0 0
    %464 = vmatprep.subr.bf16.mxu0 0
    %465 = vmatpush1.bf16.msra.mxu0 0
    %466 = vmatprep.subr.bf16.mxu0 0
    %467 = vmatpush1.bf16.msra.mxu0 0
    %468 = vmatprep.subr.bf16.mxu0 0
    %469 = vmatpush1.bf16.msra.mxu0 0
    %470 = vmatprep.subr.bf16.mxu0 0
    %471 = vmatpush1.bf16.msra.mxu0 0
    %472 = vmatprep.subr.bf16.mxu0 0
    %473 = vmatpush1.bf16.msra.mxu0 0
    %474 = vmatprep.subr.bf16.mxu0 0
    %475 = vmatpush1.bf16.msra.mxu0 0
    %476 = vmatprep.subr.bf16.mxu0 0
    %477 = vmatpush1.bf16.msra.mxu0 0
    %478 = vmatprep.subr.bf16.mxu0 0
    %479 = vmatpush1.bf16.msra.mxu0 0
    %480 = vmatprep.subr.bf16.mxu0 0
    %481 = vmatpush1.bf16.msra.mxu0 0
    %482 = vmatprep.mubr.bf16.mxu0 0
    %483 = vmatmul.mubr.bf16.gmra.mrb[0].mxu0 %v445
    %v484 = vpop.f32.mrb[0].mxu0
    %v485 = vadd.f32 0.0, %v484
    %v486 = vpop.f32.mrb[0].mxu0
    %v487 = vpop.f32.mrb[0].mxu0
    %v488 = vpop.f32.mrb[0].mxu0
    %489 = vdwg.mxu0
    %490 = vrot.lane.b32.xlu0 %v265, 112
    %v491 = vpop.permute.xlu0 %490
    %492 = vrot.lane.b32.xlu0 %v265, 80
    %v493 = vpop.permute.xlu0 %492
    %v495 = vsel %vm270, %v491, 0
    %v498 = vsel %vm270, %v493, 0
    %500 = vmatprep.subr.bf16.mxu0 0
    %501 = vmatpush1.bf16.xpose.msra.mxu0 %v498
    %502 = vmatprep.subr.bf16.mxu0 0
    %503 = vmatpush1.bf16.xpose.msra.mxu0 0
    %504 = vmatprep.subr.bf16.mxu0 0
    %505 = vmatpush1.bf16.xpose.msra.mxu0 0
    %506 = vmatprep.subr.bf16.mxu0 0
    %507 = vmatpush1.bf16.xpose.msra.mxu0 0
    %508 = vmatprep.subr.bf16.mxu0 0
    %509 = vmatpush1.bf16.xpose.msra.mxu0 0
    %510 = vmatprep.subr.bf16.mxu0 0
    %511 = vmatpush1.bf16.xpose.msra.mxu0 0
    %512 = vmatprep.subr.bf16.mxu0 0
    %513 = vmatpush1.bf16.xpose.msra.mxu0 0
    %514 = vmatprep.subr.bf16.mxu0 0
    %515 = vmatpush1.bf16.xpose.msra.mxu0 0
    %516 = vmatprep.subr.bf16.mxu0 0
    %517 = vmatpush1.bf16.xpose.msra.mxu0 0
    %518 = vmatprep.subr.bf16.mxu0 0
    %519 = vmatpush1.bf16.xpose.msra.mxu0 0
    %520 = vmatprep.subr.bf16.mxu0 0
    %521 = vmatpush1.bf16.xpose.msra.mxu0 0
    %522 = vmatprep.subr.bf16.mxu0 0
    %523 = vmatpush1.bf16.xpose.msra.mxu0 0
    %524 = vmatprep.subr.bf16.mxu0 0
    %525 = vmatpush1.bf16.xpose.msra.mxu0 0
    %526 = vmatprep.subr.bf16.mxu0 0
    %527 = vmatpush1.bf16.xpose.msra.mxu0 0
    %528 = vmatprep.subr.bf16.mxu0 0
    %529 = vmatpush1.bf16.xpose.msra.mxu0 0
    %530 = vmatprep.subr.bf16.mxu0 0
    %531 = vmatpush1.bf16.xpose.msra.mxu0 0
    %532 = vmatprep.mubr.bf16.mxu0 0
    %533 = vmatmul.mubr.bf16.gmra.mrb[0].mxu0 %v495
    %v534 = vpop.f32.mrb[0].mxu0
    %v535 = vadd.f32 0.0, %v534
    %v536 = vpop.f32.mrb[0].mxu0
    %v537 = vpop.f32.mrb[0].mxu0
    %v538 = vpop.f32.mrb[0].mxu0
    %539 = vdwg.mxu0
    %540 = vrot.lane.b32.xlu0 %v266, 112
    %v541 = vpop.permute.xlu0 %540
    %542 = vrot.lane.b32.xlu0 %v266, 80
    %v543 = vpop.permute.xlu0 %542
    %v545 = vsel %vm270, %v541, 0
    %v548 = vsel %vm270, %v543, 0
    %550 = vmatprep.subr.bf16.mxu0 0
    %551 = vmatpush1.bf16.xpose.msra.mxu0 %v548
    %552 = vmatprep.subr.bf16.mxu0 0
    %553 = vmatpush1.bf16.xpose.msra.mxu0 0
    %554 = vmatprep.subr.bf16.mxu0 0
    %555 = vmatpush1.bf16.xpose.msra.mxu0 0
    %556 = vmatprep.subr.bf16.mxu0 0
    %557 = vmatpush1.bf16.xpose.msra.mxu0 0
    %558 = vmatprep.subr.bf16.mxu0 0
    %559 = vmatpush1.bf16.xpose.msra.mxu0 0
    %560 = vmatprep.subr.bf16.mxu0 0
    %561 = vmatpush1.bf16.xpose.msra.mxu0 0
    %562 = vmatprep.subr.bf16.mxu0 0
    %563 = vmatpush1.bf16.xpose.msra.mxu0 0
    %564 = vmatprep.subr.bf16.mxu0 0
    %565 = vmatpush1.bf16.xpose.msra.mxu0 0
    %566 = vmatprep.subr.bf16.mxu0 0
    %567 = vmatpush1.bf16.xpose.msra.mxu0 0
    %568 = vmatprep.subr.bf16.mxu0 0
    %569 = vmatpush1.bf16.xpose.msra.mxu0 0
    %570 = vmatprep.subr.bf16.mxu0 0
    %571 = vmatpush1.bf16.xpose.msra.mxu0 0
    %572 = vmatprep.subr.bf16.mxu0 0
    %573 = vmatpush1.bf16.xpose.msra.mxu0 0
    %574 = vmatprep.subr.bf16.mxu0 0
    %575 = vmatpush1.bf16.xpose.msra.mxu0 0
    %576 = vmatprep.subr.bf16.mxu0 0
    %577 = vmatpush1.bf16.xpose.msra.mxu0 0
    %578 = vmatprep.subr.bf16.mxu0 0
    %579 = vmatpush1.bf16.xpose.msra.mxu0 0
    %580 = vmatprep.subr.bf16.mxu0 0
    %581 = vmatpush1.bf16.xpose.msra.mxu0 0
    %582 = vmatprep.mubr.bf16.mxu0 0
    %583 = vmatmul.mubr.bf16.gmra.mrb[0].mxu0 %v545
    %v584 = vpop.f32.mrb[0].mxu0
    %v585 = vadd.f32 0.0, %v584
    %v586 = vpop.f32.mrb[0].mxu0
    %v587 = vpop.f32.mrb[0].mxu0
    %v588 = vpop.f32.mrb[0].mxu0
    %589 = vdwg.mxu0
    %v590 = vmul.f32 %v535, 0.25
    %v591 = vmul.f32 %v585, 0.25
    %v592 = vsel %vm368, %v590, -inf
    %593 = vmax.xlane.f32.xlu0 %v592
    %v594 = vpop.xlane.xlu0 %593
    %v595 = vsel %vm368, %v591, -inf
    %596 = vmax.xlane.f32.xlu0 %v595
    %v597 = vpop.xlane.xlu0 %596
    %v598 = vsub.f32 %v590, %v594
    %v599 = vsub.f32 %v591, %v597
    %v600 = vmul.f32 %v598, 1.442695
    %v601 = vpow.pop %v600
    %v602 = vmul.f32 %v599, 1.442695
    %v603 = vpow.pop %v602
    %v604 = vsel %vm368, %v601, 0.0
    %605 = vadd.xlane.f32.xlu0 %v604
    %v606 = vpop.xlane.xlu0 %605
    %v607 = vsel %vm368, %v603, 0.0
    %608 = vadd.xlane.f32.xlu0 %v607
    %v609 = vpop.xlane.xlu0 %608
    %v610 = vrcp.pop %v606
    %v611 = vrcp.pop %v609
    %v612 = vmul.f32 %v601, %v610
    %v613 = vmul.f32 %v603, %v611
    %v614 = vpack.c.bf16 %v612, %v612
    %v615 = vpack.c.bf16 %v613, %v613
    %616 = vrot.lane.b32.xlu0 %v265, 48
    %v617 = vpop.permute.xlu0 %616
    %v619 = vsel %vm368, %v614, 0
    %v622 = vsel %vm398, %v617, 0
    %624 = vmatprep.subr.bf16.mxu0 0
    %625 = vmatpush1.bf16.msra.mxu0 %v622
    %626 = vmatprep.subr.bf16.mxu0 0
    %627 = vmatpush1.bf16.msra.mxu0 0
    %628 = vmatprep.subr.bf16.mxu0 0
    %629 = vmatpush1.bf16.msra.mxu0 0
    %630 = vmatprep.subr.bf16.mxu0 0
    %631 = vmatpush1.bf16.msra.mxu0 0
    %632 = vmatprep.subr.bf16.mxu0 0
    %633 = vmatpush1.bf16.msra.mxu0 0
    %634 = vmatprep.subr.bf16.mxu0 0
    %635 = vmatpush1.bf16.msra.mxu0 0
    %636 = vmatprep.subr.bf16.mxu0 0
    %637 = vmatpush1.bf16.msra.mxu0 0
    %638 = vmatprep.subr.bf16.mxu0 0
    %639 = vmatpush1.bf16.msra.mxu0 0
    %640 = vmatprep.subr.bf16.mxu0 0
    %641 = vmatpush1.bf16.msra.mxu0 0
    %642 = vmatprep.subr.bf16.mxu0 0
    %643 = vmatpush1.bf16.msra.mxu0 0
    %644 = vmatprep.subr.bf16.mxu0 0
    %645 = vmatpush1.bf16.msra.mxu0 0
    %646 = vmatprep.subr.bf16.mxu0 0
    %647 = vmatpush1.bf16.msra.mxu0 0
    %648 = vmatprep.subr.bf16.mxu0 0
    %649 = vmatpush1.bf16.msra.mxu0 0
    %650 = vmatprep.subr.bf16.mxu0 0
    %651 = vmatpush1.bf16.msra.mxu0 0
    %652 = vmatprep.subr.bf16.mxu0 0
    %653 = vmatpush1.bf16.msra.mxu0 0
    %654 = vmatprep.subr.bf16.mxu0 0
    %655 = vmatpush1.bf16.msra.mxu0 0
    %656 = vmatprep.mubr.bf16.mxu0 0
    %657 = vmatmul.mubr.bf16.gmra.mrb[0].mxu0 %v619
    %v658 = vpop.f32.mrb[0].mxu0
    %v659 = vadd.f32 0.0, %v658
    %v660 = vpop.f32.mrb[0].mxu0
    %v661 = vpop.f32.mrb[0].mxu0
    %v662 = vpop.f32.mrb[0].mxu0
    %663 = vdwg.mxu0
    %664 = vrot.lane.b32.xlu0 %v266, 48
    %v665 = vpop.permute.xlu0 %664
    %v667 = vsel %vm368, %v615, 0
    %v670 = vsel %vm398, %v665, 0
    %672 = vmatprep.subr.bf16.mxu0 0
    %673 = vmatpush1.bf16.msra.mxu0 %v670
    %674 = vmatprep.subr.bf16.mxu0 0
    %675 = vmatpush1.bf16.msra.mxu0 0
    %676 = vmatprep.subr.bf16.mxu0 0
    %677 = vmatpush1.bf16.msra.mxu0 0
    %678 = vmatprep.subr.bf16.mxu0 0
    %679 = vmatpush1.bf16.msra.mxu0 0
    %680 = vmatprep.subr.bf16.mxu0 0
    %681 = vmatpush1.bf16.msra.mxu0 0
    %682 = vmatprep.subr.bf16.mxu0 0
    %683 = vmatpush1.bf16.msra.mxu0 0
    %684 = vmatprep.subr.bf16.mxu0 0
    %685 = vmatpush1.bf16.msra.mxu0 0
    %686 = vmatprep.subr.bf16.mxu0 0
    %687 = vmatpush1.bf16.msra.mxu0 0
    %688 = vmatprep.subr.bf16.mxu0 0
    %689 = vmatpush1.bf16.msra.mxu0 0
    %690 = vmatprep.subr.bf16.mxu0 0
    %691 = vmatpush1.bf16.msra.mxu0 0
    %692 = vmatprep.subr.bf16.mxu0 0
    %693 = vmatpush1.bf16.msra.mxu0 0
    %694 = vmatprep.subr.bf16.mxu0 0
    %695 = vmatpush1.bf16.msra.mxu0 0
    %696 = vmatprep.subr.bf16.mxu0 0
    %697 = vmatpush1.bf16.msra.mxu0 0
    %698 = vmatprep.subr.bf16.mxu0 0
    %699 = vmatpush1.bf16.msra.mxu0 0
    %700 = vmatprep.subr.bf16.mxu0 0
    %701 = vmatpush1.bf16.msra.mxu0 0
    %702 = vmatprep.subr.bf16.mxu0 0
    %703 = vmatpush1.bf16.msra.mxu0 0
    %704 = vmatprep.mubr.bf16.mxu0 0
    %705 = vmatmul.mubr.bf16.gmra.mrb[0].mxu0 %v667
    %v706 = vpop.f32.mrb[0].mxu0
    %v707 = vadd.f32 0.0, %v706
    %v708 = vpop.f32.mrb[0].mxu0
    %v709 = vpop.f32.mrb[0].mxu0
    %v710 = vpop.f32.mrb[0].mxu0
    %711 = vdwg.mxu0
    %714 = vrot.lane.b32.xlu0 %v659, 16
    %v715 = vpop.permute.xlu0 %714
    %716 = vrot.lane.b32.xlu0 %v707, 16
    %v717 = vpop.permute.xlu0 %716
    %v720 = vsel %vm270, %v437, %v715
    %v721 = vsel %vm270, %v485, %v717
    %v722 = vpack.c.bf16 %v721, %v720
    %v723 = vld [vmem:[#allocation2 + $0x40] sm:$0xf]
    %v724 = vld [vmem:[#allocation2 + $0x44] sm:$0xf]
    %v725 = vld [vmem:[#allocation2 + $0x48] sm:$0xf]
    %v726 = vld [vmem:[#allocation2 + $0x4c] sm:$0xf]
    %v727 = vld [vmem:[%s3 + $0x1] sm:$0x1]
    %v728 = vlaneseq
    %v729 = vshrl.u32 %v728, 7
    %v730 = vsub.s32 0, %v729
    %v731 = vrot.slane %v727, %v730
    %v736 = vunpack.c.l.b16 %v723
    %v737 = vunpack.c.l.b16 %v724
    %v738 = vunpack.c.l.b16 %v725
    %v739 = vunpack.c.l.b16 %v726
    %v740 = vpack.c.b16 %v737, %v736
    %v741 = vpack.c.b16 %v739, %v738
    %vm744 = vcmask 261120
    %v746 = vsel %vm744, %v722, 0
    %748 = vmatprep.subr.bf16.mxu0 0
    %749 = vmatpush1.bf16.msra.mxu0 %v740
    %750 = vmatprep.subr.bf16.mxu0 0
    %751 = vmatpush1.bf16.msra.mxu0 %v741
    %752 = vmatprep.subr.bf16.mxu0 0
    %753 = vmatpush1.bf16.msra.mxu0 0
    %754 = vmatprep.subr.bf16.mxu0 0
    %755 = vmatpush1.bf16.msra.mxu0 0
    %756 = vmatprep.subr.bf16.mxu0 0
    %757 = vmatpush1.bf16.msra.mxu0 0
    %758 = vmatprep.subr.bf16.mxu0 0
    %759 = vmatpush1.bf16.msra.mxu0 0
    %760 = vmatprep.subr.bf16.mxu0 0
    %761 = vmatpush1.bf16.msra.mxu0 0
    %762 = vmatprep.subr.bf16.mxu0 0
    %763 = vmatpush1.bf16.msra.mxu0 0
    %764 = vmatprep.subr.bf16.mxu0 0
    %765 = vmatpush1.bf16.msra.mxu0 0
    %766 = vmatprep.subr.bf16.mxu0 0
    %767 = vmatpush1.bf16.msra.mxu0 0
    %768 = vmatprep.subr.bf16.mxu0 0
    %769 = vmatpush1.bf16.msra.mxu0 0
    %770 = vmatprep.subr.bf16.mxu0 0
    %771 = vmatpush1.bf16.msra.mxu0 0
    %772 = vmatprep.subr.bf16.mxu0 0
    %773 = vmatpush1.bf16.msra.mxu0 0
    %774 = vmatprep.subr.bf16.mxu0 0
    %775 = vmatpush1.bf16.msra.mxu0 0
    %776 = vmatprep.subr.bf16.mxu0 0
    %777 = vmatpush1.bf16.msra.mxu0 0
    %778 = vmatprep.subr.bf16.mxu0 0
    %779 = vmatpush1.bf16.msra.mxu0 0
    %780 = vmatprep.mubr.bf16.mxu0 0
    %781 = vmatmul.mubr.bf16.gmra.mrb[0].mxu0 %v746
    %v782 = vpop.f32.mrb[0].mxu0
    %v783 = vadd.f32 %v731, %v782
    %v784 = vpop.f32.mrb[0].mxu0
    %v785 = vpop.f32.mrb[0].mxu0
    %v786 = vadd.f32 %v731, %v785
    %v787 = vpop.f32.mrb[0].mxu0
    %788 = vdwg.mxu0
    %v789 = vadd.f32 %v35, %v783
    %v790 = vadd.f32 %v36, %v786
    %791 = vadd.xlane.f32.xlu0 %v789
    %v792 = vpop.xlane.xlu0 %791
    %793 = vadd.xlane.f32.xlu0 %v790
    %v794 = vpop.xlane.xlu0 %793
    %v795 = vmul.f32 %v792, 0.03125
    %v796 = vmul.f32 %v794, 0.03125
    %v797 = vmul.f32 %v789, %v789
    %v798 = vmul.f32 %v790, %v790
    %799 = vadd.xlane.f32.xlu0 %v797
    %v800 = vpop.xlane.xlu0 %799
    %801 = vadd.xlane.f32.xlu0 %v798
    %v802 = vpop.xlane.xlu0 %801
    %v803 = vmul.f32 %v800, 0.03125
    %v804 = vmul.f32 %v802, 0.03125
    %v805 = vmul.f32 %v795, %v795
    %v806 = vmul.f32 %v796, %v796
    %v807 = vsub.f32 %v803, %v805
    %v808 = vsub.f32 %v804, %v806
    %v809 = vsub.f32 %v789, %v795
    %v810 = vsub.f32 %v790, %v796
    %v811 = vadd.f32 %v807, 1e-05
    %v812 = vadd.f32 %v808, 1e-05
    %v813 = vrsqrt.pop %v811
    %v814 = vrsqrt.pop %v812
    %v815 = vmul.f32 %v809, %v813
    %v816 = vmul.f32 %v810, %v814
    %v817 = vld [vmem:[%s3 + $0x2] sm:$0x1]
    %v818 = vlaneseq
    %v819 = vshrl.u32 %v818, 7
    %v820 = vsub.s32 0, %v819
    %v821 = vrot.slane %v817, %v820
    %v822 = vmul.f32 %v815, %v821
    %v823 = vmul.f32 %v816, %v821
    %v824 = vld [vmem:[%s3 + $0x3] sm:$0x1]
    %v825 = vlaneseq
    %v826 = vshrl.u32 %v825, 7
    %v827 = vsub.s32 0, %v826
    %v828 = vrot.slane %v824, %v827
    %v829 = vadd.f32 %v822, %v828
    %v830 = vadd.f32 %v823, %v828
    %v831 = vpack.c.bf16 %v830, %v829
    %v832 = vld [vmem:[#allocation2 + $0x50] sm:$0xf]
    %v833 = vld [vmem:[#allocation2 + $0x54] sm:$0xf]
    %v834 = vld [vmem:[#allocation2 + $0x58] sm:$0xf]
    %v835 = vld [vmem:[#allocation2 + $0x5c] sm:$0xf]
    %v836 = vld [vmem:[#allocation2 + $0x60] sm:$0xf]
    %v837 = vld [vmem:[#allocation2 + $0x64] sm:$0xf]
    %v838 = vld [vmem:[#allocation2 + $0x68] sm:$0xf]
    %v839 = vld [vmem:[#allocation2 + $0x6c] sm:$0xf]
    %v840 = vld [vmem:[#allocation2 + $0x70] sm:$0xf]
    %v841 = vld [vmem:[#allocation2 + $0x74] sm:$0xf]
    %v842 = vld [vmem:[#allocation2 + $0x78] sm:$0xf]
    %v843 = vld [vmem:[#allocation2 + $0x7c] sm:$0xf]
    %v844 = vld [vmem:[#allocation2 + $0x80] sm:$0xf]
    %v845 = vld [vmem:[#allocation2 + $0x84] sm:$0xf]
    %v846 = vld [vmem:[#allocation2 + $0x88] sm:$0xf]
    %v847 = vld [vmem:[#allocation2 + $0x8c] sm:$0xf]
    %v848 = vld [vmem:[%s3 + $0x4] sm:$0x1]
    %v849 = vlaneseq
    %v850 = vshrl.u32 %v849, 7
    %v851 = vsub.s32 0, %v850
    %v852 = vrot.slane %v848, %v851
    %v869 = vunpack.c.l.b16 %v832
    %v870 = vunpack.c.l.b16 %v833
    %v871 = vunpack.c.l.b16 %v834
    %v872 = vunpack.c.l.b16 %v835
    %v873 = vunpack.c.l.b16 %v836
    %v874 = vunpack.c.l.b16 %v837
    %v875 = vunpack.c.l.b16 %v838
    %v876 = vunpack.c.l.b16 %v839
    %v877 = vunpack.c.l.b16 %v840
    %v878 = vunpack.c.l.b16 %v841
    %v879 = vunpack.c.l.b16 %v842
    %v880 = vunpack.c.l.b16 %v843
    %v881 = vunpack.c.l.b16 %v844
    %v882 = vunpack.c.l.b16 %v845
    %v883 = vunpack.c.l.b16 %v846
    %v884 = vunpack.c.l.b16 %v847
    %v885 = vpack.c.b16 %v870, %v869
    %v886 = vpack.c.b16 %v872, %v871
    %v887 = vpack.c.b16 %v874, %v873
    %v888 = vpack.c.b16 %v876, %v875
    %v889 = vpack.c.b16 %v878, %v877
    %v890 = vpack.c.b16 %v880, %v879
    %v891 = vpack.c.b16 %v882, %v881
    %v892 = vpack.c.b16 %v884, %v883
    %901 = vmatprep.subr.bf16.mxu0 0
    %902 = vmatpush1.bf16.msra.mxu0 %v885
    %903 = vmatprep.subr.bf16.mxu0 0
    %904 = vmatpush1.bf16.msra.mxu0 %v886
    %905 = vmatprep.subr.bf16.mxu0 0
    %906 = vmatpush1.bf16.msra.mxu0 %v887
    %907 = vmatprep.subr.bf16.mxu0 0
    %908 = vmatpush1.bf16.msra.mxu0 %v888
    %909 = vmatprep.subr.bf16.mxu0 0
    %910 = vmatpush1.bf16.msra.mxu0 %v889
    %911 = vmatprep.subr.bf16.mxu0 0
    %912 = vmatpush1.bf16.msra.mxu0 %v890
    %913 = vmatprep.subr.bf16.mxu0 0
    %914 = vmatpush1.bf16.msra.mxu0 %v891
    %915 = vmatprep.subr.bf16.mxu0 0
    %916 = vmatpush1.bf16.msra.mxu0 %v892
    %917 = vmatprep.subr.bf16.mxu0 0
    %918 = vmatpush1.bf16.msra.mxu0 0
    %919 = vmatprep.subr.bf16.mxu0 0
    %920 = vmatpush1.bf16.msra.mxu0 0
    %921 = vmatprep.subr.bf16.mxu0 0
    %922 = vmatpush1.bf16.msra.mxu0 0
    %923 = vmatprep.subr.bf16.mxu0 0
    %924 = vmatpush1.bf16.msra.mxu0 0
    %925 = vmatprep.subr.bf16.mxu0 0
    %926 = vmatpush1.bf16.msra.mxu0 0
    %927 = vmatprep.subr.bf16.mxu0 0
    %928 = vmatpush1.bf16.msra.mxu0 0
    %929 = vmatprep.subr.bf16.mxu0 0
    %930 = vmatpush1.bf16.msra.mxu0 0
    %931 = vmatprep.subr.bf16.mxu0 0
    %932 = vmatpush1.bf16.msra.mxu0 0
    %933 = vmatprep.mubr.bf16.mxu0 0
    %934 = vmatmul.mubr.bf16.gmra.mrb[0].mxu0 %v831
    %v935 = vpop.f32.mrb[0].mxu0
    %v936 = vadd.f32 %v852, %v935
    %v937 = vpop.f32.mrb[0].mxu0
    %v938 = vpop.f32.mrb[0].mxu0
    %v939 = vadd.f32 %v852, %v938
    %v940 = vpop.f32.mrb[0].mxu0
    %941 = vdwg.mxu0
    %v942 = vpack.c.bf16 %v936, %v936
    %v943 = vpack.c.bf16 %v939, %v939
    %v944 = vpack.c.bf16 %v146, %v146
    %v945 = vpack.c.bf16 %v149, %v149
    %v947 = vsel %vm270, %v942, 0
    %v950 = vsel %vm270, %v944, 0
    %952 = vmatprep.subr.bf16.mxu0 0
    %953 = vmatpush1.bf16.xpose.msra.mxu0 %v950
    %954 = vmatprep.subr.bf16.mxu0 0
    %955 = vmatpush1.bf16.xpose.msra.mxu0 0
    %956 = vmatprep.subr.bf16.mxu0 0
    %957 = vmatpush1.bf16.xpose.msra.mxu0 0
    %958 = vmatprep.subr.bf16.mxu0 0
    %959 = vmatpush1.bf16.xpose.msra.mxu0 0
    %960 = vmatprep.subr.bf16.mxu0 0
    %961 = vmatpush1.bf16.xpose.msra.mxu0 0
    %962 = vmatprep.subr.bf16.mxu0 0
    %963 = vmatpush1.bf16.xpose.msra.mxu0 0
    %964 = vmatprep.subr.bf16.mxu0 0
    %965 = vmatpush1.bf16.xpose.msra.mxu0 0
    %966 = vmatprep.subr.bf16.mxu0 0
    %967 = vmatpush1.bf16.xpose.msra.mxu0 0
    %968 = vmatprep.subr.bf16.mxu0 0
    %969 = vmatpush1.bf16.xpose.msra.mxu0 0
    %970 = vmatprep.subr.bf16.mxu0 0
    %971 = vmatpush1.bf16.xpose.msra.mxu0 0
    %972 = vmatprep.subr.bf16.mxu0 0
    %973 = vmatpush1.bf16.xpose.msra.mxu0 0
    %974 = vmatprep.subr.bf16.mxu0 0
    %975 = vmatpush1.bf16.xpose.msra.mxu0 0
    %976 = vmatprep.subr.bf16.mxu0 0
    %977 = vmatpush1.bf16.xpose.msra.mxu0 0
    %978 = vmatprep.subr.bf16.mxu0 0
    %979 = vmatpush1.bf16.xpose.msra.mxu0 0
    %980 = vmatprep.subr.bf16.mxu0 0
    %981 = vmatpush1.bf16.xpose.msra.mxu0 0
    %982 = vmatprep.subr.bf16.mxu0 0
    %983 = vmatpush1.bf16.xpose.msra.mxu0 0
    %984 = vmatprep.mubr.bf16.mxu0 0
    %985 = vmatmul.mubr.bf16.gmra.mrb[0].mxu0 %v947
    %v986 = vpop.f32.mrb[0].mxu0
    %v987 = vadd.f32 0.0, %v986
    %v988 = vpop.f32.mrb[0].mxu0
    %v989 = vpop.f32.mrb[0].mxu0
    %v990 = vpop.f32.mrb[0].mxu0
    %991 = vdwg.mxu0
    %v993 = vsel %vm270, %v943, 0
    %v996 = vsel %vm270, %v945, 0
    %998 = vmatprep.subr.bf16.mxu0 0
    %999 = vmatpush1.bf16.xpose.msra.mxu0 %v996
    %1000 = vmatprep.subr.bf16.mxu0 0
    %1001 = vmatpush1.bf16.xpose.msra.mxu0 0
    %1002 = vmatprep.subr.bf16.mxu0 0
    %1003 = vmatpush1.bf16.xpose.msra.mxu0 0
    %1004 = vmatprep.subr.bf16.mxu0 0
    %1005 = vmatpush1.bf16.xpose.msra.mxu0 0
    %1006 = vmatprep.subr.bf16.mxu0 0
    %1007 = vmatpush1.bf16.xpose.msra.mxu0 0
    %1008 = vmatprep.subr.bf16.mxu0 0
    %1009 = vmatpush1.bf16.xpose.msra.mxu0 0
    %1010 = vmatprep.subr.bf16.mxu0 0
    %1011 = vmatpush1.bf16.xpose.msra.mxu0 0
    %1012 = vmatprep.subr.bf16.mxu0 0
    %1013 = vmatpush1.bf16.xpose.msra.mxu0 0
    %1014 = vmatprep.subr.bf16.mxu0 0
    %1015 = vmatpush1.bf16.xpose.msra.mxu0 0
    %1016 = vmatprep.subr.bf16.mxu0 0
    %1017 = vmatpush1.bf16.xpose.msra.mxu0 0
    %1018 = vmatprep.subr.bf16.mxu0 0
    %1019 = vmatpush1.bf16.xpose.msra.mxu0 0
    %1020 = vmatprep.subr.bf16.mxu0 0
    %1021 = vmatpush1.bf16.xpose.msra.mxu0 0
    %1022 = vmatprep.subr.bf16.mxu0 0
    %1023 = vmatpush1.bf16.xpose.msra.mxu0 0
    %1024 = vmatprep.subr.bf16.mxu0 0
    %1025 = vmatpush1.bf16.xpose.msra.mxu0 0
    %1026 = vmatprep.subr.bf16.mxu0 0
    %1027 = vmatpush1.bf16.xpose.msra.mxu0 0
    %1028 = vmatprep.subr.bf16.mxu0 0
    %1029 = vmatpush1.bf16.xpose.msra.mxu0 0
    %1030 = vmatprep.mubr.bf16.mxu0 0
    %1031 = vmatmul.mubr.bf16.gmra.mrb[0].mxu0 %v993
    %v1032 = vpop.f32.mrb[0].mxu0
    %v1033 = vadd.f32 0.0, %v1032
    %v1034 = vpop.f32.mrb[0].mxu0
    %v1035 = vpop.f32.mrb[0].mxu0
    %v1036 = vpop.f32.mrb[0].mxu0
    %1037 = vdwg.mxu0
    %v1038 = vmul.f32 %v987, 0.25
    %v1039 = vmul.f32 %v1033, 0.25
    %v1040 = vsel %vm368, %v1038, -inf
    %1041 = vmax.xlane.f32.xlu0 %v1040
    %v1042 = vpop.xlane.xlu0 %1041
    %v1043 = vsel %vm368, %v1039, -inf
    %1044 = vmax.xlane.f32.xlu0 %v1043
    %v1045 = vpop.xlane.xlu0 %1044
    %v1046 = vsub.f32 %v1038, %v1042
    %v1047 = vsub.f32 %v1039, %v1045
    %v1048 = vmul.f32 %v1046, 1.442695
    %v1049 = vpow.pop %v1048
    %v1050 = vmul.f32 %v1047, 1.442695
    %v1051 = vpow.pop %v1050
    %v1052 = vsel %vm368, %v1049, 0.0
    %1053 = vadd.xlane.f32.xlu0 %v1052
    %v1054 = vpop.xlane.xlu0 %1053
    %v1055 = vsel %vm368, %v1051, 0.0
    %1056 = vadd.xlane.f32.xlu0 %v1055
    %v1057 = vpop.xlane.xlu0 %1056
    %v1058 = vrcp.pop %v1054
    %v1059 = vrcp.pop %v1057
    %v1060 = vmul.f32 %v1049, %v1058
    %v1061 = vmul.f32 %v1051, %v1059
    %v1062 = vpack.c.bf16 %v1060, %v1060
    %v1063 = vpack.c.bf16 %v1061, %v1061
    %1065 = vrot.lane.b32.xlu0 %v944, 96
    %v1066 = vpop.permute.xlu0 %1065
    %v1068 = vsel %vm368, %v1062, 0
    %v1071 = vsel %vm398, %v1066, 0
    %1073 = vmatprep.subr.bf16.mxu0 0
    %1074 = vmatpush1.bf16.msra.mxu0 %v1071
    %1075 = vmatprep.subr.bf16.mxu0 0
    %1076 = vmatpush1.bf16.msra.mxu0 0
    %1077 = vmatprep.subr.bf16.mxu0 0
    %1078 = vmatpush1.bf16.msra.mxu0 0
    %1079 = vmatprep.subr.bf16.mxu0 0
    %1080 = vmatpush1.bf16.msra.mxu0 0
    %1081 = vmatprep.subr.bf16.mxu0 0
    %1082 = vmatpush1.bf16.msra.mxu0 0
    %1083 = vmatprep.subr.bf16.mxu0 0
    %1084 = vmatpush1.bf16.msra.mxu0 0
    %1085 = vmatprep.subr.bf16.mxu0 0
    %1086 = vmatpush1.bf16.msra.mxu0 0
    %1087 = vmatprep.subr.bf16.mxu0 0
    %1088 = vmatpush1.bf16.msra.mxu0 0
    %1089 = vmatprep.subr.bf16.mxu0 0
    %1090 = vmatpush1.bf16.msra.mxu0 0
    %1091 = vmatprep.subr.bf16.mxu0 0
    %1092 = vmatpush1.bf16.msra.mxu0 0
    %1093 = vmatprep.subr.bf16.mxu0 0
    %1094 = vmatpush1.bf16.msra.mxu0 0
    %1095 = vmatprep.subr.bf16.mxu0 0
    %1096 = vmatpush1.bf16.msra.mxu0 0
    %1097 = vmatprep.subr.bf16.mxu0 0
    %1098 = vmatpush1.bf16.msra.mxu0 0
    %1099 = vmatprep.subr.bf16.mxu0 0
    %1100 = vmatpush1.bf16.msra.mxu0 0
    %1101 = vmatprep.subr.bf16.mxu0 0
    %1102 = vmatpush1.bf16.msra.mxu0 0
    %1103 = vmatprep.subr.bf16.mxu0 0
    %1104 = vmatpush1.bf16.msra.mxu0 0
    %1105 = vmatprep.mubr.bf16.mxu0 0
    %1106 = vmatmul.mubr.bf16.gmra.mrb[0].mxu0 %v1068
    %v1107 = vpop.f32.mrb[0].mxu0
    %v1108 = vadd.f32 0.0, %v1107
    %v1109 = vpop.f32.mrb[0].mxu0
    %v1110 = vpop.f32.mrb[0].mxu0
    %v1111 = vpop.f32.mrb[0].mxu0
    %1112 = vdwg.mxu0
    %1114 = vrot.lane.b32.xlu0 %v945, 96
    %v1115 = vpop.permute.xlu0 %1114
    %v1117 = vsel %vm368, %v1063, 0
    %v1120 = vsel %vm398, %v1115, 0
    %1122 = vmatprep.subr.bf16.mxu0 0
    %1123 = vmatpush1.bf16.msra.mxu0 %v1120
    %1124 = vmatprep.subr.bf16.mxu0 0
    %1125 = vmatpush1.bf16.msra.mxu0 0
    %1126 = vmatprep.subr.bf16.mxu0 0
    %1127 = vmatpush1.bf16.msra.mxu0 0
    %1128 = vmatprep.subr.bf16.mxu0 0
    %1129 = vmatpush1.bf16.msra.mxu0 0
    %1130 = vmatprep.subr.bf16.mxu0 0
    %1131 = vmatpush1.bf16.msra.mxu0 0
    %1132 = vmatprep.subr.bf16.mxu0 0
    %1133 = vmatpush1.bf16.msra.mxu0 0
    %1134 = vmatprep.subr.bf16.mxu0 0
    %1135 = vmatpush1.bf16.msra.mxu0 0
    %1136 = vmatprep.subr.bf16.mxu0 0
    %1137 = vmatpush1.bf16.msra.mxu0 0
    %1138 = vmatprep.subr.bf16.mxu0 0
    %1139 = vmatpush1.bf16.msra.mxu0 0
    %1140 = vmatprep.subr.bf16.mxu0 0
    %1141 = vmatpush1.bf16.msra.mxu0 0
    %1142 = vmatprep.subr.bf16.mxu0 0
    %1143 = vmatpush1.bf16.msra.mxu0 0
    %1144 = vmatprep.subr.bf16.mxu0 0
    %1145 = vmatpush1.bf16.msra.mxu0 0
    %1146 = vmatprep.subr.bf16.mxu0 0
    %1147 = vmatpush1.bf16.msra.mxu0 0
    %1148 = vmatprep.subr.bf16.mxu0 0
    %1149 = vmatpush1.bf16.msra.mxu0 0
    %1150 = vmatprep.subr.bf16.mxu0 0
    %1151 = vmatpush1.bf16.msra.mxu0 0
    %1152 = vmatprep.subr.bf16.mxu0 0
    %1153 = vmatpush1.bf16.msra.mxu0 0
    %1154 = vmatprep.mubr.bf16.mxu0 0
    %1155 = vmatmul.mubr.bf16.gmra.mrb[0].mxu0 %v1117
    %v1156 = vpop.f32.mrb[0].mxu0
    %v1157 = vadd.f32 0.0, %v1156
    %v1158 = vpop.f32.mrb[0].mxu0
    %v1159 = vpop.f32.mrb[0].mxu0
    %v1160 = vpop.f32.mrb[0].mxu0
    %1161 = vdwg.mxu0
    %1163 = vrot.lane.b32.xlu0 %v942, 112
    %v1164 = vpop.permute.xlu0 %1163
    %1165 = vrot.lane.b32.xlu0 %v944, 112
    %v1166 = vpop.permute.xlu0 %1165
    %v1168 = vsel %vm270, %v1164, 0
    %v1171 = vsel %vm270, %v1166, 0
    %1173 = vmatprep.subr.bf16.mxu0 0
    %1174 = vmatpush1.bf16.xpose.msra.mxu0 %v1171
    %1175 = vmatprep.subr.bf16.mxu0 0
    %1176 = vmatpush1.bf16.xpose.msra.mxu0 0
    %1177 = vmatprep.subr.bf16.mxu0 0
    %1178 = vmatpush1.bf16.xpose.msra.mxu0 0
    %1179 = vmatprep.subr.bf16.mxu0 0
    %1180 = vmatpush1.bf16.xpose.msra.mxu0 0
    %1181 = vmatprep.subr.bf16.mxu0 0
    %1182 = vmatpush1.bf16.xpose.msra.mxu0 0
    %1183 = vmatprep.subr.bf16.mxu0 0
    %1184 = vmatpush1.bf16.xpose.msra.mxu0 0
    %1185 = vmatprep.subr.bf16.mxu0 0
    %1186 = vmatpush1.bf16.xpose.msra.mxu0 0
    %1187 = vmatprep.subr.bf16.mxu0 0
    %1188 = vmatpush1.bf16.xpose.msra.mxu0 0
    %1189 = vmatprep.subr.bf16.mxu0 0
    %1190 = vmatpush1.bf16.xpose.msra.mxu0 0
    %1191 = vmatprep.subr.bf16.mxu0 0
    %1192 = vmatpush1.bf16.xpose.msra.mxu0 0
    %1193 = vmatprep.subr.bf16.mxu0 0
    %1194 = vmatpush1.bf16.xpose.msra.mxu0 0
    %1195 = vmatprep.subr.bf16.mxu0 0
    %1196 = vmatpush1.bf16.xpose.msra.mxu0 0
    %1197 = vmatprep.subr.bf16.mxu0 0
    %1198 = vmatpush1.bf16.xpose.msra.mxu0 0
    %1199 = vmatprep.subr.bf16.mxu0 0
    %1200 = vmatpush1.bf16.xpose.msra.mxu0 0
    %1201 = vmatprep.subr.bf16.mxu0 0
    %1202 = vmatpush1.bf16.xpose.msra.mxu0 0
    %1203 = vmatprep.subr.bf16.mxu0 0
    %1204 = vmatpush1.bf16.xpose.msra.mxu0 0
    %1205 = vmatprep.mubr.bf16.mxu0 0
    %1206 = vmatmul.mubr.bf16.gmra.mrb[0].mxu0 %v1168
    %v1207 = vpop.f32.mrb[0].mxu0
    %v1208 = vadd.f32 0.0, %v1207
    %v1209 = vpop.f32.mrb[0].mxu0
    %v1210 = vpop.f32.mrb[0].mxu0
    %v1211 = vpop.f32.mrb[0].mxu0
    %1212 = vdwg.mxu0
    %1214 = vrot.lane.b32.xlu0 %v943, 112
    %v1215 = vpop.permute.xlu0 %1214
    %1216 = vrot.lane.b32.xlu0 %v945, 112
    %v1217 = vpop.permute.xlu0 %1216
    %v1219 = vsel %vm270, %v1215, 0
    %v1222 = vsel %vm270, %v1217, 0
    %1224 = vmatprep.subr.bf16.mxu0 0
    %1225 = vmatpush1.bf16.xpose.msra.mxu0 %v1222
    %1226 = vmatprep.subr.bf16.mxu0 0
    %1227 = vmatpush1.bf16.xpose.msra.mxu0 0
    %1228 = vmatprep.subr.bf16.mxu0 0
    %1229 = vmatpush1.bf16.xpose.msra.mxu0 0
    %1230 = vmatprep.subr.bf16.mxu0 0
    %1231 = vmatpush1.bf16.xpose.msra.mxu0 0
    %1232 = vmatprep.subr.bf16.mxu0 0
    %1233 = vmatpush1.bf16.xpose.msra.mxu0 0
    %1234 = vmatprep.subr.bf16.mxu0 0
    %1235 = vmatpush1.bf16.xpose.msra.mxu0 0
    %1236 = vmatprep.subr.bf16.mxu0 0
    %1237 = vmatpush1.bf16.xpose.msra.mxu0 0
    %1238 = vmatprep.subr.bf16.mxu0 0
    %1239 = vmatpush1.bf16.xpose.msra.mxu0 0
    %1240 = vmatprep.subr.bf16.mxu0 0
    %1241 = vmatpush1.bf16.xpose.msra.mxu0 0
    %1242 = vmatprep.subr.bf16.mxu0 0
    %1243 = vmatpush1.bf16.xpose.msra.mxu0 0
    %1244 = vmatprep.subr.bf16.mxu0 0
    %1245 = vmatpush1.bf16.xpose.msra.mxu0 0
    %1246 = vmatprep.subr.bf16.mxu0 0
    %1247 = vmatpush1.bf16.xpose.msra.mxu0 0
    %1248 = vmatprep.subr.bf16.mxu0 0
    %1249 = vmatpush1.bf16.xpose.msra.mxu0 0
    %1250 = vmatprep.subr.bf16.mxu0 0
    %1251 = vmatpush1.bf16.xpose.msra.mxu0 0
    %1252 = vmatprep.subr.bf16.mxu0 0
    %1253 = vmatpush1.bf16.xpose.msra.mxu0 0
    %1254 = vmatprep.subr.bf16.mxu0 0
    %1255 = vmatpush1.bf16.xpose.msra.mxu0 0
    %1256 = vmatprep.mubr.bf16.mxu0 0
    %1257 = vmatmul.mubr.bf16.gmra.mrb[0].mxu0 %v1219
    %v1258 = vpop.f32.mrb[0].mxu0
    %v1259 = vadd.f32 0.0, %v1258
    %v1260 = vpop.f32.mrb[0].mxu0
    %v1261 = vpop.f32.mrb[0].mxu0
    %v1262 = vpop.f32.mrb[0].mxu0
    %1263 = vdwg.mxu0
    %v1264 = vmul.f32 %v1208, 0.25
    %v1265 = vmul.f32 %v1259, 0.25
    %v1266 = vsel %vm368, %v1264, -inf
    %1267 = vmax.xlane.f32.xlu0 %v1266
    %v1268 = vpop.xlane.xlu0 %1267
    %v1269 = vsel %vm368, %v1265, -inf
    %1270 = vmax.xlane.f32.xlu0 %v1269
    %v1271 = vpop.xlane.xlu0 %1270
    %v1272 = vsub.f32 %v1264, %v1268
    %v1273 = vsub.f32 %v1265, %v1271
    %v1274 = vmul.f32 %v1272, 1.442695
    %v1275 = vpow.pop %v1274
    %v1276 = vmul.f32 %v1273, 1.442695
    %v1277 = vpow.pop %v1276
    %v1278 = vsel %vm368, %v1275, 0.0
    %1279 = vadd.xlane.f32.xlu0 %v1278
    %v1280 = vpop.xlane.xlu0 %1279
    %v1281 = vsel %vm368, %v1277, 0.0
    %1282 = vadd.xlane.f32.xlu0 %v1281
    %v1283 = vpop.xlane.xlu0 %1282
    %v1284 = vrcp.pop %v1280
    %v1285 = vrcp.pop %v1283
    %v1286 = vmul.f32 %v1275, %v1284
    %v1287 = vmul.f32 %v1277, %v1285
    %v1288 = vpack.c.bf16 %v1286, %v1286
    %v1289 = vpack.c.bf16 %v1287, %v1287
    %1290 = vrot.lane.b32.xlu0 %v944, 80
    %v1291 = vpop.permute.xlu0 %1290
    %v1293 = vsel %vm368, %v1288, 0
    %v1296 = vsel %vm398, %v1291, 0
    %1298 = vmatprep.subr.bf16.mxu0 0
    %1299 = vmatpush1.bf16.msra.mxu0 %v1296
    %1300 = vmatprep.subr.bf16.mxu0 0
    %1301 = vmatpush1.bf16.msra.mxu0 0
    %1302 = vmatprep.subr.bf16.mxu0 0
    %1303 = vmatpush1.bf16.msra.mxu0 0
    %1304 = vmatprep.subr.bf16.mxu0 0
    %1305 = vmatpush1.bf16.msra.mxu0 0
    %1306 = vmatprep.subr.bf16.mxu0 0
    %1307 = vmatpush1.bf16.msra.mxu0 0
    %1308 = vmatprep.subr.bf16.mxu0 0
    %1309 = vmatpush1.bf16.msra.mxu0 0
    %1310 = vmatprep.subr.bf16.mxu0 0
    %1311 = vmatpush1.bf16.msra.mxu0 0
    %1312 = vmatprep.subr.bf16.mxu0 0
    %1313 = vmatpush1.bf16.msra.mxu0 0
    %1314 = vmatprep.subr.bf16.mxu0 0
    %1315 = vmatpush1.bf16.msra.mxu0 0
    %1316 = vmatprep.subr.bf16.mxu0 0
    %1317 = vmatpush1.bf16.msra.mxu0 0
    %1318 = vmatprep.subr.bf16.mxu0 0
    %1319 = vmatpush1.bf16.msra.mxu0 0
    %1320 = vmatprep.subr.bf16.mxu0 0
    %1321 = vmatpush1.bf16.msra.mxu0 0
    %1322 = vmatprep.subr.bf16.mxu0 0
    %1323 = vmatpush1.bf16.msra.mxu0 0
    %1324 = vmatprep.subr.bf16.mxu0 0
    %1325 = vmatpush1.bf16.msra.mxu0 0
    %1326 = vmatprep.subr.bf16.mxu0 0
    %1327 = vmatpush1.bf16.msra.mxu0 0
    %1328 = vmatprep.subr.bf16.mxu0 0
    %1329 = vmatpush1.bf16.msra.mxu0 0
    %1330 = vmatprep.mubr.bf16.mxu0 0
    %1331 = vmatmul.mubr.bf16.gmra.mrb[0].mxu0 %v1293
    %v1332 = vpop.f32.mrb[0].mxu0
    %v1333 = vadd.f32 0.0, %v1332
    %v1334 = vpop.f32.mrb[0].mxu0
    %v1335 = vpop.f32.mrb[0].mxu0
    %v1336 = vpop.f32.mrb[0].mxu0
    %1337 = vdwg.mxu0
    %1338 = vrot.lane.b32.xlu0 %v945, 80
    %v1339 = vpop.permute.xlu0 %1338
    %v1341 = vsel %vm368, %v1289, 0
    %v1344 = vsel %vm398, %v1339, 0
    %1346 = vmatprep.subr.bf16.mxu0 0
    %1347 = vmatpush1.bf16.msra.mxu0 %v1344
    %1348 = vmatprep.subr.bf16.mxu0 0
    %1349 = vmatpush1.bf16.msra.mxu0 0
    %1350 = vmatprep.subr.bf16.mxu0 0
    %1351 = vmatpush1.bf16.msra.mxu0 0
    %1352 = vmatprep.subr.bf16.mxu0 0
    %1353 = vmatpush1.bf16.msra.mxu0 0
    %1354 = vmatprep.subr.bf16.mxu0 0
    %1355 = vmatpush1.bf16.msra.mxu0 0
    %1356 = vmatprep.subr.bf16.mxu0 0
    %1357 = vmatpush1.bf16.msra.mxu0 0
    %1358 = vmatprep.subr.bf16.mxu0 0
    %1359 = vmatpush1.bf16.msra.mxu0 0
    %1360 = vmatprep.subr.bf16.mxu0 0
    %1361 = vmatpush1.bf16.msra.mxu0 0
    %1362 = vmatprep.subr.bf16.mxu0 0
    %1363 = vmatpush1.bf16.msra.mxu0 0
    %1364 = vmatprep.subr.bf16.mxu0 0
    %1365 = vmatpush1.bf16.msra.mxu0 0
    %1366 = vmatprep.subr.bf16.mxu0 0
    %1367 = vmatpush1.bf16.msra.mxu0 0
    %1368 = vmatprep.subr.bf16.mxu0 0
    %1369 = vmatpush1.bf16.msra.mxu0 0
    %1370 = vmatprep.subr.bf16.mxu0 0
    %1371 = vmatpush1.bf16.msra.mxu0 0
    %1372 = vmatprep.subr.bf16.mxu0 0
    %1373 = vmatpush1.bf16.msra.mxu0 0
    %1374 = vmatprep.subr.bf16.mxu0 0
    %1375 = vmatpush1.bf16.msra.mxu0 0
    %1376 = vmatprep.subr.bf16.mxu0 0
    %1377 = vmatpush1.bf16.msra.mxu0 0
    %1378 = vmatprep.mubr.bf16.mxu0 0
    %1379 = vmatmul.mubr.bf16.gmra.mrb[0].mxu0 %v1341
    %v1380 = vpop.f32.mrb[0].mxu0
    %v1381 = vadd.f32 0.0, %v1380
    %v1382 = vpop.f32.mrb[0].mxu0
    %v1383 = vpop.f32.mrb[0].mxu0
    %v1384 = vpop.f32.mrb[0].mxu0
    %1385 = vdwg.mxu0
    %1388 = vrot.lane.b32.xlu0 %v1333, 16
    %v1389 = vpop.permute.xlu0 %1388
    %1390 = vrot.lane.b32.xlu0 %v1381, 16
    %v1391 = vpop.permute.xlu0 %1390
    %v1394 = vsel %vm270, %v1108, %v1389
    %v1395 = vsel %vm270, %v1157, %v1391
    %v1396 = vpack.c.bf16 %v1395, %v1394
    %v1397 = vld [vmem:[#allocation2 + $0xd0] sm:$0xf]
    %v1398 = vld [vmem:[#allocation2 + $0xd4] sm:$0xf]
    %v1399 = vld [vmem:[#allocation2 + $0xd8] sm:$0xf]
    %v1400 = vld [vmem:[#allocation2 + $0xdc] sm:$0xf]
    %v1401 = vld [vmem:[%s3 + $0x6] sm:$0x1]
    %v1402 = vlaneseq
    %v1403 = vshrl.u32 %v1402, 7
    %v1404 = vsub.s32 0, %v1403
    %v1405 = vrot.slane %v1401, %v1404
    %v1410 = vunpack.c.l.b16 %v1397
    %v1411 = vunpack.c.l.b16 %v1398
    %v1412 = vunpack.c.l.b16 %v1399
    %v1413 = vunpack.c.l.b16 %v1400
    %v1414 = vpack.c.b16 %v1411, %v1410
    %v1415 = vpack.c.b16 %v1413, %v1412
    %v1419 = vsel %vm744, %v1396, 0
    %1421 = vmatprep.subr.bf16.mxu0 0
    %1422 = vmatpush1.bf16.msra.mxu0 %v1414
    %1423 = vmatprep.subr.bf16.mxu0 0
    %1424 = vmatpush1.bf16.msra.mxu0 %v1415
    %1425 = vmatprep.subr.bf16.mxu0 0
    %1426 = vmatpush1.bf16.msra.mxu0 0
    %1427 = vmatprep.subr.bf16.mxu0 0
    %1428 = vmatpush1.bf16.msra.mxu0 0
    %1429 = vmatprep.subr.bf16.mxu0 0
    %1430 = vmatpush1.bf16.msra.mxu0 0
    %1431 = vmatprep.subr.bf16.mxu0 0
    %1432 = vmatpush1.bf16.msra.mxu0 0
    %1433 = vmatprep.subr.bf16.mxu0 0
    %1434 = vmatpush1.bf16.msra.mxu0 0
    %1435 = vmatprep.subr.bf16.mxu0 0
    %1436 = vmatpush1.bf16.msra.mxu0 0
    %1437 = vmatprep.subr.bf16.mxu0 0
    %1438 = vmatpush1.bf16.msra.mxu0 0
    %1439 = vmatprep.subr.bf16.mxu0 0
    %1440 = vmatpush1.bf16.msra.mxu0 0
    %1441 = vmatprep.subr.bf16.mxu0 0
    %1442 = vmatpush1.bf16.msra.mxu0 0
    %1443 = vmatprep.subr.bf16.mxu0 0
    %1444 = vmatpush1.bf16.msra.mxu0 0
    %1445 = vmatprep.subr.bf16.mxu0 0
    %1446 = vmatpush1.bf16.msra.mxu0 0
    %1447 = vmatprep.subr.bf16.mxu0 0
    %1448 = vmatpush1.bf16.msra.mxu0 0
    %1449 = vmatprep.subr.bf16.mxu0 0
    %1450 = vmatpush1.bf16.msra.mxu0 0
    %1451 = vmatprep.subr.bf16.mxu0 0
    %1452 = vmatpush1.bf16.msra.mxu0 0
    %1453 = vmatprep.mubr.bf16.mxu0 0
    %1454 = vmatmul.mubr.bf16.gmra.mrb[0].mxu0 %v1419
    %v1455 = vpop.f32.mrb[0].mxu0
    %v1456 = vadd.f32 %v1405, %v1455
    %v1457 = vpop.f32.mrb[0].mxu0
    %v1458 = vpop.f32.mrb[0].mxu0
    %v1459 = vadd.f32 %v1405, %v1458
    %v1460 = vpop.f32.mrb[0].mxu0
    %1461 = vdwg.mxu0
    %v1462 = vadd.f32 %v829, %v1456
    %v1463 = vadd.f32 %v830, %v1459
    %1464 = vadd.xlane.f32.xlu0 %v1462
    %v1465 = vpop.xlane.xlu0 %1464
    %1466 = vadd.xlane.f32.xlu0 %v1463
    %v1467 = vpop.xlane.xlu0 %1466
    %v1468 = vmul.f32 %v1465, 0.03125
    %v1469 = vmul.f32 %v1467, 0.03125
    %v1470 = vmul.f32 %v1462, %v1462
    %v1471 = vmul.f32 %v1463, %v1463
    %1472 = vadd.xlane.f32.xlu0 %v1470
    %v1473 = vpop.xlane.xlu0 %1472
    %1474 = vadd.xlane.f32.xlu0 %v1471
    %v1475 = vpop.xlane.xlu0 %1474
    %v1476 = vmul.f32 %v1473, 0.03125
    %v1477 = vmul.f32 %v1475, 0.03125
    %v1478 = vmul.f32 %v1468, %v1468
    %v1479 = vmul.f32 %v1469, %v1469
    %v1480 = vsub.f32 %v1476, %v1478
    %v1481 = vsub.f32 %v1477, %v1479
    %v1482 = vsub.f32 %v1462, %v1468
    %v1483 = vsub.f32 %v1463, %v1469
    %v1484 = vadd.f32 %v1480, 1e-05
    %v1485 = vadd.f32 %v1481, 1e-05
    %v1486 = vrsqrt.pop %v1484
    %v1487 = vrsqrt.pop %v1485
    %v1488 = vmul.f32 %v1482, %v1486
    %v1489 = vmul.f32 %v1483, %v1487
    %v1490 = vld [vmem:[%s3 + $0x7] sm:$0x1]
    %v1491 = vlaneseq
    %v1492 = vshrl.u32 %v1491, 7
    %v1493 = vsub.s32 0, %v1492
    %v1494 = vrot.slane %v1490, %v1493
    %v1495 = vmul.f32 %v1488, %v1494
    %v1496 = vmul.f32 %v1489, %v1494
    %v1497 = vld [vmem:[%s3 + $0x8] sm:$0x1]
    %v1498 = vlaneseq
    %v1499 = vshrl.u32 %v1498, 7
    %v1500 = vsub.s32 0, %v1499
    %v1501 = vrot.slane %v1497, %v1500
    %v1502 = vadd.f32 %v1495, %v1501
    %v1503 = vadd.f32 %v1496, %v1501
    %v1504 = vpack.c.bf16 %v1503, %v1502
    %v1505 = vld [vmem:[#allocation2 + $0xe0] sm:$0xf]
    %v1506 = vld [vmem:[#allocation2 + $0xe4] sm:$0xf]
    %v1507 = vld [vmem:[#allocation2 + $0xe8] sm:$0xf]
    %v1508 = vld [vmem:[#allocation2 + $0xec] sm:$0xf]
    %v1509 = vld [vmem:[#allocation2 + $0xf0] sm:$0xf]
    %v1510 = vld [vmem:[#allocation2 + $0xf4] sm:$0xf]
    %v1511 = vld [vmem:[#allocation2 + $0xf8] sm:$0xf]
    %v1512 = vld [vmem:[#allocation2 + $0xfc] sm:$0xf]
    %v1513 = vld [vmem:[#allocation2 + $0x100] sm:$0xf]
    %v1514 = vld [vmem:[#allocation2 + $0x104] sm:$0xf]
    %v1515 = vld [vmem:[#allocation2 + $0x108] sm:$0xf]
    %v1516 = vld [vmem:[#allocation2 + $0x10c] sm:$0xf]
    %v1517 = vld [vmem:[#allocation2 + $0x110] sm:$0xf]
    %v1518 = vld [vmem:[#allocation2 + $0x114] sm:$0xf]
    %v1519 = vld [vmem:[#allocation2 + $0x118] sm:$0xf]
    %v1520 = vld [vmem:[#allocation2 + $0x11c] sm:$0xf]
    %v1521 = vld [vmem:[%s3 + $0x9] sm:$0x1]
    %v1522 = vlaneseq
    %v1523 = vshrl.u32 %v1522, 7
    %v1524 = vsub.s32 0, %v1523
    %v1525 = vrot.slane %v1521, %v1524
    %v1542 = vunpack.c.l.b16 %v1505
    %v1543 = vunpack.c.l.b16 %v1506
    %v1544 = vunpack.c.l.b16 %v1507
    %v1545 = vunpack.c.l.b16 %v1508
    %v1546 = vunpack.c.l.b16 %v1509
    %v1547 = vunpack.c.l.b16 %v1510
    %v1548 = vunpack.c.l.b16 %v1511
    %v1549 = vunpack.c.l.b16 %v1512
    %v1550 = vunpack.c.l.b16 %v1513
    %v1551 = vunpack.c.l.b16 %v1514
    %v1552 = vunpack.c.l.b16 %v1515
    %v1553 = vunpack.c.l.b16 %v1516
    %v1554 = vunpack.c.l.b16 %v1517
    %v1555 = vunpack.c.l.b16 %v1518
    %v1556 = vunpack.c.l.b16 %v1519
    %v1557 = vunpack.c.l.b16 %v1520
    %v1558 = vpack.c.b16 %v1543, %v1542
    %v1559 = vpack.c.b16 %v1545, %v1544
    %v1560 = vpack.c.b16 %v1547, %v1546
    %v1561 = vpack.c.b16 %v1549, %v1548
    %v1562 = vpack.c.b16 %v1551, %v1550
    %v1563 = vpack.c.b16 %v1553, %v1552
    %v1564 = vpack.c.b16 %v1555, %v1554
    %v1565 = vpack.c.b16 %v1557, %v1556
    %1574 = vmatprep.subr.bf16.mxu0 0
    %1575 = vmatpush1.bf16.msra.mxu0 %v1558
    %1576 = vmatprep.subr.bf16.mxu0 0
    %1577 = vmatpush1.bf16.msra.mxu0 %v1559
    %1578 = vmatprep.subr.bf16.mxu0 0
    %1579 = vmatpush1.bf16.msra.mxu0 %v1560
    %1580 = vmatprep.subr.bf16.mxu0 0
    %1581 = vmatpush1.bf16.msra.mxu0 %v1561
    %1582 = vmatprep.subr.bf16.mxu0 0
    %1583 = vmatpush1.bf16.msra.mxu0 %v1562
    %1584 = vmatprep.subr.bf16.mxu0 0
    %1585 = vmatpush1.bf16.msra.mxu0 %v1563
    %1586 = vmatprep.subr.bf16.mxu0 0
    %1587 = vmatpush1.bf16.msra.mxu0 %v1564
    %1588 = vmatprep.subr.bf16.mxu0 0
    %1589 = vmatpush1.bf16.msra.mxu0 %v1565
    %1590 = vmatprep.subr.bf16.mxu0 0
    %1591 = vmatpush1.bf16.msra.mxu0 0
    %1592 = vmatprep.subr.bf16.mxu0 0
    %1593 = vmatpush1.bf16.msra.mxu0 0
    %1594 = vmatprep.subr.bf16.mxu0 0
    %1595 = vmatpush1.bf16.msra.mxu0 0
    %1596 = vmatprep.subr.bf16.mxu0 0
    %1597 = vmatpush1.bf16.msra.mxu0 0
    %1598 = vmatprep.subr.bf16.mxu0 0
    %1599 = vmatpush1.bf16.msra.mxu0 0
    %1600 = vmatprep.subr.bf16.mxu0 0
    %1601 = vmatpush1.bf16.msra.mxu0 0
    %1602 = vmatprep.subr.bf16.mxu0 0
    %1603 = vmatpush1.bf16.msra.mxu0 0
    %1604 = vmatprep.subr.bf16.mxu0 0
    %1605 = vmatpush1.bf16.msra.mxu0 0
    %1606 = vmatprep.mubr.bf16.mxu0 0
    %1607 = vmatmul.mubr.bf16.gmra.mrb[0].mxu0 %v1504
    %v1608 = vpop.f32.mrb[0].mxu0
    %v1609 = vadd.f32 %v1525, %v1608
    %v1610 = vpop.f32.mrb[0].mxu0
    %v1611 = vpop.f32.mrb[0].mxu0
    %v1612 = vadd.f32 %v1525, %v1611
    %v1613 = vpop.f32.mrb[0].mxu0
    %1614 = vdwg.mxu0
    %v1615 = vmax.f32 %v1609, 0.0
    %v1616 = vmax.f32 %v1612, 0.0
    %v1617 = vpack.c.bf16 %v1616, %v1615
    %v1618 = vld [vmem:[#allocation2 + $0x120] sm:$0xf]
    %v1619 = vld [vmem:[#allocation2 + $0x124] sm:$0xf]
    %v1620 = vld [vmem:[#allocation2 + $0x128] sm:$0xf]
    %v1621 = vld [vmem:[#allocation2 + $0x12c] sm:$0xf]
    %v1622 = vld [vmem:[#allocation2 + $0x130] sm:$0xf]
    %v1623 = vld [vmem:[#allocation2 + $0x134] sm:$0xf]
    %v1624 = vld [vmem:[#allocation2 + $0x138] sm:$0xf]
    %v1625 = vld [vmem:[#allocation2 + $0x13c] sm:$0xf]
    %v1626 = vld [vmem:[#allocation2 + $0x140] sm:$0xf]
    %v1627 = vld [vmem:[#allocation2 + $0x144] sm:$0xf]
    %v1628 = vld [vmem:[#allocation2 + $0x148] sm:$0xf]
    %v1629 = vld [vmem:[#allocation2 + $0x14c] sm:$0xf]
    %v1630 = vld [vmem:[#allocation2 + $0x150] sm:$0xf]
    %v1631 = vld [vmem:[#allocation2 + $0x154] sm:$0xf]
    %v1632 = vld [vmem:[#allocation2 + $0x158] sm:$0xf]
    %v1633 = vld [vmem:[#allocation2 + $0x15c] sm:$0xf]
    %v1634 = vld [vmem:[%s3 + $0xa] sm:$0x1]
    %v1635 = vlaneseq
    %v1636 = vshrl.u32 %v1635, 7
    %v1637 = vsub.s32 0, %v1636
    %v1638 = vrot.slane %v1634, %v1637
    %v1655 = vunpack.c.l.b16 %v1618
    %v1656 = vunpack.c.l.b16 %v1619
    %v1657 = vunpack.c.l.b16 %v1620
    %v1658 = vunpack.c.l.b16 %v1621
    %v1659 = vunpack.c.l.b16 %v1622
    %v1660 = vunpack.c.l.b16 %v1623
    %v1661 = vunpack.c.l.b16 %v1624
    %v1662 = vunpack.c.l.b16 %v1625
    %v1663 = vunpack.c.l.b16 %v1626
    %v1664 = vunpack.c.l.b16 %v1627
    %v1665 = vunpack.c.l.b16 %v1628
    %v1666 = vunpack.c.l.b16 %v1629
    %v1667 = vunpack.c.l.b16 %v1630
    %v1668 = vunpack.c.l.b16 %v1631
    %v1669 = vunpack.c.l.b16 %v1632
    %v1670 = vunpack.c.l.b16 %v1633
    %v1671 = vpack.c.b16 %v1656, %v1655
    %v1672 = vpack.c.b16 %v1658, %v1657
    %v1673 = vpack.c.b16 %v1660, %v1659
    %v1674 = vpack.c.b16 %v1662, %v1661
    %v1675 = vpack.c.b16 %v1664, %v1663
    %v1676 = vpack.c.b16 %v1666, %v1665
    %v1677 = vpack.c.b16 %v1668, %v1667
    %v1678 = vpack.c.b16 %v1670, %v1669
    %1687 = vmatprep.subr.bf16.mxu0 0
    %1688 = vmatpush1.bf16.msra.mxu0 %v1671
    %1689 = vmatprep.subr.bf16.mxu0 0
    %1690 = vmatpush1.bf16.msra.mxu0 %v1672
    %1691 = vmatprep.subr.bf16.mxu0 0
    %1692 = vmatpush1.bf16.msra.mxu0 %v1673
    %1693 = vmatprep.subr.bf16.mxu0 0
    %1694 = vmatpush1.bf16.msra.mxu0 %v1674
    %1695 = vmatprep.subr.bf16.mxu0 0
    %1696 = vmatpush1.bf16.msra.mxu0 %v1675
    %1697 = vmatprep.subr.bf16.mxu0 0
    %1698 = vmatpush1.bf16.msra.mxu0 %v1676
    %1699 = vmatprep.subr.bf16.mxu0 0
    %1700 = vmatpush1.bf16.msra.mxu0 %v1677
    %1701 = vmatprep.subr.bf16.mxu0 0
    %1702 = vmatpush1.bf16.msra.mxu0 %v1678
    %1703 = vmatprep.subr.bf16.mxu0 0
    %1704 = vmatpush1.bf16.msra.mxu0 0
    %1705 = vmatprep.subr.bf16.mxu0 0
    %1706 = vmatpush1.bf16.msra.mxu0 0
    %1707 = vmatprep.subr.bf16.mxu0 0
    %1708 = vmatpush1.bf16.msra.mxu0 0
    %1709 = vmatprep.subr.bf16.mxu0 0
    %1710 = vmatpush1.bf16.msra.mxu0 0
    %1711 = vmatprep.subr.bf16.mxu0 0
    %1712 = vmatpush1.bf16.msra.mxu0 0
    %1713 = vmatprep.subr.bf16.mxu0 0
    %1714 = vmatpush1.bf16.msra.mxu0 0
    %1715 = vmatprep.subr.bf16.mxu0 0
    %1716 = vmatpush1.bf16.msra.mxu0 0
    %1717 = vmatprep.subr.bf16.mxu0 0
    %1718 = vmatpush1.bf16.msra.mxu0 0
    %1719 = vmatprep.mubr.bf16.mxu0 0
    %1720 = vmatmul.mubr.bf16.gmra.mrb[0].mxu0 %v1617
    %v1721 = vpop.f32.mrb[0].mxu0
    %v1722 = vadd.f32 %v1638, %v1721
    %v1723 = vpop.f32.mrb[0].mxu0
    %v1724 = vpop.f32.mrb[0].mxu0
    %v1725 = vadd.f32 %v1638, %v1724
    %v1726 = vpop.f32.mrb[0].mxu0
    %1727 = vdwg.mxu0
    %v1728 = vadd.f32 %v1502, %v1722
    %v1729 = vadd.f32 %v1503, %v1725
    %1730 = vadd.xlane.f32.xlu0 %v1728
    %v1731 = vpop.xlane.xlu0 %1730
    %1732 = vadd.xlane.f32.xlu0 %v1729
    %v1733 = vpop.xlane.xlu0 %1732
    %v1734 = vmul.f32 %v1731, 0.03125
    %v1735 = vmul.f32 %v1733, 0.03125
    %v1736 = vmul.f32 %v1728, %v1728
    %v1737 = vmul.f32 %v1729, %v1729
    %1738 = vadd.xlane.f32.xlu0 %v1736
    %v1739 = vpop.xlane.xlu0 %1738
    %1740 = vadd.xlane.f32.xlu0 %v1737
    %v1741 = vpop.xlane.xlu0 %1740
    %v1742 = vmul.f32 %v1739, 0.03125
    %v1743 = vmul.f32 %v1741, 0.03125
    %v1744 = vmul.f32 %v1734, %v1734
    %v1745 = vmul.f32 %v1735, %v1735
    %v1746 = vsub.f32 %v1742, %v1744
    %v1747 = vsub.f32 %v1743, %v1745
    %v1748 = vsub.f32 %v1728, %v1734
    %v1749 = vsub.f32 %v1729, %v1735
    %v1750 = vadd.f32 %v1746, 1e-05
    %v1751 = vadd.f32 %v1747, 1e-05
    %v1752 = vrsqrt.pop %v1750
    %v1753 = vrsqrt.pop %v1751
    %v1754 = vmul.f32 %v1748, %v1752
    %v1755 = vmul.f32 %v1749, %v1753
    %v1756 = vld [vmem:[%s3 + $0xb] sm:$0x1]
    %v1757 = vlaneseq
    %v1758 = vshrl.u32 %v1757, 7
    %v1759 = vsub.s32 0, %v1758
    %v1760 = vrot.slane %v1756, %v1759
    %v1761 = vmul.f32 %v1754, %v1760
    %v1762 = vmul.f32 %v1755, %v1760
    %v1763 = vld [vmem:[%s3 + $0xc] sm:$0x1]
    %v1764 = vlaneseq
    %v1765 = vshrl.u32 %v1764, 7
    %v1766 = vsub.s32 0, %v1765
    %v1767 = vrot.slane %v1763, %v1766
    %v1768 = vadd.f32 %v1761, %v1767
    %v1769 = vadd.f32 %v1762, %v1767
    %v1770 = vpack.c.bf16 %v1769, %v1768
    %v1771 = vld [vmem:[#allocation2 + $0x230] sm:$0xf]
    %v1772 = vld [vmem:[#allocation2 + $0x234] sm:$0xf]
    %v1773 = vld [vmem:[#allocation2 + $0x238] sm:$0xf]
    %v1774 = vld [vmem:[#allocation2 + $0x23c] sm:$0xf]
    %v1775 = vld [vmem:[#allocation2 + $0x240] sm:$0xf]
    %v1776 = vld [vmem:[#allocation2 + $0x244] sm:$0xf]
    %v1777 = vld [vmem:[#allocation2 + $0x248] sm:$0xf]
    %v1778 = vld [vmem:[#allocation2 + $0x24c] sm:$0xf]
    %v1779 = vld [vmem:[#allocation2 + $0x250] sm:$0xf]
    %v1780 = vld [vmem:[#allocation2 + $0x254] sm:$0xf]
    %v1781 = vld [vmem:[#allocation2 + $0x258] sm:$0xf]
    %v1782 = vld [vmem:[#allocation2 + $0x25c] sm:$0xf]
    %v1783 = vld [vmem:[#allocation2 + $0x260] sm:$0xf]
    %v1784 = vld [vmem:[#allocation2 + $0x264] sm:$0xf]
    %v1785 = vld [vmem:[#allocation2 + $0x268] sm:$0xf]
    %v1786 = vld [vmem:[#allocation2 + $0x26c] sm:$0xf]
    %v1787 = vld [vmem:[%s3 + $0x15] sm:$0x1]
    %v1788 = vlaneseq
    %v1789 = vshrl.u32 %v1788, 7
    %v1790 = vsub.s32 0, %v1789
    %v1791 = vrot.slane %v1787, %v1790
    %v1808 = vunpack.c.l.b16 %v1771
    %v1809 = vunpack.c.l.b16 %v1772
    %v1810 = vunpack.c.l.b16 %v1773
    %v1811 = vunpack.c.l.b16 %v1774
    %v1812 = vunpack.c.l.b16 %v1775
    %v1813 = vunpack.c.l.b16 %v1776
    %v1814 = vunpack.c.l.b16 %v1777
    %v1815 = vunpack.c.l.b16 %v1778
    %v1816 = vunpack.c.l.b16 %v1779
    %v1817 = vunpack.c.l.b16 %v1780
    %v1818 = vunpack.c.l.b16 %v1781
    %v1819 = vunpack.c.l.b16 %v1782
    %v1820 = vunpack.c.l.b16 %v1783
    %v1821 = vunpack.c.l.b16 %v1784
    %v1822 = vunpack.c.l.b16 %v1785
    %v1823 = vunpack.c.l.b16 %v1786
    %v1824 = vpack.c.b16 %v1809, %v1808
    %v1825 = vpack.c.b16 %v1811, %v1810
    %v1826 = vpack.c.b16 %v1813, %v1812
    %v1827 = vpack.c.b16 %v1815, %v1814
    %v1828 = vpack.c.b16 %v1817, %v1816
    %v1829 = vpack.c.b16 %v1819, %v1818
    %v1830 = vpack.c.b16 %v1821, %v1820
    %v1831 = vpack.c.b16 %v1823, %v1822
    %1840 = vmatprep.subr.bf16.mxu0 0
    %1841 = vmatpush1.bf16.msra.mxu0 %v1824
    %1842 = vmatprep.subr.bf16.mxu0 0
    %1843 = vmatpush1.bf16.msra.mxu0 %v1825
    %1844 = vmatprep.subr.bf16.mxu0 0
    %1845 = vmatpush1.bf16.msra.mxu0 %v1826
    %1846 = vmatprep.subr.bf16.mxu0 0
    %1847 = vmatpush1.bf16.msra.mxu0 %v1827
    %1848 = vmatprep.subr.bf16.mxu0 0
    %1849 = vmatpush1.bf16.msra.mxu0 %v1828
    %1850 = vmatprep.subr.bf16.mxu0 0
    %1851 = vmatpush1.bf16.msra.mxu0 %v1829
    %1852 = vmatprep.subr.bf16.mxu0 0
    %1853 = vmatpush1.bf16.msra.mxu0 %v1830
    %1854 = vmatprep.subr.bf16.mxu0 0
    %1855 = vmatpush1.bf16.msra.mxu0 %v1831
    %1856 = vmatprep.subr.bf16.mxu0 0
    %1857 = vmatpush1.bf16.msra.mxu0 0
    %1858 = vmatprep.subr.bf16.mxu0 0
    %1859 = vmatpush1.bf16.msra.mxu0 0
    %1860 = vmatprep.subr.bf16.mxu0 0
    %1861 = vmatpush1.bf16.msra.mxu0 0
    %1862 = vmatprep.subr.bf16.mxu0 0
    %1863 = vmatpush1.bf16.msra.mxu0 0
    %1864 = vmatprep.subr.bf16.mxu0 0
    %1865 = vmatpush1.bf16.msra.mxu0 0
    %1866 = vmatprep.subr.bf16.mxu0 0
    %1867 = vmatpush1.bf16.msra.mxu0 0
    %1868 = vmatprep.subr.bf16.mxu0 0
    %1869 = vmatpush1.bf16.msra.mxu0 0
    %1870 = vmatprep.subr.bf16.mxu0 0
    %1871 = vmatpush1.bf16.msra.mxu0 0
    %1872 = vmatprep.mubr.bf16.mxu0 0
    %1873 = vmatmul.mubr.bf16.gmra.mrb[0].mxu0 %v1770
    %v1874 = vpop.f32.mrb[0].mxu0
    %v1875 = vadd.f32 %v1791, %v1874
    %v1876 = vpop.f32.mrb[0].mxu0
    %v1877 = vpop.f32.mrb[0].mxu0
    %v1878 = vadd.f32 %v1791, %v1877
    %v1879 = vpop.f32.mrb[0].mxu0
    %1880 = vdwg.mxu0
    %vm1881 = vcmask 7168
    %v1882 = vsel %vm1881, %v1875, 0.0
    %v1883 = vsel %vm1881, %v1878, 0.0
    %v1884 = vadd.f32 %v1882, %v1883
    %1885 = vadd.xlane.f32.xlu0 %v1884
    %v1886 = vpop.xlane.xlu0 %1885
    %v1887 = vrot.slane %v1886, 4
    %v1888 = vadd.f32 %v1886, %v1887
    %v1889 = vrot.slane %v1888, 2
    %v1890 = vadd.f32 %v1888, %v1889
    %v1891 = vrot.slane %v1890, 1
    %v1892 = vadd.f32 %v1890, %v1891
    %s1893 = vtos %v1892
    %v1894 = vrcp.pop 16.0
    %s1895 = vtos %v1894
    %s1896 = smul.f32 %s1893, %s1895
    %v1897 = vsub.f32 %v1875, %v1875
    %v1898 = vsub.f32 %v1878, %v1878
    %v1899 = vmul.f32 %v1897, 1.442695
    %v1900 = vpow.pop %v1899
    %v1901 = vmul.f32 %v1898, 1.442695
    %v1902 = vpow.pop %v1901
    %v1903 = vadd.f32 %v1900, 0.0
    %v1904 = vadd.f32 %v1902, 0.0
    %v1905 = vrcp.pop %v1903
    %v1906 = vrcp.pop %v1904
    %v1907 = vmul.f32 %v1900, %v1905
    %v1908 = vmul.f32 %v1902, %v1906
    %1911 = vrot.lane.b32.xlu0 %v1907, 127
    %v1912 = vpop.permute.xlu0 %1911
    %1913 = vrot.lane.b32.xlu0 %v1908, 127
    %v1914 = vpop.permute.xlu0 %1913
    %v1917 = vsel %vm1881, %v1912, 0.0
    %v1918 = vsel %vm1881, %v1914, 0.0
    %v1919 = vadd.f32 %v1917, %v1918
    %1920 = vadd.xlane.f32.xlu0 %v1919
    %v1921 = vpop.xlane.xlu0 %1920
    %v1922 = vrot.slane %v1921, 4
    %v1923 = vadd.f32 %v1921, %v1922
    %v1924 = vrot.slane %v1923, 2
    %v1925 = vadd.f32 %v1923, %v1924
    %v1926 = vrot.slane %v1925, 1
    %v1927 = vadd.f32 %v1925, %v1926
    %s1928 = vtos %v1927
    %v1929 = vrcp.pop 16.0
    %s1930 = vtos %v1929
    %s1931 = smul.f32 %s1928, %s1930
    %v1932 = vmul.f32 %v1768, %v1768
    %v1933 = vmul.f32 %v1769, %v1769
    %1934 = vadd.xlane.f32.xlu0 %v1932
    %v1935 = vpop.xlane.xlu0 %1934
    %1936 = vadd.xlane.f32.xlu0 %v1933
    %v1937 = vpop.xlane.xlu0 %1936
    %v1938 = vrsqrt.pop %v1935
    %v1939 = vmul.f32 %v1935, %v1938
    %vm1940 = vcmp.eq.f32.partialorder %v1935, inf
    %v1941 = vsel %vm1940, %v1935, %v1939
    %vm1942 = vcmp.eq.f32.partialorder %v1935, 0.0
    %v1943 = vand.u32 %v1935, 2147483648
    %v1944 = vsel %vm1942, %v1943, %v1941
    %v1945 = vrsqrt.pop %v1937
    %v1946 = vmul.f32 %v1937, %v1945
    %vm1947 = vcmp.eq.f32.partialorder %v1937, inf
    %v1948 = vsel %vm1947, %v1937, %v1946
    %vm1949 = vcmp.eq.f32.partialorder %v1937, 0.0
    %v1950 = vand.u32 %v1937, 2147483648
    %v1951 = vsel %vm1949, %v1950, %v1948
    %v1952 = vsel %vm1881, %v1944, 0.0
    %v1953 = vsel %vm1881, %v1951, 0.0
    %v1954 = vadd.f32 %v1952, %v1953
    %1955 = vadd.xlane.f32.xlu0 %v1954
    %v1956 = vpop.xlane.xlu0 %1955
    %v1957 = vrot.slane %v1956, 4
    %v1958 = vadd.f32 %v1956, %v1957
    %v1959 = vrot.slane %v1958, 2
    %v1960 = vadd.f32 %v1958, %v1959
    %v1961 = vrot.slane %v1960, 1
    %v1962 = vadd.f32 %v1960, %v1961
    %s1963 = vtos %v1962
    %v1964 = vrcp.pop 16.0
    %s1965 = vtos %v1964
    %s1966 = smul.f32 %s1963, %s1965
    %vm1967 = vcmp.eq.s32.totalorder %v153, 0
    %v1968 = vstv %s1896
    %v1969 = vsel %vm1967, %v1968, 0.0
    %vm1970 = vcmp.eq.s32.totalorder %v153, 1
    %v1971 = vstv %s1931
    %v1972 = vsel %vm1970, %v1971, 0.0
    %v1973 = vadd.f32 %v1969, %v1972
    %vm1974 = vcmp.eq.s32.totalorder %v153, 2
    %v1975 = vstv %s1966
    %v1976 = vsel %vm1974, %v1975, 0.0
    %v1977 = vadd.f32 %v1973, %v1976
    %v1978 = vadd.f32 %v1768, %v39
    %v1979 = vadd.f32 %v1769, %v40
    %v1980 = vpack.c.bf16 %v1979, %v1978
    %v1981 = vld [vmem:[#allocation2] sm:$0xf]
    %v1982 = vld [vmem:[#allocation2 + $0x4] sm:$0xf]
    %v1983 = vld [vmem:[#allocation2 + $0x8] sm:$0xf]
    %v1984 = vld [vmem:[#allocation2 + $0xc] sm:$0xf]
    %v1985 = vld [vmem:[#allocation2 + $0x10] sm:$0xf]
    %v1986 = vld [vmem:[#allocation2 + $0x14] sm:$0xf]
    %v1987 = vld [vmem:[#allocation2 + $0x18] sm:$0xf]
    %v1988 = vld [vmem:[#allocation2 + $0x1c] sm:$0xf]
    %v1989 = vld [vmem:[#allocation2 + $0x20] sm:$0xf]
    %v1990 = vld [vmem:[#allocation2 + $0x24] sm:$0xf]
    %v1991 = vld [vmem:[#allocation2 + $0x28] sm:$0xf]
    %v1992 = vld [vmem:[#allocation2 + $0x2c] sm:$0xf]
    %v1993 = vld [vmem:[#allocation2 + $0x30] sm:$0xf]
    %v1994 = vld [vmem:[#allocation2 + $0x34] sm:$0xf]
    %v1995 = vld [vmem:[#allocation2 + $0x38] sm:$0xf]
    %v1996 = vld [vmem:[#allocation2 + $0x3c] sm:$0xf]
    %v1997 = vld [vmem:[%s3] sm:$0x1]
    %v1998 = vlaneseq
    %v1999 = vshrl.u32 %v1998, 7
    %v2000 = vsub.s32 0, %v1999
    %v2001 = vrot.slane %v1997, %v2000
    %v2018 = vunpack.c.l.b16 %v1981
    %v2019 = vunpack.c.l.b16 %v1982
    %v2020 = vunpack.c.l.b16 %v1983
    %v2021 = vunpack.c.l.b16 %v1984
    %v2022 = vunpack.c.l.b16 %v1985
    %v2023 = vunpack.c.l.b16 %v1986
    %v2024 = vunpack.c.l.b16 %v1987
    %v2025 = vunpack.c.l.b16 %v1988
    %v2026 = vunpack.c.l.b16 %v1989
    %v2027 = vunpack.c.l.b16 %v1990
    %v2028 = vunpack.c.l.b16 %v1991
    %v2029 = vunpack.c.l.b16 %v1992
    %v2030 = vunpack.c.l.b16 %v1993
    %v2031 = vunpack.c.l.b16 %v1994
    %v2032 = vunpack.c.l.b16 %v1995
    %v2033 = vunpack.c.l.b16 %v1996
    %v2034 = vpack.c.b16 %v2019, %v2018
    %v2035 = vpack.c.b16 %v2021, %v2020
    %v2036 = vpack.c.b16 %v2023, %v2022
    %v2037 = vpack.c.b16 %v2025, %v2024
    %v2038 = vpack.c.b16 %v2027, %v2026
    %v2039 = vpack.c.b16 %v2029, %v2028
    %v2040 = vpack.c.b16 %v2031, %v2030
    %v2041 = vpack.c.b16 %v2033, %v2032
    %2050 = vmatprep.subr.bf16.mxu0 0
    %2051 = vmatpush1.bf16.msra.mxu0 %v2034
    %2052 = vmatprep.subr.bf16.mxu0 0
    %2053 = vmatpush1.bf16.msra.mxu0 %v2035
    %2054 = vmatprep.subr.bf16.mxu0 0
    %2055 = vmatpush1.bf16.msra.mxu0 %v2036
    %2056 = vmatprep.subr.bf16.mxu0 0
    %2057 = vmatpush1.bf16.msra.mxu0 %v2037
    %2058 = vmatprep.subr.bf16.mxu0 0
    %2059 = vmatpush1.bf16.msra.mxu0 %v2038
    %2060 = vmatprep.subr.bf16.mxu0 0
    %2061 = vmatpush1.bf16.msra.mxu0 %v2039
    %2062 = vmatprep.subr.bf16.mxu0 0
    %2063 = vmatpush1.bf16.msra.mxu0 %v2040
    %2064 = vmatprep.subr.bf16.mxu0 0
    %2065 = vmatpush1.bf16.msra.mxu0 %v2041
    %2066 = vmatprep.subr.bf16.mxu0 0
    %2067 = vmatpush1.bf16.msra.mxu0 0
    %2068 = vmatprep.subr.bf16.mxu0 0
    %2069 = vmatpush1.bf16.msra.mxu0 0
    %2070 = vmatprep.subr.bf16.mxu0 0
    %2071 = vmatpush1.bf16.msra.mxu0 0
    %2072 = vmatprep.subr.bf16.mxu0 0
    %2073 = vmatpush1.bf16.msra.mxu0 0
    %2074 = vmatprep.subr.bf16.mxu0 0
    %2075 = vmatpush1.bf16.msra.mxu0 0
    %2076 = vmatprep.subr.bf16.mxu0 0
    %2077 = vmatpush1.bf16.msra.mxu0 0
    %2078 = vmatprep.subr.bf16.mxu0 0
    %2079 = vmatpush1.bf16.msra.mxu0 0
    %2080 = vmatprep.subr.bf16.mxu0 0
    %2081 = vmatpush1.bf16.msra.mxu0 0
    %2082 = vmatprep.mubr.bf16.mxu0 0
    %2083 = vmatmul.mubr.bf16.gmra.mrb[0].mxu0 %v1980
    %v2084 = vpop.f32.mrb[0].mxu0
    %v2085 = vadd.f32 %v2001, %v2084
    %v2086 = vpop.f32.mrb[0].mxu0
    %v2087 = vpop.f32.mrb[0].mxu0
    %v2088 = vadd.f32 %v2001, %v2087
    %v2089 = vpop.f32.mrb[0].mxu0
    %2090 = vdwg.mxu0
    %v2091 = vpack.c.bf16 %v2085, %v2085
    %v2092 = vpack.c.bf16 %v2088, %v2088
    %2094 = vrot.lane.b32.xlu0 %v2091, 96
    %v2095 = vpop.permute.xlu0 %2094
    %v2097 = vsel %vm270, %v2091, 0
    %v2100 = vsel %vm270, %v2095, 0
    %2102 = vmatprep.subr.bf16.mxu0 0
    %2103 = vmatpush1.bf16.xpose.msra.mxu0 %v2100
    %2104 = vmatprep.subr.bf16.mxu0 0
    %2105 = vmatpush1.bf16.xpose.msra.mxu0 0
    %2106 = vmatprep.subr.bf16.mxu0 0
    %2107 = vmatpush1.bf16.xpose.msra.mxu0 0
    %2108 = vmatprep.subr.bf16.mxu0 0
    %2109 = vmatpush1.bf16.xpose.msra.mxu0 0
    %2110 = vmatprep.subr.bf16.mxu0 0
    %2111 = vmatpush1.bf16.xpose.msra.mxu0 0
    %2112 = vmatprep.subr.bf16.mxu0 0
    %2113 = vmatpush1.bf16.xpose.msra.mxu0 0
    %2114 = vmatprep.subr.bf16.mxu0 0
    %2115 = vmatpush1.bf16.xpose.msra.mxu0 0
    %2116 = vmatprep.subr.bf16.mxu0 0
    %2117 = vmatpush1.bf16.xpose.msra.mxu0 0
    %2118 = vmatprep.subr.bf16.mxu0 0
    %2119 = vmatpush1.bf16.xpose.msra.mxu0 0
    %2120 = vmatprep.subr.bf16.mxu0 0
    %2121 = vmatpush1.bf16.xpose.msra.mxu0 0
    %2122 = vmatprep.subr.bf16.mxu0 0
    %2123 = vmatpush1.bf16.xpose.msra.mxu0 0
    %2124 = vmatprep.subr.bf16.mxu0 0
    %2125 = vmatpush1.bf16.xpose.msra.mxu0 0
    %2126 = vmatprep.subr.bf16.mxu0 0
    %2127 = vmatpush1.bf16.xpose.msra.mxu0 0
    %2128 = vmatprep.subr.bf16.mxu0 0
    %2129 = vmatpush1.bf16.xpose.msra.mxu0 0
    %2130 = vmatprep.subr.bf16.mxu0 0
    %2131 = vmatpush1.bf16.xpose.msra.mxu0 0
    %2132 = vmatprep.subr.bf16.mxu0 0
    %2133 = vmatpush1.bf16.xpose.msra.mxu0 0
    %2134 = vmatprep.mubr.bf16.mxu0 0
    %2135 = vmatmul.mubr.bf16.gmra.mrb[0].mxu0 %v2097
    %v2136 = vpop.f32.mrb[0].mxu0
    %v2137 = vadd.f32 0.0, %v2136
    %v2138 = vpop.f32.mrb[0].mxu0
    %v2139 = vpop.f32.mrb[0].mxu0
    %v2140 = vpop.f32.mrb[0].mxu0
    %2141 = vdwg.mxu0
    %2143 = vrot.lane.b32.xlu0 %v2092, 96
    %v2144 = vpop.permute.xlu0 %2143
    %v2146 = vsel %vm270, %v2092, 0
    %v2149 = vsel %vm270, %v2144, 0
    %2151 = vmatprep.subr.bf16.mxu0 0
    %2152 = vmatpush1.bf16.xpose.msra.mxu0 %v2149
    %2153 = vmatprep.subr.bf16.mxu0 0
    %2154 = vmatpush1.bf16.xpose.msra.mxu0 0
    %2155 = vmatprep.subr.bf16.mxu0 0
    %2156 = vmatpush1.bf16.xpose.msra.mxu0 0
    %2157 = vmatprep.subr.bf16.mxu0 0
    %2158 = vmatpush1.bf16.xpose.msra.mxu0 0
    %2159 = vmatprep.subr.bf16.mxu0 0
    %2160 = vmatpush1.bf16.xpose.msra.mxu0 0
    %2161 = vmatprep.subr.bf16.mxu0 0
    %2162 = vmatpush1.bf16.xpose.msra.mxu0 0
    %2163 = vmatprep.subr.bf16.mxu0 0
    %2164 = vmatpush1.bf16.xpose.msra.mxu0 0
    %2165 = vmatprep.subr.bf16.mxu0 0
    %2166 = vmatpush1.bf16.xpose.msra.mxu0 0
    %2167 = vmatprep.subr.bf16.mxu0 0
    %2168 = vmatpush1.bf16.xpose.msra.mxu0 0
    %2169 = vmatprep.subr.bf16.mxu0 0
    %2170 = vmatpush1.bf16.xpose.msra.mxu0 0
    %2171 = vmatprep.subr.bf16.mxu0 0
    %2172 = vmatpush1.bf16.xpose.msra.mxu0 0
    %2173 = vmatprep.subr.bf16.mxu0 0
    %2174 = vmatpush1.bf16.xpose.msra.mxu0 0
    %2175 = vmatprep.subr.bf16.mxu0 0
    %2176 = vmatpush1.bf16.xpose.msra.mxu0 0
    %2177 = vmatprep.subr.bf16.mxu0 0
    %2178 = vmatpush1.bf16.xpose.msra.mxu0 0
    %2179 = vmatprep.subr.bf16.mxu0 0
    %2180 = vmatpush1.bf16.xpose.msra.mxu0 0
    %2181 = vmatprep.subr.bf16.mxu0 0
    %2182 = vmatpush1.bf16.xpose.msra.mxu0 0
    %2183 = vmatprep.mubr.bf16.mxu0 0
    %2184 = vmatmul.mubr.bf16.gmra.mrb[0].mxu0 %v2146
    %v2185 = vpop.f32.mrb[0].mxu0
    %v2186 = vadd.f32 0.0, %v2185
    %v2187 = vpop.f32.mrb[0].mxu0
    %v2188 = vpop.f32.mrb[0].mxu0
    %v2189 = vpop.f32.mrb[0].mxu0
    %2190 = vdwg.mxu0
    %v2191 = vmul.f32 %v2137, 0.25
    %v2192 = vmul.f32 %v2186, 0.25
    %v2193 = vsel %vm368, %v2191, -inf
    %2194 = vmax.xlane.f32.xlu0 %v2193
    %v2195 = vpop.xlane.xlu0 %2194
    %v2196 = vsel %vm368, %v2192, -inf
    %2197 = vmax.xlane.f32.xlu0 %v2196
    %v2198 = vpop.xlane.xlu0 %2197
    %v2199 = vsub.f32 %v2191, %v2195
    %v2200 = vsub.f32 %v2192, %v2198
    %v2201 = vmul.f32 %v2199, 1.442695
    %v2202 = vpow.pop %v2201
    %v2203 = vmul.f32 %v2200, 1.442695
    %v2204 = vpow.pop %v2203
    %v2205 = vsel %vm368, %v2202, 0.0
    %2206 = vadd.xlane.f32.xlu0 %v2205
    %v2207 = vpop.xlane.xlu0 %2206
    %v2208 = vsel %vm368, %v2204, 0.0
    %2209 = vadd.xlane.f32.xlu0 %v2208
    %v2210 = vpop.xlane.xlu0 %2209
    %v2211 = vrcp.pop %v2207
    %v2212 = vrcp.pop %v2210
    %v2213 = vmul.f32 %v2202, %v2211
    %v2214 = vmul.f32 %v2204, %v2212
    %v2215 = vpack.c.bf16 %v2213, %v2213
    %v2216 = vpack.c.bf16 %v2214, %v2214
    %2217 = vrot.lane.b32.xlu0 %v2091, 64
    %v2218 = vpop.permute.xlu0 %2217
    %v2220 = vsel %vm368, %v2215, 0
    %v2223 = vsel %vm398, %v2218, 0
    %2225 = vmatprep.subr.bf16.mxu0 0
    %2226 = vmatpush1.bf16.msra.mxu0 %v2223
    %2227 = vmatprep.subr.bf16.mxu0 0
    %2228 = vmatpush1.bf16.msra.mxu0 0
    %2229 = vmatprep.subr.bf16.mxu0 0
    %2230 = vmatpush1.bf16.msra.mxu0 0
    %2231 = vmatprep.subr.bf16.mxu0 0
    %2232 = vmatpush1.bf16.msra.mxu0 0
    %2233 = vmatprep.subr.bf16.mxu0 0
    %2234 = vmatpush1.bf16.msra.mxu0 0
    %2235 = vmatprep.subr.bf16.mxu0 0
    %2236 = vmatpush1.bf16.msra.mxu0 0
    %2237 = vmatprep.subr.bf16.mxu0 0
    %2238 = vmatpush1.bf16.msra.mxu0 0
    %2239 = vmatprep.subr.bf16.mxu0 0
    %2240 = vmatpush1.bf16.msra.mxu0 0
    %2241 = vmatprep.subr.bf16.mxu0 0
    %2242 = vmatpush1.bf16.msra.mxu0 0
    %2243 = vmatprep.subr.bf16.mxu0 0
    %2244 = vmatpush1.bf16.msra.mxu0 0
    %2245 = vmatprep.subr.bf16.mxu0 0
    %2246 = vmatpush1.bf16.msra.mxu0 0
    %2247 = vmatprep.subr.bf16.mxu0 0
    %2248 = vmatpush1.bf16.msra.mxu0 0
    %2249 = vmatprep.subr.bf16.mxu0 0
    %2250 = vmatpush1.bf16.msra.mxu0 0
    %2251 = vmatprep.subr.bf16.mxu0 0
    %2252 = vmatpush1.bf16.msra.mxu0 0
    %2253 = vmatprep.subr.bf16.mxu0 0
    %2254 = vmatpush1.bf16.msra.mxu0 0
    %2255 = vmatprep.subr.bf16.mxu0 0
    %2256 = vmatpush1.bf16.msra.mxu0 0
    %2257 = vmatprep.mubr.bf16.mxu0 0
    %2258 = vmatmul.mubr.bf16.gmra.mrb[0].mxu0 %v2220
    %v2259 = vpop.f32.mrb[0].mxu0
    %v2260 = vadd.f32 0.0, %v2259
    %v2261 = vpop.f32.mrb[0].mxu0
    %v2262 = vpop.f32.mrb[0].mxu0
    %v2263 = vpop.f32.mrb[0].mxu0
    %2264 = vdwg.mxu0
    %2265 = vrot.lane.b32.xlu0 %v2092, 64
    %v2266 = vpop.permute.xlu0 %2265
    %v2268 = vsel %vm368, %v2216, 0
    %v2271 = vsel %vm398, %v2266, 0
    %2273 = vmatprep.subr.bf16.mxu0 0
    %2274 = vmatpush1.bf16.msra.mxu0 %v2271
    %2275 = vmatprep.subr.bf16.mxu0 0
    %2276 = vmatpush1.bf16.msra.mxu0 0
    %2277 = vmatprep.subr.bf16.mxu0 0
    %2278 = vmatpush1.bf16.msra.mxu0 0
    %2279 = vmatprep.subr.bf16.mxu0 0
    %2280 = vmatpush1.bf16.msra.mxu0 0
    %2281 = vmatprep.subr.bf16.mxu0 0
    %2282 = vmatpush1.bf16.msra.mxu0 0
    %2283 = vmatprep.subr.bf16.mxu0 0
    %2284 = vmatpush1.bf16.msra.mxu0 0
    %2285 = vmatprep.subr.bf16.mxu0 0
    %2286 = vmatpush1.bf16.msra.mxu0 0
    %2287 = vmatprep.subr.bf16.mxu0 0
    %2288 = vmatpush1.bf16.msra.mxu0 0
    %2289 = vmatprep.subr.bf16.mxu0 0
    %2290 = vmatpush1.bf16.msra.mxu0 0
    %2291 = vmatprep.subr.bf16.mxu0 0
    %2292 = vmatpush1.bf16.msra.mxu0 0
    %2293 = vmatprep.subr.bf16.mxu0 0
    %2294 = vmatpush1.bf16.msra.mxu0 0
    %2295 = vmatprep.subr.bf16.mxu0 0
    %2296 = vmatpush1.bf16.msra.mxu0 0
    %2297 = vmatprep.subr.bf16.mxu0 0
    %2298 = vmatpush1.bf16.msra.mxu0 0
    %2299 = vmatprep.subr.bf16.mxu0 0
    %2300 = vmatpush1.bf16.msra.mxu0 0
    %2301 = vmatprep.subr.bf16.mxu0 0
    %2302 = vmatpush1.bf16.msra.mxu0 0
    %2303 = vmatprep.subr.bf16.mxu0 0
    %2304 = vmatpush1.bf16.msra.mxu0 0
    %2305 = vmatprep.mubr.bf16.mxu0 0
    %2306 = vmatmul.mubr.bf16.gmra.mrb[0].mxu0 %v2268
    %v2307 = vpop.f32.mrb[0].mxu0
    %v2308 = vadd.f32 0.0, %v2307
    %v2309 = vpop.f32.mrb[0].mxu0
    %v2310 = vpop.f32.mrb[0].mxu0
    %v2311 = vpop.f32.mrb[0].mxu0
    %2312 = vdwg.mxu0
    %2313 = vrot.lane.b32.xlu0 %v2091, 112
    %v2314 = vpop.permute.xlu0 %2313
    %2315 = vrot.lane.b32.xlu0 %v2091, 80
    %v2316 = vpop.permute.xlu0 %2315
    %v2318 = vsel %vm270, %v2314, 0
    %v2321 = vsel %vm270, %v2316, 0
    %2323 = vmatprep.subr.bf16.mxu0 0
    %2324 = vmatpush1.bf16.xpose.msra.mxu0 %v2321
    %2325 = vmatprep.subr.bf16.mxu0 0
    %2326 = vmatpush1.bf16.xpose.msra.mxu0 0
    %2327 = vmatprep.subr.bf16.mxu0 0
    %2328 = vmatpush1.bf16.xpose.msra.mxu0 0
    %2329 = vmatprep.subr.bf16.mxu0 0
    %2330 = vmatpush1.bf16.xpose.msra.mxu0 0
    %2331 = vmatprep.subr.bf16.mxu0 0
    %2332 = vmatpush1.bf16.xpose.msra.mxu0 0
    %2333 = vmatprep.subr.bf16.mxu0 0
    %2334 = vmatpush1.bf16.xpose.msra.mxu0 0
    %2335 = vmatprep.subr.bf16.mxu0 0
    %2336 = vmatpush1.bf16.xpose.msra.mxu0 0
    %2337 = vmatprep.subr.bf16.mxu0 0
    %2338 = vmatpush1.bf16.xpose.msra.mxu0 0
    %2339 = vmatprep.subr.bf16.mxu0 0
    %2340 = vmatpush1.bf16.xpose.msra.mxu0 0
    %2341 = vmatprep.subr.bf16.mxu0 0
    %2342 = vmatpush1.bf16.xpose.msra.mxu0 0
    %2343 = vmatprep.subr.bf16.mxu0 0
    %2344 = vmatpush1.bf16.xpose.msra.mxu0 0
    %2345 = vmatprep.subr.bf16.mxu0 0
    %2346 = vmatpush1.bf16.xpose.msra.mxu0 0
    %2347 = vmatprep.subr.bf16.mxu0 0
    %2348 = vmatpush1.bf16.xpose.msra.mxu0 0
    %2349 = vmatprep.subr.bf16.mxu0 0
    %2350 = vmatpush1.bf16.xpose.msra.mxu0 0
    %2351 = vmatprep.subr.bf16.mxu0 0
    %2352 = vmatpush1.bf16.xpose.msra.mxu0 0
    %2353 = vmatprep.subr.bf16.mxu0 0
    %2354 = vmatpush1.bf16.xpose.msra.mxu0 0
    %2355 = vmatprep.mubr.bf16.mxu0 0
    %2356 = vmatmul.mubr.bf16.gmra.mrb[0].mxu0 %v2318
    %v2357 = vpop.f32.mrb[0].mxu0
    %v2358 = vadd.f32 0.0, %v2357
    %v2359 = vpop.f32.mrb[0].mxu0
    %v2360 = vpop.f32.mrb[0].mxu0
    %v2361 = vpop.f32.mrb[0].mxu0
    %2362 = vdwg.mxu0
    %2363 = vrot.lane.b32.xlu0 %v2092, 112
    %v2364 = vpop.permute.xlu0 %2363
    %2365 = vrot.lane.b32.xlu0 %v2092, 80
    %v2366 = vpop.permute.xlu0 %2365
    %v2368 = vsel %vm270, %v2364, 0
    %v2371 = vsel %vm270, %v2366, 0
    %2373 = vmatprep.subr.bf16.mxu0 0
    %2374 = vmatpush1.bf16.xpose.msra.mxu0 %v2371
    %2375 = vmatprep.subr.bf16.mxu0 0
    %2376 = vmatpush1.bf16.xpose.msra.mxu0 0
    %2377 = vmatprep.subr.bf16.mxu0 0
    %2378 = vmatpush1.bf16.xpose.msra.mxu0 0
    %2379 = vmatprep.subr.bf16.mxu0 0
    %2380 = vmatpush1.bf16.xpose.msra.mxu0 0
    %2381 = vmatprep.subr.bf16.mxu0 0
    %2382 = vmatpush1.bf16.xpose.msra.mxu0 0
    %2383 = vmatprep.subr.bf16.mxu0 0
    %2384 = vmatpush1.bf16.xpose.msra.mxu0 0
    %2385 = vmatprep.subr.bf16.mxu0 0
    %2386 = vmatpush1.bf16.xpose.msra.mxu0 0
    %2387 = vmatprep.subr.bf16.mxu0 0
    %2388 = vmatpush1.bf16.xpose.msra.mxu0 0
    %2389 = vmatprep.subr.bf16.mxu0 0
    %2390 = vmatpush1.bf16.xpose.msra.mxu0 0
    %2391 = vmatprep.subr.bf16.mxu0 0
    %2392 = vmatpush1.bf16.xpose.msra.mxu0 0
    %2393 = vmatprep.subr.bf16.mxu0 0
    %2394 = vmatpush1.bf16.xpose.msra.mxu0 0
    %2395 = vmatprep.subr.bf16.mxu0 0
    %2396 = vmatpush1.bf16.xpose.msra.mxu0 0
    %2397 = vmatprep.subr.bf16.mxu0 0
    %2398 = vmatpush1.bf16.xpose.msra.mxu0 0
    %2399 = vmatprep.subr.bf16.mxu0 0
    %2400 = vmatpush1.bf16.xpose.msra.mxu0 0
    %2401 = vmatprep.subr.bf16.mxu0 0
    %2402 = vmatpush1.bf16.xpose.msra.mxu0 0
    %2403 = vmatprep.subr.bf16.mxu0 0
    %2404 = vmatpush1.bf16.xpose.msra.mxu0 0
    %2405 = vmatprep.mubr.bf16.mxu0 0
    %2406 = vmatmul.mubr.bf16.gmra.mrb[0].mxu0 %v2368
    %v2407 = vpop.f32.mrb[0].mxu0
    %v2408 = vadd.f32 0.0, %v2407
    %v2409 = vpop.f32.mrb[0].mxu0
    %v2410 = vpop.f32.mrb[0].mxu0
    %v2411 = vpop.f32.mrb[0].mxu0
    %2412 = vdwg.mxu0
    %v2413 = vmul.f32 %v2358, 0.25
    %v2414 = vmul.f32 %v2408, 0.25
    %v2415 = vsel %vm368, %v2413, -inf
    %2416 = vmax.xlane.f32.xlu0 %v2415
    %v2417 = vpop.xlane.xlu0 %2416
    %v2418 = vsel %vm368, %v2414, -inf
    %2419 = vmax.xlane.f32.xlu0 %v2418
    %v2420 = vpop.xlane.xlu0 %2419
    %v2421 = vsub.f32 %v2413, %v2417
    %v2422 = vsub.f32 %v2414, %v2420
    %v2423 = vmul.f32 %v2421, 1.442695
    %v2424 = vpow.pop %v2423
    %v2425 = vmul.f32 %v2422, 1.442695
    %v2426 = vpow.pop %v2425
    %v2427 = vsel %vm368, %v2424, 0.0
    %2428 = vadd.xlane.f32.xlu0 %v2427
    %v2429 = vpop.xlane.xlu0 %2428
    %v2430 = vsel %vm368, %v2426, 0.0
    %2431 = vadd.xlane.f32.xlu0 %v2430
    %v2432 = vpop.xlane.xlu0 %2431
    %v2433 = vrcp.pop %v2429
    %v2434 = vrcp.pop %v2432
    %v2435 = vmul.f32 %v2424, %v2433
    %v2436 = vmul.f32 %v2426, %v2434
    %v2437 = vpack.c.bf16 %v2435, %v2435
    %v2438 = vpack.c.bf16 %v2436, %v2436
    %2439 = vrot.lane.b32.xlu0 %v2091, 48
    %v2440 = vpop.permute.xlu0 %2439
    %v2442 = vsel %vm368, %v2437, 0
    %v2445 = vsel %vm398, %v2440, 0
    %2447 = vmatprep.subr.bf16.mxu0 0
    %2448 = vmatpush1.bf16.msra.mxu0 %v2445
    %2449 = vmatprep.subr.bf16.mxu0 0
    %2450 = vmatpush1.bf16.msra.mxu0 0
    %2451 = vmatprep.subr.bf16.mxu0 0
    %2452 = vmatpush1.bf16.msra.mxu0 0
    %2453 = vmatprep.subr.bf16.mxu0 0
    %2454 = vmatpush1.bf16.msra.mxu0 0
    %2455 = vmatprep.subr.bf16.mxu0 0
    %2456 = vmatpush1.bf16.msra.mxu0 0
    %2457 = vmatprep.subr.bf16.mxu0 0
    %2458 = vmatpush1.bf16.msra.mxu0 0
    %2459 = vmatprep.subr.bf16.mxu0 0
    %2460 = vmatpush1.bf16.msra.mxu0 0
    %2461 = vmatprep.subr.bf16.mxu0 0
    %2462 = vmatpush1.bf16.msra.mxu0 0
    %2463 = vmatprep.subr.bf16.mxu0 0
    %2464 = vmatpush1.bf16.msra.mxu0 0
    %2465 = vmatprep.subr.bf16.mxu0 0
    %2466 = vmatpush1.bf16.msra.mxu0 0
    %2467 = vmatprep.subr.bf16.mxu0 0
    %2468 = vmatpush1.bf16.msra.mxu0 0
    %2469 = vmatprep.subr.bf16.mxu0 0
    %2470 = vmatpush1.bf16.msra.mxu0 0
    %2471 = vmatprep.subr.bf16.mxu0 0
    %2472 = vmatpush1.bf16.msra.mxu0 0
    %2473 = vmatprep.subr.bf16.mxu0 0
    %2474 = vmatpush1.bf16.msra.mxu0 0
    %2475 = vmatprep.subr.bf16.mxu0 0
    %2476 = vmatpush1.bf16.msra.mxu0 0
    %2477 = vmatprep.subr.bf16.mxu0 0
    %2478 = vmatpush1.bf16.msra.mxu0 0
    %2479 = vmatprep.mubr.bf16.mxu0 0
    %2480 = vmatmul.mubr.bf16.gmra.mrb[0].mxu0 %v2442
    %v2481 = vpop.f32.mrb[0].mxu0
    %v2482 = vadd.f32 0.0, %v2481
    %v2483 = vpop.f32.mrb[0].mxu0
    %v2484 = vpop.f32.mrb[0].mxu0
    %v2485 = vpop.f32.mrb[0].mxu0
    %2486 = vdwg.mxu0
    %2487 = vrot.lane.b32.xlu0 %v2092, 48
    %v2488 = vpop.permute.xlu0 %2487
    %v2490 = vsel %vm368, %v2438, 0
    %v2493 = vsel %vm398, %v2488, 0
    %2495 = vmatprep.subr.bf16.mxu0 0
    %2496 = vmatpush1.bf16.msra.mxu0 %v2493
    %2497 = vmatprep.subr.bf16.mxu0 0
    %2498 = vmatpush1.bf16.msra.mxu0 0
    %2499 = vmatprep.subr.bf16.mxu0 0
    %2500 = vmatpush1.bf16.msra.mxu0 0
    %2501 = vmatprep.subr.bf16.mxu0 0
    %2502 = vmatpush1.bf16.msra.mxu0 0
    %2503 = vmatprep.subr.bf16.mxu0 0
    %2504 = vmatpush1.bf16.msra.mxu0 0
    %2505 = vmatprep.subr.bf16.mxu0 0
    %2506 = vmatpush1.bf16.msra.mxu0 0
    %2507 = vmatprep.subr.bf16.mxu0 0
    %2508 = vmatpush1.bf16.msra.mxu0 0
    %2509 = vmatprep.subr.bf16.mxu0 0
    %2510 = vmatpush1.bf16.msra.mxu0 0
    %2511 = vmatprep.subr.bf16.mxu0 0
    %2512 = vmatpush1.bf16.msra.mxu0 0
    %2513 = vmatprep.subr.bf16.mxu0 0
    %2514 = vmatpush1.bf16.msra.mxu0 0
    %2515 = vmatprep.subr.bf16.mxu0 0
    %2516 = vmatpush1.bf16.msra.mxu0 0
    %2517 = vmatprep.subr.bf16.mxu0 0
    %2518 = vmatpush1.bf16.msra.mxu0 0
    %2519 = vmatprep.subr.bf16.mxu0 0
    %2520 = vmatpush1.bf16.msra.mxu0 0
    %2521 = vmatprep.subr.bf16.mxu0 0
    %2522 = vmatpush1.bf16.msra.mxu0 0
    %2523 = vmatprep.subr.bf16.mxu0 0
    %2524 = vmatpush1.bf16.msra.mxu0 0
    %2525 = vmatprep.subr.bf16.mxu0 0
    %2526 = vmatpush1.bf16.msra.mxu0 0
    %2527 = vmatprep.mubr.bf16.mxu0 0
    %2528 = vmatmul.mubr.bf16.gmra.mrb[0].mxu0 %v2490
    %v2529 = vpop.f32.mrb[0].mxu0
    %v2530 = vadd.f32 0.0, %v2529
    %v2531 = vpop.f32.mrb[0].mxu0
    %v2532 = vpop.f32.mrb[0].mxu0
    %v2533 = vpop.f32.mrb[0].mxu0
    %2534 = vdwg.mxu0
    %2537 = vrot.lane.b32.xlu0 %v2482, 16
    %v2538 = vpop.permute.xlu0 %2537
    %2539 = vrot.lane.b32.xlu0 %v2530, 16
    %v2540 = vpop.permute.xlu0 %2539
    %v2543 = vsel %vm270, %v2260, %v2538
    %v2544 = vsel %vm270, %v2308, %v2540
    %v2545 = vpack.c.bf16 %v2544, %v2543
    %v2546 = vld [vmem:[#allocation2 + $0x40] sm:$0xf]
    %v2547 = vld [vmem:[#allocation2 + $0x44] sm:$0xf]
    %v2548 = vld [vmem:[#allocation2 + $0x48] sm:$0xf]
    %v2549 = vld [vmem:[#allocation2 + $0x4c] sm:$0xf]
    %v2550 = vld [vmem:[%s3 + $0x1] sm:$0x1]
    %v2551 = vlaneseq
    %v2552 = vshrl.u32 %v2551, 7
    %v2553 = vsub.s32 0, %v2552
    %v2554 = vrot.slane %v2550, %v2553
    %v2559 = vunpack.c.l.b16 %v2546
    %v2560 = vunpack.c.l.b16 %v2547
    %v2561 = vunpack.c.l.b16 %v2548
    %v2562 = vunpack.c.l.b16 %v2549
    %v2563 = vpack.c.b16 %v2560, %v2559
    %v2564 = vpack.c.b16 %v2562, %v2561
    %v2568 = vsel %vm744, %v2545, 0
    %2570 = vmatprep.subr.bf16.mxu0 0
    %2571 = vmatpush1.bf16.msra.mxu0 %v2563
    %2572 = vmatprep.subr.bf16.mxu0 0
    %2573 = vmatpush1.bf16.msra.mxu0 %v2564
    %2574 = vmatprep.subr.bf16.mxu0 0
    %2575 = vmatpush1.bf16.msra.mxu0 0
    %2576 = vmatprep.subr.bf16.mxu0 0
    %2577 = vmatpush1.bf16.msra.mxu0 0
    %2578 = vmatprep.subr.bf16.mxu0 0
    %2579 = vmatpush1.bf16.msra.mxu0 0
    %2580 = vmatprep.subr.bf16.mxu0 0
    %2581 = vmatpush1.bf16.msra.mxu0 0
    %2582 = vmatprep.subr.bf16.mxu0 0
    %2583 = vmatpush1.bf16.msra.mxu0 0
    %2584 = vmatprep.subr.bf16.mxu0 0
    %2585 = vmatpush1.bf16.msra.mxu0 0
    %2586 = vmatprep.subr.bf16.mxu0 0
    %2587 = vmatpush1.bf16.msra.mxu0 0
    %2588 = vmatprep.subr.bf16.mxu0 0
    %2589 = vmatpush1.bf16.msra.mxu0 0
    %2590 = vmatprep.subr.bf16.mxu0 0
    %2591 = vmatpush1.bf16.msra.mxu0 0
    %2592 = vmatprep.subr.bf16.mxu0 0
    %2593 = vmatpush1.bf16.msra.mxu0 0
    %2594 = vmatprep.subr.bf16.mxu0 0
    %2595 = vmatpush1.bf16.msra.mxu0 0
    %2596 = vmatprep.subr.bf16.mxu0 0
    %2597 = vmatpush1.bf16.msra.mxu0 0
    %2598 = vmatprep.subr.bf16.mxu0 0
    %2599 = vmatpush1.bf16.msra.mxu0 0
    %2600 = vmatprep.subr.bf16.mxu0 0
    %2601 = vmatpush1.bf16.msra.mxu0 0
    %2602 = vmatprep.mubr.bf16.mxu0 0
    %2603 = vmatmul.mubr.bf16.gmra.mrb[0].mxu0 %v2568
    %v2604 = vpop.f32.mrb[0].mxu0
    %v2605 = vadd.f32 %v2554, %v2604
    %v2606 = vpop.f32.mrb[0].mxu0
    %v2607 = vpop.f32.mrb[0].mxu0
    %v2608 = vadd.f32 %v2554, %v2607
    %v2609 = vpop.f32.mrb[0].mxu0
    %2610 = vdwg.mxu0
    %v2611 = vadd.f32 %v1978, %v2605
    %v2612 = vadd.f32 %v1979, %v2608
    %2613 = vadd.xlane.f32.xlu0 %v2611
    %v2614 = vpop.xlane.xlu0 %2613
    %2615 = vadd.xlane.f32.xlu0 %v2612
    %v2616 = vpop.xlane.xlu0 %2615
    %v2617 = vmul.f32 %v2614, 0.03125
    %v2618 = vmul.f32 %v2616, 0.03125
    %v2619 = vmul.f32 %v2611, %v2611
    %v2620 = vmul.f32 %v2612, %v2612
    %2621 = vadd.xlane.f32.xlu0 %v2619
    %v2622 = vpop.xlane.xlu0 %2621
    %2623 = vadd.xlane.f32.xlu0 %v2620
    %v2624 = vpop.xlane.xlu0 %2623
    %v2625 = vmul.f32 %v2622, 0.03125
    %v2626 = vmul.f32 %v2624, 0.03125
    %v2627 = vmul.f32 %v2617, %v2617
    %v2628 = vmul.f32 %v2618, %v2618
    %v2629 = vsub.f32 %v2625, %v2627
    %v2630 = vsub.f32 %v2626, %v2628
    %v2631 = vsub.f32 %v2611, %v2617
    %v2632 = vsub.f32 %v2612, %v2618
    %v2633 = vadd.f32 %v2629, 1e-05
    %v2634 = vadd.f32 %v2630, 1e-05
    %v2635 = vrsqrt.pop %v2633
    %v2636 = vrsqrt.pop %v2634
    %v2637 = vmul.f32 %v2631, %v2635
    %v2638 = vmul.f32 %v2632, %v2636
    %v2639 = vld [vmem:[%s3 + $0x2] sm:$0x1]
    %v2640 = vlaneseq
    %v2641 = vshrl.u32 %v2640, 7
    %v2642 = vsub.s32 0, %v2641
    %v2643 = vrot.slane %v2639, %v2642
    %v2644 = vmul.f32 %v2637, %v2643
    %v2645 = vmul.f32 %v2638, %v2643
    %v2646 = vld [vmem:[%s3 + $0x3] sm:$0x1]
    %v2647 = vlaneseq
    %v2648 = vshrl.u32 %v2647, 7
    %v2649 = vsub.s32 0, %v2648
    %v2650 = vrot.slane %v2646, %v2649
    %v2651 = vadd.f32 %v2644, %v2650
    %v2652 = vadd.f32 %v2645, %v2650
    %v2653 = vpack.c.bf16 %v2652, %v2651
    %v2654 = vld [vmem:[#allocation2 + $0x50] sm:$0xf]
    %v2655 = vld [vmem:[#allocation2 + $0x54] sm:$0xf]
    %v2656 = vld [vmem:[#allocation2 + $0x58] sm:$0xf]
    %v2657 = vld [vmem:[#allocation2 + $0x5c] sm:$0xf]
    %v2658 = vld [vmem:[#allocation2 + $0x60] sm:$0xf]
    %v2659 = vld [vmem:[#allocation2 + $0x64] sm:$0xf]
    %v2660 = vld [vmem:[#allocation2 + $0x68] sm:$0xf]
    %v2661 = vld [vmem:[#allocation2 + $0x6c] sm:$0xf]
    %v2662 = vld [vmem:[#allocation2 + $0x70] sm:$0xf]
    %v2663 = vld [vmem:[#allocation2 + $0x74] sm:$0xf]
    %v2664 = vld [vmem:[#allocation2 + $0x78] sm:$0xf]
    %v2665 = vld [vmem:[#allocation2 + $0x7c] sm:$0xf]
    %v2666 = vld [vmem:[#allocation2 + $0x80] sm:$0xf]
    %v2667 = vld [vmem:[#allocation2 + $0x84] sm:$0xf]
    %v2668 = vld [vmem:[#allocation2 + $0x88] sm:$0xf]
    %v2669 = vld [vmem:[#allocation2 + $0x8c] sm:$0xf]
    %v2670 = vld [vmem:[%s3 + $0x4] sm:$0x1]
    %v2671 = vlaneseq
    %v2672 = vshrl.u32 %v2671, 7
    %v2673 = vsub.s32 0, %v2672
    %v2674 = vrot.slane %v2670, %v2673
    %v2691 = vunpack.c.l.b16 %v2654
    %v2692 = vunpack.c.l.b16 %v2655
    %v2693 = vunpack.c.l.b16 %v2656
    %v2694 = vunpack.c.l.b16 %v2657
    %v2695 = vunpack.c.l.b16 %v2658
    %v2696 = vunpack.c.l.b16 %v2659
    %v2697 = vunpack.c.l.b16 %v2660
    %v2698 = vunpack.c.l.b16 %v2661
    %v2699 = vunpack.c.l.b16 %v2662
    %v2700 = vunpack.c.l.b16 %v2663
    %v2701 = vunpack.c.l.b16 %v2664
    %v2702 = vunpack.c.l.b16 %v2665
    %v2703 = vunpack.c.l.b16 %v2666
    %v2704 = vunpack.c.l.b16 %v2667
    %v2705 = vunpack.c.l.b16 %v2668
    %v2706 = vunpack.c.l.b16 %v2669
    %v2707 = vpack.c.b16 %v2692, %v2691
    %v2708 = vpack.c.b16 %v2694, %v2693
    %v2709 = vpack.c.b16 %v2696, %v2695
    %v2710 = vpack.c.b16 %v2698, %v2697
    %v2711 = vpack.c.b16 %v2700, %v2699
    %v2712 = vpack.c.b16 %v2702, %v2701
    %v2713 = vpack.c.b16 %v2704, %v2703
    %v2714 = vpack.c.b16 %v2706, %v2705
    %2723 = vmatprep.subr.bf16.mxu0 0
    %2724 = vmatpush1.bf16.msra.mxu0 %v2707
    %2725 = vmatprep.subr.bf16.mxu0 0
    %2726 = vmatpush1.bf16.msra.mxu0 %v2708
    %2727 = vmatprep.subr.bf16.mxu0 0
    %2728 = vmatpush1.bf16.msra.mxu0 %v2709
    %2729 = vmatprep.subr.bf16.mxu0 0
    %2730 = vmatpush1.bf16.msra.mxu0 %v2710
    %2731 = vmatprep.subr.bf16.mxu0 0
    %2732 = vmatpush1.bf16.msra.mxu0 %v2711
    %2733 = vmatprep.subr.bf16.mxu0 0
    %2734 = vmatpush1.bf16.msra.mxu0 %v2712
    %2735 = vmatprep.subr.bf16.mxu0 0
    %2736 = vmatpush1.bf16.msra.mxu0 %v2713
    %2737 = vmatprep.subr.bf16.mxu0 0
    %2738 = vmatpush1.bf16.msra.mxu0 %v2714
    %2739 = vmatprep.subr.bf16.mxu0 0
    %2740 = vmatpush1.bf16.msra.mxu0 0
    %2741 = vmatprep.subr.bf16.mxu0 0
    %2742 = vmatpush1.bf16.msra.mxu0 0
    %2743 = vmatprep.subr.bf16.mxu0 0
    %2744 = vmatpush1.bf16.msra.mxu0 0
    %2745 = vmatprep.subr.bf16.mxu0 0
    %2746 = vmatpush1.bf16.msra.mxu0 0
    %2747 = vmatprep.subr.bf16.mxu0 0
    %2748 = vmatpush1.bf16.msra.mxu0 0
    %2749 = vmatprep.subr.bf16.mxu0 0
    %2750 = vmatpush1.bf16.msra.mxu0 0
    %2751 = vmatprep.subr.bf16.mxu0 0
    %2752 = vmatpush1.bf16.msra.mxu0 0
    %2753 = vmatprep.subr.bf16.mxu0 0
    %2754 = vmatpush1.bf16.msra.mxu0 0
    %2755 = vmatprep.mubr.bf16.mxu0 0
    %2756 = vmatmul.mubr.bf16.gmra.mrb[0].mxu0 %v2653
    %v2757 = vpop.f32.mrb[0].mxu0
    %v2758 = vadd.f32 %v2674, %v2757
    %v2759 = vpop.f32.mrb[0].mxu0
    %v2760 = vpop.f32.mrb[0].mxu0
    %v2761 = vadd.f32 %v2674, %v2760
    %v2762 = vpop.f32.mrb[0].mxu0
    %2763 = vdwg.mxu0
    %v2764 = vpack.c.bf16 %v2758, %v2758
    %v2765 = vpack.c.bf16 %v2761, %v2761
    %v2767 = vsel %vm270, %v2764, 0
    %2769 = vmatprep.subr.bf16.mxu0 0
    %2770 = vmatpush1.bf16.xpose.msra.mxu0 %v950
    %2771 = vmatprep.subr.bf16.mxu0 0
    %2772 = vmatpush1.bf16.xpose.msra.mxu0 0
    %2773 = vmatprep.subr.bf16.mxu0 0
    %2774 = vmatpush1.bf16.xpose.msra.mxu0 0
    %2775 = vmatprep.subr.bf16.mxu0 0
    %2776 = vmatpush1.bf16.xpose.msra.mxu0 0
    %2777 = vmatprep.subr.bf16.mxu0 0
    %2778 = vmatpush1.bf16.xpose.msra.mxu0 0
    %2779 = vmatprep.subr.bf16.mxu0 0
    %2780 = vmatpush1.bf16.xpose.msra.mxu0 0
    %2781 = vmatprep.subr.bf16.mxu0 0
    %2782 = vmatpush1.bf16.xpose.msra.mxu0 0
    %2783 = vmatprep.subr.bf16.mxu0 0
    %2784 = vmatpush1.bf16.xpose.msra.mxu0 0
    %2785 = vmatprep.subr.bf16.mxu0 0
    %2786 = vmatpush1.bf16.xpose.msra.mxu0 0
    %2787 = vmatprep.subr.bf16.mxu0 0
    %2788 = vmatpush1.bf16.xpose.msra.mxu0 0
    %2789 = vmatprep.subr.bf16.mxu0 0
    %2790 = vmatpush1.bf16.xpose.msra.mxu0 0
    %2791 = vmatprep.subr.bf16.mxu0 0
    %2792 = vmatpush1.bf16.xpose.msra.mxu0 0
    %2793 = vmatprep.subr.bf16.mxu0 0
    %2794 = vmatpush1.bf16.xpose.msra.mxu0 0
    %2795 = vmatprep.subr.bf16.mxu0 0
    %2796 = vmatpush1.bf16.xpose.msra.mxu0 0
    %2797 = vmatprep.subr.bf16.mxu0 0
    %2798 = vmatpush1.bf16.xpose.msra.mxu0 0
    %2799 = vmatprep.subr.bf16.mxu0 0
    %2800 = vmatpush1.bf16.xpose.msra.mxu0 0
    %2801 = vmatprep.mubr.bf16.mxu0 0
    %2802 = vmatmul.mubr.bf16.gmra.mrb[0].mxu0 %v2767
    %v2803 = vpop.f32.mrb[0].mxu0
    %v2804 = vadd.f32 0.0, %v2803
    %v2805 = vpop.f32.mrb[0].mxu0
    %v2806 = vpop.f32.mrb[0].mxu0
    %v2807 = vpop.f32.mrb[0].mxu0
    %2808 = vdwg.mxu0
    %v2810 = vsel %vm270, %v2765, 0
    %2812 = vmatprep.subr.bf16.mxu0 0
    %2813 = vmatpush1.bf16.xpose.msra.mxu0 %v996
    %2814 = vmatprep.subr.bf16.mxu0 0
    %2815 = vmatpush1.bf16.xpose.msra.mxu0 0
    %2816 = vmatprep.subr.bf16.mxu0 0
    %2817 = vmatpush1.bf16.xpose.msra.mxu0 0
    %2818 = vmatprep.subr.bf16.mxu0 0
    %2819 = vmatpush1.bf16.xpose.msra.mxu0 0
    %2820 = vmatprep.subr.bf16.mxu0 0
    %2821 = vmatpush1.bf16.xpose.msra.mxu0 0
    %2822 = vmatprep.subr.bf16.mxu0 0
    %2823 = vmatpush1.bf16.xpose.msra.mxu0 0
    %2824 = vmatprep.subr.bf16.mxu0 0
    %2825 = vmatpush1.bf16.xpose.msra.mxu0 0
    %2826 = vmatprep.subr.bf16.mxu0 0
    %2827 = vmatpush1.bf16.xpose.msra.mxu0 0
    %2828 = vmatprep.subr.bf16.mxu0 0
    %2829 = vmatpush1.bf16.xpose.msra.mxu0 0
    %2830 = vmatprep.subr.bf16.mxu0 0
    %2831 = vmatpush1.bf16.xpose.msra.mxu0 0
    %2832 = vmatprep.subr.bf16.mxu0 0
    %2833 = vmatpush1.bf16.xpose.msra.mxu0 0
    %2834 = vmatprep.subr.bf16.mxu0 0
    %2835 = vmatpush1.bf16.xpose.msra.mxu0 0
    %2836 = vmatprep.subr.bf16.mxu0 0
    %2837 = vmatpush1.bf16.xpose.msra.mxu0 0
    %2838 = vmatprep.subr.bf16.mxu0 0
    %2839 = vmatpush1.bf16.xpose.msra.mxu0 0
    %2840 = vmatprep.subr.bf16.mxu0 0
    %2841 = vmatpush1.bf16.xpose.msra.mxu0 0
    %2842 = vmatprep.subr.bf16.mxu0 0
    %2843 = vmatpush1.bf16.xpose.msra.mxu0 0
    %2844 = vmatprep.mubr.bf16.mxu0 0
    %2845 = vmatmul.mubr.bf16.gmra.mrb[0].mxu0 %v2810
    %v2846 = vpop.f32.mrb[0].mxu0
    %v2847 = vadd.f32 0.0, %v2846
    %v2848 = vpop.f32.mrb[0].mxu0
    %v2849 = vpop.f32.mrb[0].mxu0
    %v2850 = vpop.f32.mrb[0].mxu0
    %2851 = vdwg.mxu0
    %v2852 = vmul.f32 %v2804, 0.25
    %v2853 = vmul.f32 %v2847, 0.25
    %v2854 = vsel %vm368, %v2852, -inf
    %2855 = vmax.xlane.f32.xlu0 %v2854
    %v2856 = vpop.xlane.xlu0 %2855
    %v2857 = vsel %vm368, %v2853, -inf
    %2858 = vmax.xlane.f32.xlu0 %v2857
    %v2859 = vpop.xlane.xlu0 %2858
    %v2860 = vsub.f32 %v2852, %v2856
    %v2861 = vsub.f32 %v2853, %v2859
    %v2862 = vmul.f32 %v2860, 1.442695
    %v2863 = vpow.pop %v2862
    %v2864 = vmul.f32 %v2861, 1.442695
    %v2865 = vpow.pop %v2864
    %v2866 = vsel %vm368, %v2863, 0.0
    %2867 = vadd.xlane.f32.xlu0 %v2866
    %v2868 = vpop.xlane.xlu0 %2867
    %v2869 = vsel %vm368, %v2865, 0.0
    %2870 = vadd.xlane.f32.xlu0 %v2869
    %v2871 = vpop.xlane.xlu0 %2870
    %v2872 = vrcp.pop %v2868
    %v2873 = vrcp.pop %v2871
    %v2874 = vmul.f32 %v2863, %v2872
    %v2875 = vmul.f32 %v2865, %v2873
    %v2876 = vpack.c.bf16 %v2874, %v2874
    %v2877 = vpack.c.bf16 %v2875, %v2875
    %v2879 = vsel %vm368, %v2876, 0
    %2881 = vmatprep.subr.bf16.mxu0 0
    %2882 = vmatpush1.bf16.msra.mxu0 %v1071
    %2883 = vmatprep.subr.bf16.mxu0 0
    %2884 = vmatpush1.bf16.msra.mxu0 0
    %2885 = vmatprep.subr.bf16.mxu0 0
    %2886 = vmatpush1.bf16.msra.mxu0 0
    %2887 = vmatprep.subr.bf16.mxu0 0
    %2888 = vmatpush1.bf16.msra.mxu0 0
    %2889 = vmatprep.subr.bf16.mxu0 0
    %2890 = vmatpush1.bf16.msra.mxu0 0
    %2891 = vmatprep.subr.bf16.mxu0 0
    %2892 = vmatpush1.bf16.msra.mxu0 0
    %2893 = vmatprep.subr.bf16.mxu0 0
    %2894 = vmatpush1.bf16.msra.mxu0 0
    %2895 = vmatprep.subr.bf16.mxu0 0
    %2896 = vmatpush1.bf16.msra.mxu0 0
    %2897 = vmatprep.subr.bf16.mxu0 0
    %2898 = vmatpush1.bf16.msra.mxu0 0
    %2899 = vmatprep.subr.bf16.mxu0 0
    %2900 = vmatpush1.bf16.msra.mxu0 0
    %2901 = vmatprep.subr.bf16.mxu0 0
    %2902 = vmatpush1.bf16.msra.mxu0 0
    %2903 = vmatprep.subr.bf16.mxu0 0
    %2904 = vmatpush1.bf16.msra.mxu0 0
    %2905 = vmatprep.subr.bf16.mxu0 0
    %2906 = vmatpush1.bf16.msra.mxu0 0
    %2907 = vmatprep.subr.bf16.mxu0 0
    %2908 = vmatpush1.bf16.msra.mxu0 0
    %2909 = vmatprep.subr.bf16.mxu0 0
    %2910 = vmatpush1.bf16.msra.mxu0 0
    %2911 = vmatprep.subr.bf16.mxu0 0
    %2912 = vmatpush1.bf16.msra.mxu0 0
    %2913 = vmatprep.mubr.bf16.mxu0 0
    %2914 = vmatmul.mubr.bf16.gmra.mrb[0].mxu0 %v2879
    %v2915 = vpop.f32.mrb[0].mxu0
    %v2916 = vadd.f32 0.0, %v2915
    %v2917 = vpop.f32.mrb[0].mxu0
    %v2918 = vpop.f32.mrb[0].mxu0
    %v2919 = vpop.f32.mrb[0].mxu0
    %2920 = vdwg.mxu0
    %v2922 = vsel %vm368, %v2877, 0
    %2924 = vmatprep.subr.bf16.mxu0 0
    %2925 = vmatpush1.bf16.msra.mxu0 %v1120
    %2926 = vmatprep.subr.bf16.mxu0 0
    %2927 = vmatpush1.bf16.msra.mxu0 0
    %2928 = vmatprep.subr.bf16.mxu0 0
    %2929 = vmatpush1.bf16.msra.mxu0 0
    %2930 = vmatprep.subr.bf16.mxu0 0
    %2931 = vmatpush1.bf16.msra.mxu0 0
    %2932 = vmatprep.subr.bf16.mxu0 0
    %2933 = vmatpush1.bf16.msra.mxu0 0
    %2934 = vmatprep.subr.bf16.mxu0 0
    %2935 = vmatpush1.bf16.msra.mxu0 0
    %2936 = vmatprep.subr.bf16.mxu0 0
    %2937 = vmatpush1.bf16.msra.mxu0 0
    %2938 = vmatprep.subr.bf16.mxu0 0
    %2939 = vmatpush1.bf16.msra.mxu0 0
    %2940 = vmatprep.subr.bf16.mxu0 0
    %2941 = vmatpush1.bf16.msra.mxu0 0
    %2942 = vmatprep.subr.bf16.mxu0 0
    %2943 = vmatpush1.bf16.msra.mxu0 0
    %2944 = vmatprep.subr.bf16.mxu0 0
    %2945 = vmatpush1.bf16.msra.mxu0 0
    %2946 = vmatprep.subr.bf16.mxu0 0
    %2947 = vmatpush1.bf16.msra.mxu0 0
    %2948 = vmatprep.subr.bf16.mxu0 0
    %2949 = vmatpush1.bf16.msra.mxu0 0
    %2950 = vmatprep.subr.bf16.mxu0 0
    %2951 = vmatpush1.bf16.msra.mxu0 0
    %2952 = vmatprep.subr.bf16.mxu0 0
    %2953 = vmatpush1.bf16.msra.mxu0 0
    %2954 = vmatprep.subr.bf16.mxu0 0
    %2955 = vmatpush1.bf16.msra.mxu0 0
    %2956 = vmatprep.mubr.bf16.mxu0 0
    %2957 = vmatmul.mubr.bf16.gmra.mrb[0].mxu0 %v2922
    %v2958 = vpop.f32.mrb[0].mxu0
    %v2959 = vadd.f32 0.0, %v2958
    %v2960 = vpop.f32.mrb[0].mxu0
    %v2961 = vpop.f32.mrb[0].mxu0
    %v2962 = vpop.f32.mrb[0].mxu0
    %2963 = vdwg.mxu0
    %2965 = vrot.lane.b32.xlu0 %v2764, 112
    %v2966 = vpop.permute.xlu0 %2965
    %v2968 = vsel %vm270, %v2966, 0
    %2970 = vmatprep.subr.bf16.mxu0 0
    %2971 = vmatpush1.bf16.xpose.msra.mxu0 %v1171
    %2972 = vmatprep.subr.bf16.mxu0 0
    %2973 = vmatpush1.bf16.xpose.msra.mxu0 0
    %2974 = vmatprep.subr.bf16.mxu0 0
    %2975 = vmatpush1.bf16.xpose.msra.mxu0 0
    %2976 = vmatprep.subr.bf16.mxu0 0
    %2977 = vmatpush1.bf16.xpose.msra.mxu0 0
    %2978 = vmatprep.subr.bf16.mxu0 0
    %2979 = vmatpush1.bf16.xpose.msra.mxu0 0
    %2980 = vmatprep.subr.bf16.mxu0 0
    %2981 = vmatpush1.bf16.xpose.msra.mxu0 0
    %2982 = vmatprep.subr.bf16.mxu0 0
    %2983 = vmatpush1.bf16.xpose.msra.mxu0 0
    %2984 = vmatprep.subr.bf16.mxu0 0
    %2985 = vmatpush1.bf16.xpose.msra.mxu0 0
    %2986 = vmatprep.subr.bf16.mxu0 0
    %2987 = vmatpush1.bf16.xpose.msra.mxu0 0
    %2988 = vmatprep.subr.bf16.mxu0 0
    %2989 = vmatpush1.bf16.xpose.msra.mxu0 0
    %2990 = vmatprep.subr.bf16.mxu0 0
    %2991 = vmatpush1.bf16.xpose.msra.mxu0 0
    %2992 = vmatprep.subr.bf16.mxu0 0
    %2993 = vmatpush1.bf16.xpose.msra.mxu0 0
    %2994 = vmatprep.subr.bf16.mxu0 0
    %2995 = vmatpush1.bf16.xpose.msra.mxu0 0
    %2996 = vmatprep.subr.bf16.mxu0 0
    %2997 = vmatpush1.bf16.xpose.msra.mxu0 0
    %2998 = vmatprep.subr.bf16.mxu0 0
    %2999 = vmatpush1.bf16.xpose.msra.mxu0 0
    %3000 = vmatprep.subr.bf16.mxu0 0
    %3001 = vmatpush1.bf16.xpose.msra.mxu0 0
    %3002 = vmatprep.mubr.bf16.mxu0 0
    %3003 = vmatmul.mubr.bf16.gmra.mrb[0].mxu0 %v2968
    %v3004 = vpop.f32.mrb[0].mxu0
    %v3005 = vadd.f32 0.0, %v3004
    %v3006 = vpop.f32.mrb[0].mxu0
    %v3007 = vpop.f32.mrb[0].mxu0
    %v3008 = vpop.f32.mrb[0].mxu0
    %3009 = vdwg.mxu0
    %3011 = vrot.lane.b32.xlu0 %v2765, 112
    %v3012 = vpop.permute.xlu0 %3011
    %v3014 = vsel %vm270, %v3012, 0
    %3016 = vmatprep.subr.bf16.mxu0 0
    %3017 = vmatpush1.bf16.xpose.msra.mxu0 %v1222
    %3018 = vmatprep.subr.bf16.mxu0 0
    %3019 = vmatpush1.bf16.xpose.msra.mxu0 0
    %3020 = vmatprep.subr.bf16.mxu0 0
    %3021 = vmatpush1.bf16.xpose.msra.mxu0 0
    %3022 = vmatprep.subr.bf16.mxu0 0
    %3023 = vmatpush1.bf16.xpose.msra.mxu0 0
    %3024 = vmatprep.subr.bf16.mxu0 0
    %3025 = vmatpush1.bf16.xpose.msra.mxu0 0
    %3026 = vmatprep.subr.bf16.mxu0 0
    %3027 = vmatpush1.bf16.xpose.msra.mxu0 0
    %3028 = vmatprep.subr.bf16.mxu0 0
    %3029 = vmatpush1.bf16.xpose.msra.mxu0 0
    %3030 = vmatprep.subr.bf16.mxu0 0
    %3031 = vmatpush1.bf16.xpose.msra.mxu0 0
    %3032 = vmatprep.subr.bf16.mxu0 0
    %3033 = vmatpush1.bf16.xpose.msra.mxu0 0
    %3034 = vmatprep.subr.bf16.mxu0 0
    %3035 = vmatpush1.bf16.xpose.msra.mxu0 0
    %3036 = vmatprep.subr.bf16.mxu0 0
    %3037 = vmatpush1.bf16.xpose.msra.mxu0 0
    %3038 = vmatprep.subr.bf16.mxu0 0
    %3039 = vmatpush1.bf16.xpose.msra.mxu0 0
    %3040 = vmatprep.subr.bf16.mxu0 0
    %3041 = vmatpush1.bf16.xpose.msra.mxu0 0
    %3042 = vmatprep.subr.bf16.mxu0 0
    %3043 = vmatpush1.bf16.xpose.msra.mxu0 0
    %3044 = vmatprep.subr.bf16.mxu0 0
    %3045 = vmatpush1.bf16.xpose.msra.mxu0 0
    %3046 = vmatprep.subr.bf16.mxu0 0
    %3047 = vmatpush1.bf16.xpose.msra.mxu0 0
    %3048 = vmatprep.mubr.bf16.mxu0 0
    %3049 = vmatmul.mubr.bf16.gmra.mrb[0].mxu0 %v3014
    %v3050 = vpop.f32.mrb[0].mxu0
    %v3051 = vadd.f32 0.0, %v3050
    %v3052 = vpop.f32.mrb[0].mxu0
    %v3053 = vpop.f32.mrb[0].mxu0
    %v3054 = vpop.f32.mrb[0].mxu0
    %3055 = vdwg.mxu0
    %v3056 = vmul.f32 %v3005, 0.25
    %v3057 = vmul.f32 %v3051, 0.25
    %v3058 = vsel %vm368, %v3056, -inf
    %3059 = vmax.xlane.f32.xlu0 %v3058
    %v3060 = vpop.xlane.xlu0 %3059
    %v3061 = vsel %vm368, %v3057, -inf
    %3062 = vmax.xlane.f32.xlu0 %v3061
    %v3063 = vpop.xlane.xlu0 %3062
    %v3064 = vsub.f32 %v3056, %v3060
    %v3065 = vsub.f32 %v3057, %v3063
    %v3066 = vmul.f32 %v3064, 1.442695
    %v3067 = vpow.pop %v3066
    %v3068 = vmul.f32 %v3065, 1.442695
    %v3069 = vpow.pop %v3068
    %v3070 = vsel %vm368, %v3067, 0.0
    %3071 = vadd.xlane.f32.xlu0 %v3070
    %v3072 = vpop.xlane.xlu0 %3071
    %v3073 = vsel %vm368, %v3069, 0.0
    %3074 = vadd.xlane.f32.xlu0 %v3073
    %v3075 = vpop.xlane.xlu0 %3074
    %v3076 = vrcp.pop %v3072
    %v3077 = vrcp.pop %v3075
    %v3078 = vmul.f32 %v3067, %v3076
    %v3079 = vmul.f32 %v3069, %v3077
    %v3080 = vpack.c.bf16 %v3078, %v3078
    %v3081 = vpack.c.bf16 %v3079, %v3079
    %v3083 = vsel %vm368, %v3080, 0
    %3085 = vmatprep.subr.bf16.mxu0 0
    %3086 = vmatpush1.bf16.msra.mxu0 %v1296
    %3087 = vmatprep.subr.bf16.mxu0 0
    %3088 = vmatpush1.bf16.msra.mxu0 0
    %3089 = vmatprep.subr.bf16.mxu0 0
    %3090 = vmatpush1.bf16.msra.mxu0 0
    %3091 = vmatprep.subr.bf16.mxu0 0
    %3092 = vmatpush1.bf16.msra.mxu0 0
    %3093 = vmatprep.subr.bf16.mxu0 0
    %3094 = vmatpush1.bf16.msra.mxu0 0
    %3095 = vmatprep.subr.bf16.mxu0 0
    %3096 = vmatpush1.bf16.msra.mxu0 0
    %3097 = vmatprep.subr.bf16.mxu0 0
    %3098 = vmatpush1.bf16.msra.mxu0 0
    %3099 = vmatprep.subr.bf16.mxu0 0
    %3100 = vmatpush1.bf16.msra.mxu0 0
    %3101 = vmatprep.subr.bf16.mxu0 0
    %3102 = vmatpush1.bf16.msra.mxu0 0
    %3103 = vmatprep.subr.bf16.mxu0 0
    %3104 = vmatpush1.bf16.msra.mxu0 0
    %3105 = vmatprep.subr.bf16.mxu0 0
    %3106 = vmatpush1.bf16.msra.mxu0 0
    %3107 = vmatprep.subr.bf16.mxu0 0
    %3108 = vmatpush1.bf16.msra.mxu0 0
    %3109 = vmatprep.subr.bf16.mxu0 0
    %3110 = vmatpush1.bf16.msra.mxu0 0
    %3111 = vmatprep.subr.bf16.mxu0 0
    %3112 = vmatpush1.bf16.msra.mxu0 0
    %3113 = vmatprep.subr.bf16.mxu0 0
    %3114 = vmatpush1.bf16.msra.mxu0 0
    %3115 = vmatprep.subr.bf16.mxu0 0
    %3116 = vmatpush1.bf16.msra.mxu0 0
    %3117 = vmatprep.mubr.bf16.mxu0 0
    %3118 = vmatmul.mubr.bf16.gmra.mrb[0].mxu0 %v3083
    %v3119 = vpop.f32.mrb[0].mxu0
    %v3120 = vadd.f32 0.0, %v3119
    %v3121 = vpop.f32.mrb[0].mxu0
    %v3122 = vpop.f32.mrb[0].mxu0
    %v3123 = vpop.f32.mrb[0].mxu0
    %3124 = vdwg.mxu0
    %v3126 = vsel %vm368, %v3081, 0
    %3128 = vmatprep.subr.bf16.mxu0 0
    %3129 = vmatpush1.bf16.msra.mxu0 %v1344
    %3130 = vmatprep.subr.bf16.mxu0 0
    %3131 = vmatpush1.bf16.msra.mxu0 0
    %3132 = vmatprep.subr.bf16.mxu0 0
    %3133 = vmatpush1.bf16.msra.mxu0 0
    %3134 = vmatprep.subr.bf16.mxu0 0
    %3135 = vmatpush1.bf16.msra.mxu0 0
    %3136 = vmatprep.subr.bf16.mxu0 0
    %3137 = vmatpush1.bf16.msra.mxu0 0
    %3138 = vmatprep.subr.bf16.mxu0 0
    %3139 = vmatpush1.bf16.msra.mxu0 0
    %3140 = vmatprep.subr.bf16.mxu0 0
    %3141 = vmatpush1.bf16.msra.mxu0 0
    %3142 = vmatprep.subr.bf16.mxu0 0
    %3143 = vmatpush1.bf16.msra.mxu0 0
    %3144 = vmatprep.subr.bf16.mxu0 0
    %3145 = vmatpush1.bf16.msra.mxu0 0
    %3146 = vmatprep.subr.bf16.mxu0 0
    %3147 = vmatpush1.bf16.msra.mxu0 0
    %3148 = vmatprep.subr.bf16.mxu0 0
    %3149 = vmatpush1.bf16.msra.mxu0 0
    %3150 = vmatprep.subr.bf16.mxu0 0
    %3151 = vmatpush1.bf16.msra.mxu0 0
    %3152 = vmatprep.subr.bf16.mxu0 0
    %3153 = vmatpush1.bf16.msra.mxu0 0
    %3154 = vmatprep.subr.bf16.mxu0 0
    %3155 = vmatpush1.bf16.msra.mxu0 0
    %3156 = vmatprep.subr.bf16.mxu0 0
    %3157 = vmatpush1.bf16.msra.mxu0 0
    %3158 = vmatprep.subr.bf16.mxu0 0
    %3159 = vmatpush1.bf16.msra.mxu0 0
    %3160 = vmatprep.mubr.bf16.mxu0 0
    %3161 = vmatmul.mubr.bf16.gmra.mrb[0].mxu0 %v3126
    %v3162 = vpop.f32.mrb[0].mxu0
    %v3163 = vadd.f32 0.0, %v3162
    %v3164 = vpop.f32.mrb[0].mxu0
    %v3165 = vpop.f32.mrb[0].mxu0
    %v3166 = vpop.f32.mrb[0].mxu0
    %3167 = vdwg.mxu0
    %3170 = vrot.lane.b32.xlu0 %v3120, 16
    %v3171 = vpop.permute.xlu0 %3170
    %3172 = vrot.lane.b32.xlu0 %v3163, 16
    %v3173 = vpop.permute.xlu0 %3172
    %v3176 = vsel %vm270, %v2916, %v3171
    %v3177 = vsel %vm270, %v2959, %v3173
    %v3178 = vpack.c.bf16 %v3177, %v3176
    %v3179 = vld [vmem:[#allocation2 + $0xd0] sm:$0xf]
    %v3180 = vld [vmem:[#allocation2 + $0xd4] sm:$0xf]
    %v3181 = vld [vmem:[#allocation2 + $0xd8] sm:$0xf]
    %v3182 = vld [vmem:[#allocation2 + $0xdc] sm:$0xf]
    %v3183 = vld [vmem:[%s3 + $0x6] sm:$0x1]
    %v3184 = vlaneseq
    %v3185 = vshrl.u32 %v3184, 7
    %v3186 = vsub.s32 0, %v3185
    %v3187 = vrot.slane %v3183, %v3186
    %v3192 = vunpack.c.l.b16 %v3179
    %v3193 = vunpack.c.l.b16 %v3180
    %v3194 = vunpack.c.l.b16 %v3181
    %v3195 = vunpack.c.l.b16 %v3182
    %v3196 = vpack.c.b16 %v3193, %v3192
    %v3197 = vpack.c.b16 %v3195, %v3194
    %v3201 = vsel %vm744, %v3178, 0
    %3203 = vmatprep.subr.bf16.mxu0 0
    %3204 = vmatpush1.bf16.msra.mxu0 %v3196
    %3205 = vmatprep.subr.bf16.mxu0 0
    %3206 = vmatpush1.bf16.msra.mxu0 %v3197
    %3207 = vmatprep.subr.bf16.mxu0 0
    %3208 = vmatpush1.bf16.msra.mxu0 0
    %3209 = vmatprep.subr.bf16.mxu0 0
    %3210 = vmatpush1.bf16.msra.mxu0 0
    %3211 = vmatprep.subr.bf16.mxu0 0
    %3212 = vmatpush1.bf16.msra.mxu0 0
    %3213 = vmatprep.subr.bf16.mxu0 0
    %3214 = vmatpush1.bf16.msra.mxu0 0
    %3215 = vmatprep.subr.bf16.mxu0 0
    %3216 = vmatpush1.bf16.msra.mxu0 0
    %3217 = vmatprep.subr.bf16.mxu0 0
    %3218 = vmatpush1.bf16.msra.mxu0 0
    %3219 = vmatprep.subr.bf16.mxu0 0
    %3220 = vmatpush1.bf16.msra.mxu0 0
    %3221 = vmatprep.subr.bf16.mxu0 0
    %3222 = vmatpush1.bf16.msra.mxu0 0
    %3223 = vmatprep.subr.bf16.mxu0 0
    %3224 = vmatpush1.bf16.msra.mxu0 0
    %3225 = vmatprep.subr.bf16.mxu0 0
    %3226 = vmatpush1.bf16.msra.mxu0 0
    %3227 = vmatprep.subr.bf16.mxu0 0
    %3228 = vmatpush1.bf16.msra.mxu0 0
    %3229 = vmatprep.subr.bf16.mxu0 0
    %3230 = vmatpush1.bf16.msra.mxu0 0
    %3231 = vmatprep.subr.bf16.mxu0 0
    %3232 = vmatpush1.bf16.msra.mxu0 0
    %3233 = vmatprep.subr.bf16.mxu0 0
    %3234 = vmatpush1.bf16.msra.mxu0 0
    %3235 = vmatprep.mubr.bf16.mxu0 0
    %3236 = vmatmul.mubr.bf16.gmra.mrb[0].mxu0 %v3201
    %v3237 = vpop.f32.mrb[0].mxu0
    %v3238 = vadd.f32 %v3187, %v3237
    %v3239 = vpop.f32.mrb[0].mxu0
    %v3240 = vpop.f32.mrb[0].mxu0
    %v3241 = vadd.f32 %v3187, %v3240
    %v3242 = vpop.f32.mrb[0].mxu0
    %3243 = vdwg.mxu0
    %v3244 = vadd.f32 %v2651, %v3238
    %v3245 = vadd.f32 %v2652, %v3241
    %3246 = vadd.xlane.f32.xlu0 %v3244
    %v3247 = vpop.xlane.xlu0 %3246
    %3248 = vadd.xlane.f32.xlu0 %v3245
    %v3249 = vpop.xlane.xlu0 %3248
    %v3250 = vmul.f32 %v3247, 0.03125
    %v3251 = vmul.f32 %v3249, 0.03125
    %v3252 = vmul.f32 %v3244, %v3244
    %v3253 = vmul.f32 %v3245, %v3245
    %3254 = vadd.xlane.f32.xlu0 %v3252
    %v3255 = vpop.xlane.xlu0 %3254
    %3256 = vadd.xlane.f32.xlu0 %v3253
    %v3257 = vpop.xlane.xlu0 %3256
    %v3258 = vmul.f32 %v3255, 0.03125
    %v3259 = vmul.f32 %v3257, 0.03125
    %v3260 = vmul.f32 %v3250, %v3250
    %v3261 = vmul.f32 %v3251, %v3251
    %v3262 = vsub.f32 %v3258, %v3260
    %v3263 = vsub.f32 %v3259, %v3261
    %v3264 = vsub.f32 %v3244, %v3250
    %v3265 = vsub.f32 %v3245, %v3251
    %v3266 = vadd.f32 %v3262, 1e-05
    %v3267 = vadd.f32 %v3263, 1e-05
    %v3268 = vrsqrt.pop %v3266
    %v3269 = vrsqrt.pop %v3267
    %v3270 = vmul.f32 %v3264, %v3268
    %v3271 = vmul.f32 %v3265, %v3269
    %v3272 = vld [vmem:[%s3 + $0x7] sm:$0x1]
    %v3273 = vlaneseq
    %v3274 = vshrl.u32 %v3273, 7
    %v3275 = vsub.s32 0, %v3274
    %v3276 = vrot.slane %v3272, %v3275
    %v3277 = vmul.f32 %v3270, %v3276
    %v3278 = vmul.f32 %v3271, %v3276
    %v3279 = vld [vmem:[%s3 + $0x8] sm:$0x1]
    %v3280 = vlaneseq
    %v3281 = vshrl.u32 %v3280, 7
    %v3282 = vsub.s32 0, %v3281
    %v3283 = vrot.slane %v3279, %v3282
    %v3284 = vadd.f32 %v3277, %v3283
    %v3285 = vadd.f32 %v3278, %v3283
    %v3286 = vpack.c.bf16 %v3285, %v3284
    %v3287 = vld [vmem:[#allocation2 + $0xe0] sm:$0xf]
    %v3288 = vld [vmem:[#allocation2 + $0xe4] sm:$0xf]
    %v3289 = vld [vmem:[#allocation2 + $0xe8] sm:$0xf]
    %v3290 = vld [vmem:[#allocation2 + $0xec] sm:$0xf]
    %v3291 = vld [vmem:[#allocation2 + $0xf0] sm:$0xf]
    %v3292 = vld [vmem:[#allocation2 + $0xf4] sm:$0xf]
    %v3293 = vld [vmem:[#allocation2 + $0xf8] sm:$0xf]
    %v3294 = vld [vmem:[#allocation2 + $0xfc] sm:$0xf]
    %v3295 = vld [vmem:[#allocation2 + $0x100] sm:$0xf]
    %v3296 = vld [vmem:[#allocation2 + $0x104] sm:$0xf]
    %v3297 = vld [vmem:[#allocation2 + $0x108] sm:$0xf]
    %v3298 = vld [vmem:[#allocation2 + $0x10c] sm:$0xf]
    %v3299 = vld [vmem:[#allocation2 + $0x110] sm:$0xf]
    %v3300 = vld [vmem:[#allocation2 + $0x114] sm:$0xf]
    %v3301 = vld [vmem:[#allocation2 + $0x118] sm:$0xf]
    %v3302 = vld [vmem:[#allocation2 + $0x11c] sm:$0xf]
    %v3303 = vld [vmem:[%s3 + $0x9] sm:$0x1]
    %v3304 = vlaneseq
    %v3305 = vshrl.u32 %v3304, 7
    %v3306 = vsub.s32 0, %v3305
    %v3307 = vrot.slane %v3303, %v3306
    %v3324 = vunpack.c.l.b16 %v3287
    %v3325 = vunpack.c.l.b16 %v3288
    %v3326 = vunpack.c.l.b16 %v3289
    %v3327 = vunpack.c.l.b16 %v3290
    %v3328 = vunpack.c.l.b16 %v3291
    %v3329 = vunpack.c.l.b16 %v3292
    %v3330 = vunpack.c.l.b16 %v3293
    %v3331 = vunpack.c.l.b16 %v3294
    %v3332 = vunpack.c.l.b16 %v3295
    %v3333 = vunpack.c.l.b16 %v3296
    %v3334 = vunpack.c.l.b16 %v3297
    %v3335 = vunpack.c.l.b16 %v3298
    %v3336 = vunpack.c.l.b16 %v3299
    %v3337 = vunpack.c.l.b16 %v3300
    %v3338 = vunpack.c.l.b16 %v3301
    %v3339 = vunpack.c.l.b16 %v3302
    %v3340 = vpack.c.b16 %v3325, %v3324
    %v3341 = vpack.c.b16 %v3327, %v3326
    %v3342 = vpack.c.b16 %v3329, %v3328
    %v3343 = vpack.c.b16 %v3331, %v3330
    %v3344 = vpack.c.b16 %v3333, %v3332
    %v3345 = vpack.c.b16 %v3335, %v3334
    %v3346 = vpack.c.b16 %v3337, %v3336
    %v3347 = vpack.c.b16 %v3339, %v3338
    %3356 = vmatprep.subr.bf16.mxu0 0
    %3357 = vmatpush1.bf16.msra.mxu0 %v3340
    %3358 = vmatprep.subr.bf16.mxu0 0
    %3359 = vmatpush1.bf16.msra.mxu0 %v3341
    %3360 = vmatprep.subr.bf16.mxu0 0
    %3361 = vmatpush1.bf16.msra.mxu0 %v3342
    %3362 = vmatprep.subr.bf16.mxu0 0
    %3363 = vmatpush1.bf16.msra.mxu0 %v3343
    %3364 = vmatprep.subr.bf16.mxu0 0
    %3365 = vmatpush1.bf16.msra.mxu0 %v3344
    %3366 = vmatprep.subr.bf16.mxu0 0
    %3367 = vmatpush1.bf16.msra.mxu0 %v3345
    %3368 = vmatprep.subr.bf16.mxu0 0
    %3369 = vmatpush1.bf16.msra.mxu0 %v3346
    %3370 = vmatprep.subr.bf16.mxu0 0
    %3371 = vmatpush1.bf16.msra.mxu0 %v3347
    %3372 = vmatprep.subr.bf16.mxu0 0
    %3373 = vmatpush1.bf16.msra.mxu0 0
    %3374 = vmatprep.subr.bf16.mxu0 0
    %3375 = vmatpush1.bf16.msra.mxu0 0
    %3376 = vmatprep.subr.bf16.mxu0 0
    %3377 = vmatpush1.bf16.msra.mxu0 0
    %3378 = vmatprep.subr.bf16.mxu0 0
    %3379 = vmatpush1.bf16.msra.mxu0 0
    %3380 = vmatprep.subr.bf16.mxu0 0
    %3381 = vmatpush1.bf16.msra.mxu0 0
    %3382 = vmatprep.subr.bf16.mxu0 0
    %3383 = vmatpush1.bf16.msra.mxu0 0
    %3384 = vmatprep.subr.bf16.mxu0 0
    %3385 = vmatpush1.bf16.msra.mxu0 0
    %3386 = vmatprep.subr.bf16.mxu0 0
    %3387 = vmatpush1.bf16.msra.mxu0 0
    %3388 = vmatprep.mubr.bf16.mxu0 0
    %3389 = vmatmul.mubr.bf16.gmra.mrb[0].mxu0 %v3286
    %v3390 = vpop.f32.mrb[0].mxu0
    %v3391 = vadd.f32 %v3307, %v3390
    %v3392 = vpop.f32.mrb[0].mxu0
    %v3393 = vpop.f32.mrb[0].mxu0
    %v3394 = vadd.f32 %v3307, %v3393
    %v3395 = vpop.f32.mrb[0].mxu0
    %3396 = vdwg.mxu0
    %v3397 = vmax.f32 %v3391, 0.0
    %v3398 = vmax.f32 %v3394, 0.0
    %v3399 = vpack.c.bf16 %v3398, %v3397
    %v3400 = vld [vmem:[#allocation2 + $0x120] sm:$0xf]
    %v3401 = vld [vmem:[#allocation2 + $0x124] sm:$0xf]
    %v3402 = vld [vmem:[#allocation2 + $0x128] sm:$0xf]
    %v3403 = vld [vmem:[#allocation2 + $0x12c] sm:$0xf]
    %v3404 = vld [vmem:[#allocation2 + $0x130] sm:$0xf]
    %v3405 = vld [vmem:[#allocation2 + $0x134] sm:$0xf]
    %v3406 = vld [vmem:[#allocation2 + $0x138] sm:$0xf]
    %v3407 = vld [vmem:[#allocation2 + $0x13c] sm:$0xf]
    %v3408 = vld [vmem:[#allocation2 + $0x140] sm:$0xf]
    %v3409 = vld [vmem:[#allocation2 + $0x144] sm:$0xf]
    %v3410 = vld [vmem:[#allocation2 + $0x148] sm:$0xf]
    %v3411 = vld [vmem:[#allocation2 + $0x14c] sm:$0xf]
    %v3412 = vld [vmem:[#allocation2 + $0x150] sm:$0xf]
    %v3413 = vld [vmem:[#allocation2 + $0x154] sm:$0xf]
    %v3414 = vld [vmem:[#allocation2 + $0x158] sm:$0xf]
    %v3415 = vld [vmem:[#allocation2 + $0x15c] sm:$0xf]
    %v3416 = vld [vmem:[%s3 + $0xa] sm:$0x1]
    %v3417 = vlaneseq
    %v3418 = vshrl.u32 %v3417, 7
    %v3419 = vsub.s32 0, %v3418
    %v3420 = vrot.slane %v3416, %v3419
    %v3437 = vunpack.c.l.b16 %v3400
    %v3438 = vunpack.c.l.b16 %v3401
    %v3439 = vunpack.c.l.b16 %v3402
    %v3440 = vunpack.c.l.b16 %v3403
    %v3441 = vunpack.c.l.b16 %v3404
    %v3442 = vunpack.c.l.b16 %v3405
    %v3443 = vunpack.c.l.b16 %v3406
    %v3444 = vunpack.c.l.b16 %v3407
    %v3445 = vunpack.c.l.b16 %v3408
    %v3446 = vunpack.c.l.b16 %v3409
    %v3447 = vunpack.c.l.b16 %v3410
    %v3448 = vunpack.c.l.b16 %v3411
    %v3449 = vunpack.c.l.b16 %v3412
    %v3450 = vunpack.c.l.b16 %v3413
    %v3451 = vunpack.c.l.b16 %v3414
    %v3452 = vunpack.c.l.b16 %v3415
    %v3453 = vpack.c.b16 %v3438, %v3437
    %v3454 = vpack.c.b16 %v3440, %v3439
    %v3455 = vpack.c.b16 %v3442, %v3441
    %v3456 = vpack.c.b16 %v3444, %v3443
    %v3457 = vpack.c.b16 %v3446, %v3445
    %v3458 = vpack.c.b16 %v3448, %v3447
    %v3459 = vpack.c.b16 %v3450, %v3449
    %v3460 = vpack.c.b16 %v3452, %v3451
    %3469 = vmatprep.subr.bf16.mxu0 0
    %3470 = vmatpush1.bf16.msra.mxu0 %v3453
    %3471 = vmatprep.subr.bf16.mxu0 0
    %3472 = vmatpush1.bf16.msra.mxu0 %v3454
    %3473 = vmatprep.subr.bf16.mxu0 0
    %3474 = vmatpush1.bf16.msra.mxu0 %v3455
    %3475 = vmatprep.subr.bf16.mxu0 0
    %3476 = vmatpush1.bf16.msra.mxu0 %v3456
    %3477 = vmatprep.subr.bf16.mxu0 0
    %3478 = vmatpush1.bf16.msra.mxu0 %v3457
    %3479 = vmatprep.subr.bf16.mxu0 0
    %3480 = vmatpush1.bf16.msra.mxu0 %v3458
    %3481 = vmatprep.subr.bf16.mxu0 0
    %3482 = vmatpush1.bf16.msra.mxu0 %v3459
    %3483 = vmatprep.subr.bf16.mxu0 0
    %3484 = vmatpush1.bf16.msra.mxu0 %v3460
    %3485 = vmatprep.subr.bf16.mxu0 0
    %3486 = vmatpush1.bf16.msra.mxu0 0
    %3487 = vmatprep.subr.bf16.mxu0 0
    %3488 = vmatpush1.bf16.msra.mxu0 0
    %3489 = vmatprep.subr.bf16.mxu0 0
    %3490 = vmatpush1.bf16.msra.mxu0 0
    %3491 = vmatprep.subr.bf16.mxu0 0
    %3492 = vmatpush1.bf16.msra.mxu0 0
    %3493 = vmatprep.subr.bf16.mxu0 0
    %3494 = vmatpush1.bf16.msra.mxu0 0
    %3495 = vmatprep.subr.bf16.mxu0 0
    %3496 = vmatpush1.bf16.msra.mxu0 0
    %3497 = vmatprep.subr.bf16.mxu0 0
    %3498 = vmatpush1.bf16.msra.mxu0 0
    %3499 = vmatprep.subr.bf16.mxu0 0
    %3500 = vmatpush1.bf16.msra.mxu0 0
    %3501 = vmatprep.mubr.bf16.mxu0 0
    %3502 = vmatmul.mubr.bf16.gmra.mrb[0].mxu0 %v3399
    %v3503 = vpop.f32.mrb[0].mxu0
    %v3504 = vadd.f32 %v3420, %v3503
    %v3505 = vpop.f32.mrb[0].mxu0
    %v3506 = vpop.f32.mrb[0].mxu0
    %v3507 = vadd.f32 %v3420, %v3506
    %v3508 = vpop.f32.mrb[0].mxu0
    %3509 = vdwg.mxu0
    %v3510 = vadd.f32 %v3284, %v3504
    %v3511 = vadd.f32 %v3285, %v3507
    %3512 = vadd.xlane.f32.xlu0 %v3510
    %v3513 = vpop.xlane.xlu0 %3512
    %3514 = vadd.xlane.f32.xlu0 %v3511
    %v3515 = vpop.xlane.xlu0 %3514
    %v3516 = vmul.f32 %v3513, 0.03125
    %v3517 = vmul.f32 %v3515, 0.03125
    %v3518 = vmul.f32 %v3510, %v3510
    %v3519 = vmul.f32 %v3511, %v3511
    %3520 = vadd.xlane.f32.xlu0 %v3518
    %v3521 = vpop.xlane.xlu0 %3520
    %3522 = vadd.xlane.f32.xlu0 %v3519
    %v3523 = vpop.xlane.xlu0 %3522
    %v3524 = vmul.f32 %v3521, 0.03125
    %v3525 = vmul.f32 %v3523, 0.03125
    %v3526 = vmul.f32 %v3516, %v3516
    %v3527 = vmul.f32 %v3517, %v3517
    %v3528 = vsub.f32 %v3524, %v3526
    %v3529 = vsub.f32 %v3525, %v3527
    %v3530 = vsub.f32 %v3510, %v3516
    %v3531 = vsub.f32 %v3511, %v3517
    %v3532 = vadd.f32 %v3528, 1e-05
    %v3533 = vadd.f32 %v3529, 1e-05
    %v3534 = vrsqrt.pop %v3532
    %v3535 = vrsqrt.pop %v3533
    %v3536 = vmul.f32 %v3530, %v3534
    %v3537 = vmul.f32 %v3531, %v3535
    %v3538 = vld [vmem:[%s3 + $0xb] sm:$0x1]
    %v3539 = vlaneseq
    %v3540 = vshrl.u32 %v3539, 7
    %v3541 = vsub.s32 0, %v3540
    %v3542 = vrot.slane %v3538, %v3541
    %v3543 = vmul.f32 %v3536, %v3542
    %v3544 = vmul.f32 %v3537, %v3542
    %v3545 = vld [vmem:[%s3 + $0xc] sm:$0x1]
    %v3546 = vlaneseq
    %v3547 = vshrl.u32 %v3546, 7
    %v3548 = vsub.s32 0, %v3547
    %v3549 = vrot.slane %v3545, %v3548
    %v3550 = vadd.f32 %v3543, %v3549
    %v3551 = vadd.f32 %v3544, %v3549
    %v3552 = vpack.c.bf16 %v3551, %v3550
    %v3553 = vld [vmem:[#allocation2 + $0x230] sm:$0xf]
    %v3554 = vld [vmem:[#allocation2 + $0x234] sm:$0xf]
    %v3555 = vld [vmem:[#allocation2 + $0x238] sm:$0xf]
    %v3556 = vld [vmem:[#allocation2 + $0x23c] sm:$0xf]
    %v3557 = vld [vmem:[#allocation2 + $0x240] sm:$0xf]
    %v3558 = vld [vmem:[#allocation2 + $0x244] sm:$0xf]
    %v3559 = vld [vmem:[#allocation2 + $0x248] sm:$0xf]
    %v3560 = vld [vmem:[#allocation2 + $0x24c] sm:$0xf]
    %v3561 = vld [vmem:[#allocation2 + $0x250] sm:$0xf]
    %v3562 = vld [vmem:[#allocation2 + $0x254] sm:$0xf]
    %v3563 = vld [vmem:[#allocation2 + $0x258] sm:$0xf]
    %v3564 = vld [vmem:[#allocation2 + $0x25c] sm:$0xf]
    %v3565 = vld [vmem:[#allocation2 + $0x260] sm:$0xf]
    %v3566 = vld [vmem:[#allocation2 + $0x264] sm:$0xf]
    %v3567 = vld [vmem:[#allocation2 + $0x268] sm:$0xf]
    %v3568 = vld [vmem:[#allocation2 + $0x26c] sm:$0xf]
    %v3569 = vld [vmem:[%s3 + $0x15] sm:$0x1]
    %v3570 = vlaneseq
    %v3571 = vshrl.u32 %v3570, 7
    %v3572 = vsub.s32 0, %v3571
    %v3573 = vrot.slane %v3569, %v3572
    %v3590 = vunpack.c.l.b16 %v3553
    %v3591 = vunpack.c.l.b16 %v3554
    %v3592 = vunpack.c.l.b16 %v3555
    %v3593 = vunpack.c.l.b16 %v3556
    %v3594 = vunpack.c.l.b16 %v3557
    %v3595 = vunpack.c.l.b16 %v3558
    %v3596 = vunpack.c.l.b16 %v3559
    %v3597 = vunpack.c.l.b16 %v3560
    %v3598 = vunpack.c.l.b16 %v3561
    %v3599 = vunpack.c.l.b16 %v3562
    %v3600 = vunpack.c.l.b16 %v3563
    %v3601 = vunpack.c.l.b16 %v3564
    %v3602 = vunpack.c.l.b16 %v3565
    %v3603 = vunpack.c.l.b16 %v3566
    %v3604 = vunpack.c.l.b16 %v3567
    %v3605 = vunpack.c.l.b16 %v3568
    %v3606 = vpack.c.b16 %v3591, %v3590
    %v3607 = vpack.c.b16 %v3593, %v3592
    %v3608 = vpack.c.b16 %v3595, %v3594
    %v3609 = vpack.c.b16 %v3597, %v3596
    %v3610 = vpack.c.b16 %v3599, %v3598
    %v3611 = vpack.c.b16 %v3601, %v3600
    %v3612 = vpack.c.b16 %v3603, %v3602
    %v3613 = vpack.c.b16 %v3605, %v3604
    %3622 = vmatprep.subr.bf16.mxu0 0
    %3623 = vmatpush1.bf16.msra.mxu0 %v3606
    %3624 = vmatprep.subr.bf16.mxu0 0
    %3625 = vmatpush1.bf16.msra.mxu0 %v3607
    %3626 = vmatprep.subr.bf16.mxu0 0
    %3627 = vmatpush1.bf16.msra.mxu0 %v3608
    %3628 = vmatprep.subr.bf16.mxu0 0
    %3629 = vmatpush1.bf16.msra.mxu0 %v3609
    %3630 = vmatprep.subr.bf16.mxu0 0
    %3631 = vmatpush1.bf16.msra.mxu0 %v3610
    %3632 = vmatprep.subr.bf16.mxu0 0
    %3633 = vmatpush1.bf16.msra.mxu0 %v3611
    %3634 = vmatprep.subr.bf16.mxu0 0
    %3635 = vmatpush1.bf16.msra.mxu0 %v3612
    %3636 = vmatprep.subr.bf16.mxu0 0
    %3637 = vmatpush1.bf16.msra.mxu0 %v3613
    %3638 = vmatprep.subr.bf16.mxu0 0
    %3639 = vmatpush1.bf16.msra.mxu0 0
    %3640 = vmatprep.subr.bf16.mxu0 0
    %3641 = vmatpush1.bf16.msra.mxu0 0
    %3642 = vmatprep.subr.bf16.mxu0 0
    %3643 = vmatpush1.bf16.msra.mxu0 0
    %3644 = vmatprep.subr.bf16.mxu0 0
    %3645 = vmatpush1.bf16.msra.mxu0 0
    %3646 = vmatprep.subr.bf16.mxu0 0
    %3647 = vmatpush1.bf16.msra.mxu0 0
    %3648 = vmatprep.subr.bf16.mxu0 0
    %3649 = vmatpush1.bf16.msra.mxu0 0
    %3650 = vmatprep.subr.bf16.mxu0 0
    %3651 = vmatpush1.bf16.msra.mxu0 0
    %3652 = vmatprep.subr.bf16.mxu0 0
    %3653 = vmatpush1.bf16.msra.mxu0 0
    %3654 = vmatprep.mubr.bf16.mxu0 0
    %3655 = vmatmul.mubr.bf16.gmra.mrb[0].mxu0 %v3552
    %v3656 = vpop.f32.mrb[0].mxu0
    %v3657 = vadd.f32 %v3573, %v3656
    %v3658 = vpop.f32.mrb[0].mxu0
    %v3659 = vpop.f32.mrb[0].mxu0
    %v3660 = vadd.f32 %v3573, %v3659
    %v3661 = vpop.f32.mrb[0].mxu0
    %3662 = vdwg.mxu0
    %v3663 = vsel %vm1881, %v3657, 0.0
    %v3664 = vsel %vm1881, %v3660, 0.0
    %v3665 = vadd.f32 %v3663, %v3664
    %3666 = vadd.xlane.f32.xlu0 %v3665
    %v3667 = vpop.xlane.xlu0 %3666
    %v3668 = vrot.slane %v3667, 4
    %v3669 = vadd.f32 %v3667, %v3668
    %v3670 = vrot.slane %v3669, 2
    %v3671 = vadd.f32 %v3669, %v3670
    %v3672 = vrot.slane %v3671, 1
    %v3673 = vadd.f32 %v3671, %v3672
    %s3674 = vtos %v3673
    %v3675 = vrcp.pop 16.0
    %s3676 = vtos %v3675
    %s3677 = smul.f32 %s3674, %s3676
    %v3678 = vsub.f32 %v3657, %v3657
    %v3679 = vsub.f32 %v3660, %v3660
    %v3680 = vmul.f32 %v3678, 1.442695
    %v3681 = vpow.pop %v3680
    %v3682 = vmul.f32 %v3679, 1.442695
    %v3683 = vpow.pop %v3682
    %v3684 = vadd.f32 %v3681, 0.0
    %v3685 = vadd.f32 %v3683, 0.0
    %v3686 = vrcp.pop %v3684
    %v3687 = vrcp.pop %v3685
    %v3688 = vmul.f32 %v3681, %v3686
    %v3689 = vmul.f32 %v3683, %v3687
    %3692 = vrot.lane.b32.xlu0 %v3688, 127
    %v3693 = vpop.permute.xlu0 %3692
    %3694 = vrot.lane.b32.xlu0 %v3689, 127
    %v3695 = vpop.permute.xlu0 %3694
    %v3698 = vsel %vm1881, %v3693, 0.0
    %v3699 = vsel %vm1881, %v3695, 0.0
    %v3700 = vadd.f32 %v3698, %v3699
    %3701 = vadd.xlane.f32.xlu0 %v3700
    %v3702 = vpop.xlane.xlu0 %3701
    %v3703 = vrot.slane %v3702, 4
    %v3704 = vadd.f32 %v3702, %v3703
    %v3705 = vrot.slane %v3704, 2
    %v3706 = vadd.f32 %v3704, %v3705
    %v3707 = vrot.slane %v3706, 1
    %v3708 = vadd.f32 %v3706, %v3707
    %s3709 = vtos %v3708
    %v3710 = vrcp.pop 16.0
    %s3711 = vtos %v3710
    %s3712 = smul.f32 %s3709, %s3711
    %v3713 = vmul.f32 %v3550, %v3550
    %v3714 = vmul.f32 %v3551, %v3551
    %3715 = vadd.xlane.f32.xlu0 %v3713
    %v3716 = vpop.xlane.xlu0 %3715
    %3717 = vadd.xlane.f32.xlu0 %v3714
    %v3718 = vpop.xlane.xlu0 %3717
    %v3719 = vrsqrt.pop %v3716
    %v3720 = vmul.f32 %v3716, %v3719
    %vm3721 = vcmp.eq.f32.partialorder %v3716, inf
    %v3722 = vsel %vm3721, %v3716, %v3720
    %vm3723 = vcmp.eq.f32.partialorder %v3716, 0.0
    %v3724 = vand.u32 %v3716, 2147483648
    %v3725 = vsel %vm3723, %v3724, %v3722
    %v3726 = vrsqrt.pop %v3718
    %v3727 = vmul.f32 %v3718, %v3726
    %vm3728 = vcmp.eq.f32.partialorder %v3718, inf
    %v3729 = vsel %vm3728, %v3718, %v3727
    %vm3730 = vcmp.eq.f32.partialorder %v3718, 0.0
    %v3731 = vand.u32 %v3718, 2147483648
    %v3732 = vsel %vm3730, %v3731, %v3729
    %v3733 = vsel %vm1881, %v3725, 0.0
    %v3734 = vsel %vm1881, %v3732, 0.0
    %v3735 = vadd.f32 %v3733, %v3734
    %3736 = vadd.xlane.f32.xlu0 %v3735
    %v3737 = vpop.xlane.xlu0 %3736
    %v3738 = vrot.slane %v3737, 4
    %v3739 = vadd.f32 %v3737, %v3738
    %v3740 = vrot.slane %v3739, 2
    %v3741 = vadd.f32 %v3739, %v3740
    %v3742 = vrot.slane %v3741, 1
    %v3743 = vadd.f32 %v3741, %v3742
    %s3744 = vtos %v3743
    %v3745 = vrcp.pop 16.0
    %s3746 = vtos %v3745
    %s3747 = smul.f32 %s3744, %s3746
    %v3748 = vstv %s3677
    %v3749 = vsel %vm1967, %v3748, 0.0
    %v3750 = vstv %s3712
    %v3751 = vsel %vm1970, %v3750, 0.0
    %v3752 = vadd.f32 %v3749, %v3751
    %v3753 = vstv %s3747
    %v3754 = vsel %vm1974, %v3753, 0.0
    %v3755 = vadd.f32 %v3752, %v3754
    %v3756 = vadd.f32 %v3550, %v39
    %v3757 = vadd.f32 %v3551, %v40
    %v3758 = vpack.c.bf16 %v3757, %v3756
    %v3759 = vld [vmem:[#allocation2 + $0x160] sm:$0xf]
    %v3760 = vld [vmem:[#allocation2 + $0x164] sm:$0xf]
    %v3761 = vld [vmem:[#allocation2 + $0x168] sm:$0xf]
    %v3762 = vld [vmem:[#allocation2 + $0x16c] sm:$0xf]
    %v3763 = vld [vmem:[#allocation2 + $0x170] sm:$0xf]
    %v3764 = vld [vmem:[#allocation2 + $0x174] sm:$0xf]
    %v3765 = vld [vmem:[#allocation2 + $0x178] sm:$0xf]
    %v3766 = vld [vmem:[#allocation2 + $0x17c] sm:$0xf]
    %v3767 = vld [vmem:[#allocation2 + $0x180] sm:$0xf]
    %v3768 = vld [vmem:[#allocation2 + $0x184] sm:$0xf]
    %v3769 = vld [vmem:[#allocation2 + $0x188] sm:$0xf]
    %v3770 = vld [vmem:[#allocation2 + $0x18c] sm:$0xf]
    %v3771 = vld [vmem:[#allocation2 + $0x190] sm:$0xf]
    %v3772 = vld [vmem:[#allocation2 + $0x194] sm:$0xf]
    %v3773 = vld [vmem:[#allocation2 + $0x198] sm:$0xf]
    %v3774 = vld [vmem:[#allocation2 + $0x19c] sm:$0xf]
    %v3775 = vld [vmem:[%s3 + $0xd] sm:$0x1]
    %v3776 = vlaneseq
    %v3777 = vshrl.u32 %v3776, 7
    %v3778 = vsub.s32 0, %v3777
    %v3779 = vrot.slane %v3775, %v3778
    %v3796 = vunpack.c.l.b16 %v3759
    %v3797 = vunpack.c.l.b16 %v3760
    %v3798 = vunpack.c.l.b16 %v3761
    %v3799 = vunpack.c.l.b16 %v3762
    %v3800 = vunpack.c.l.b16 %v3763
    %v3801 = vunpack.c.l.b16 %v3764
    %v3802 = vunpack.c.l.b16 %v3765
    %v3803 = vunpack.c.l.b16 %v3766
    %v3804 = vunpack.c.l.b16 %v3767
    %v3805 = vunpack.c.l.b16 %v3768
    %v3806 = vunpack.c.l.b16 %v3769
    %v3807 = vunpack.c.l.b16 %v3770
    %v3808 = vunpack.c.l.b16 %v3771
    %v3809 = vunpack.c.l.b16 %v3772
    %v3810 = vunpack.c.l.b16 %v3773
    %v3811 = vunpack.c.l.b16 %v3774
    %v3812 = vpack.c.b16 %v3797, %v3796
    %v3813 = vpack.c.b16 %v3799, %v3798
    %v3814 = vpack.c.b16 %v3801, %v3800
    %v3815 = vpack.c.b16 %v3803, %v3802
    %v3816 = vpack.c.b16 %v3805, %v3804
    %v3817 = vpack.c.b16 %v3807, %v3806
    %v3818 = vpack.c.b16 %v3809, %v3808
    %v3819 = vpack.c.b16 %v3811, %v3810
    %3828 = vmatprep.subr.bf16.mxu0 0
    %3829 = vmatpush1.bf16.msra.mxu0 %v3812
    %3830 = vmatprep.subr.bf16.mxu0 0
    %3831 = vmatpush1.bf16.msra.mxu0 %v3813
    %3832 = vmatprep.subr.bf16.mxu0 0
    %3833 = vmatpush1.bf16.msra.mxu0 %v3814
    %3834 = vmatprep.subr.bf16.mxu0 0
    %3835 = vmatpush1.bf16.msra.mxu0 %v3815
    %3836 = vmatprep.subr.bf16.mxu0 0
    %3837 = vmatpush1.bf16.msra.mxu0 %v3816
    %3838 = vmatprep.subr.bf16.mxu0 0
    %3839 = vmatpush1.bf16.msra.mxu0 %v3817
    %3840 = vmatprep.subr.bf16.mxu0 0
    %3841 = vmatpush1.bf16.msra.mxu0 %v3818
    %3842 = vmatprep.subr.bf16.mxu0 0
    %3843 = vmatpush1.bf16.msra.mxu0 %v3819
    %3844 = vmatprep.subr.bf16.mxu0 0
    %3845 = vmatpush1.bf16.msra.mxu0 0
    %3846 = vmatprep.subr.bf16.mxu0 0
    %3847 = vmatpush1.bf16.msra.mxu0 0
    %3848 = vmatprep.subr.bf16.mxu0 0
    %3849 = vmatpush1.bf16.msra.mxu0 0
    %3850 = vmatprep.subr.bf16.mxu0 0
    %3851 = vmatpush1.bf16.msra.mxu0 0
    %3852 = vmatprep.subr.bf16.mxu0 0
    %3853 = vmatpush1.bf16.msra.mxu0 0
    %3854 = vmatprep.subr.bf16.mxu0 0
    %3855 = vmatpush1.bf16.msra.mxu0 0
    %3856 = vmatprep.subr.bf16.mxu0 0
    %3857 = vmatpush1.bf16.msra.mxu0 0
    %3858 = vmatprep.subr.bf16.mxu0 0
    %3859 = vmatpush1.bf16.msra.mxu0 0
    %3860 = vmatprep.mubr.bf16.mxu0 0
    %3861 = vmatmul.mubr.bf16.gmra.mrb[0].mxu0 %v3758
    %v3862 = vpop.f32.mrb[0].mxu0
    %v3863 = vadd.f32 %v3779, %v3862
    %v3864 = vpop.f32.mrb[0].mxu0
    %v3865 = vpop.f32.mrb[0].mxu0
    %v3866 = vadd.f32 %v3779, %v3865
    %v3867 = vpop.f32.mrb[0].mxu0
    %3868 = vdwg.mxu0
    %v3869 = vpack.c.bf16 %v3863, %v3863
    %v3870 = vpack.c.bf16 %v3866, %v3866
    %3872 = vrot.lane.b32.xlu0 %v3869, 96
    %v3873 = vpop.permute.xlu0 %3872
    %v3875 = vsel %vm744, %v3869, 0
    %v3878 = vsel %vm744, %v3873, 0
    %3880 = vmatprep.subr.bf16.mxu0 0
    %3881 = vmatpush1.bf16.xpose.msra.mxu0 %v3878
    %3882 = vmatprep.subr.bf16.mxu0 0
    %3883 = vmatpush1.bf16.xpose.msra.mxu0 0
    %3884 = vmatprep.subr.bf16.mxu0 0
    %3885 = vmatpush1.bf16.xpose.msra.mxu0 0
    %3886 = vmatprep.subr.bf16.mxu0 0
    %3887 = vmatpush1.bf16.xpose.msra.mxu0 0
    %3888 = vmatprep.subr.bf16.mxu0 0
    %3889 = vmatpush1.bf16.xpose.msra.mxu0 0
    %3890 = vmatprep.subr.bf16.mxu0 0
    %3891 = vmatpush1.bf16.xpose.msra.mxu0 0
    %3892 = vmatprep.subr.bf16.mxu0 0
    %3893 = vmatpush1.bf16.xpose.msra.mxu0 0
    %3894 = vmatprep.subr.bf16.mxu0 0
    %3895 = vmatpush1.bf16.xpose.msra.mxu0 0
    %3896 = vmatprep.subr.bf16.mxu0 0
    %3897 = vmatpush1.bf16.xpose.msra.mxu0 0
    %3898 = vmatprep.subr.bf16.mxu0 0
    %3899 = vmatpush1.bf16.xpose.msra.mxu0 0
    %3900 = vmatprep.subr.bf16.mxu0 0
    %3901 = vmatpush1.bf16.xpose.msra.mxu0 0
    %3902 = vmatprep.subr.bf16.mxu0 0
    %3903 = vmatpush1.bf16.xpose.msra.mxu0 0
    %3904 = vmatprep.subr.bf16.mxu0 0
    %3905 = vmatpush1.bf16.xpose.msra.mxu0 0
    %3906 = vmatprep.subr.bf16.mxu0 0
    %3907 = vmatpush1.bf16.xpose.msra.mxu0 0
    %3908 = vmatprep.subr.bf16.mxu0 0
    %3909 = vmatpush1.bf16.xpose.msra.mxu0 0
    %3910 = vmatprep.subr.bf16.mxu0 0
    %3911 = vmatpush1.bf16.xpose.msra.mxu0 0
    %3912 = vmatprep.mubr.bf16.mxu0 0
    %3913 = vmatmul.mubr.bf16.gmra.mrb[0].mxu0 %v3875
    %v3914 = vpop.f32.mrb[0].mxu0
    %v3915 = vadd.f32 0.0, %v3914
    %v3916 = vpop.f32.mrb[0].mxu0
    %v3917 = vpop.f32.mrb[0].mxu0
    %v3918 = vpop.f32.mrb[0].mxu0
    %3919 = vdwg.mxu0
    %3921 = vrot.lane.b32.xlu0 %v3870, 96
    %v3922 = vpop.permute.xlu0 %3921
    %v3924 = vsel %vm744, %v3870, 0
    %v3927 = vsel %vm744, %v3922, 0
    %3929 = vmatprep.subr.bf16.mxu0 0
    %3930 = vmatpush1.bf16.xpose.msra.mxu0 %v3927
    %3931 = vmatprep.subr.bf16.mxu0 0
    %3932 = vmatpush1.bf16.xpose.msra.mxu0 0
    %3933 = vmatprep.subr.bf16.mxu0 0
    %3934 = vmatpush1.bf16.xpose.msra.mxu0 0
    %3935 = vmatprep.subr.bf16.mxu0 0
    %3936 = vmatpush1.bf16.xpose.msra.mxu0 0
    %3937 = vmatprep.subr.bf16.mxu0 0
    %3938 = vmatpush1.bf16.xpose.msra.mxu0 0
    %3939 = vmatprep.subr.bf16.mxu0 0
    %3940 = vmatpush1.bf16.xpose.msra.mxu0 0
    %3941 = vmatprep.subr.bf16.mxu0 0
    %3942 = vmatpush1.bf16.xpose.msra.mxu0 0
    %3943 = vmatprep.subr.bf16.mxu0 0
    %3944 = vmatpush1.bf16.xpose.msra.mxu0 0
    %3945 = vmatprep.subr.bf16.mxu0 0
    %3946 = vmatpush1.bf16.xpose.msra.mxu0 0
    %3947 = vmatprep.subr.bf16.mxu0 0
    %3948 = vmatpush1.bf16.xpose.msra.mxu0 0
    %3949 = vmatprep.subr.bf16.mxu0 0
    %3950 = vmatpush1.bf16.xpose.msra.mxu0 0
    %3951 = vmatprep.subr.bf16.mxu0 0
    %3952 = vmatpush1.bf16.xpose.msra.mxu0 0
    %3953 = vmatprep.subr.bf16.mxu0 0
    %3954 = vmatpush1.bf16.xpose.msra.mxu0 0
    %3955 = vmatprep.subr.bf16.mxu0 0
    %3956 = vmatpush1.bf16.xpose.msra.mxu0 0
    %3957 = vmatprep.subr.bf16.mxu0 0
    %3958 = vmatpush1.bf16.xpose.msra.mxu0 0
    %3959 = vmatprep.subr.bf16.mxu0 0
    %3960 = vmatpush1.bf16.xpose.msra.mxu0 0
    %3961 = vmatprep.mubr.bf16.mxu0 0
    %3962 = vmatmul.mubr.bf16.gmra.mrb[0].mxu0 %v3924
    %v3963 = vpop.f32.mrb[0].mxu0
    %v3964 = vadd.f32 0.0, %v3963
    %v3965 = vpop.f32.mrb[0].mxu0
    %v3966 = vpop.f32.mrb[0].mxu0
    %v3967 = vpop.f32.mrb[0].mxu0
    %3968 = vdwg.mxu0
    %v3969 = vmul.f32 %v3915, 0.17677669
    %v3970 = vmul.f32 %v3964, 0.17677669
    %v3971 = vsel %vm368, %v3969, -inf
    %3972 = vmax.xlane.f32.xlu0 %v3971
    %v3973 = vpop.xlane.xlu0 %3972
    %v3974 = vsel %vm368, %v3970, -inf
    %3975 = vmax.xlane.f32.xlu0 %v3974
    %v3976 = vpop.xlane.xlu0 %3975
    %v3977 = vsub.f32 %v3969, %v3973
    %v3978 = vsub.f32 %v3970, %v3976
    %v3979 = vmul.f32 %v3977, 1.442695
    %v3980 = vpow.pop %v3979
    %v3981 = vmul.f32 %v3978, 1.442695
    %v3982 = vpow.pop %v3981
    %v3983 = vsel %vm368, %v3980, 0.0
    %3984 = vadd.xlane.f32.xlu0 %v3983
    %v3985 = vpop.xlane.xlu0 %3984
    %v3986 = vsel %vm368, %v3982, 0.0
    %3987 = vadd.xlane.f32.xlu0 %v3986
    %v3988 = vpop.xlane.xlu0 %3987
    %v3989 = vrcp.pop %v3985
    %v3990 = vrcp.pop %v3988
    %v3991 = vmul.f32 %v3980, %v3989
    %v3992 = vmul.f32 %v3982, %v3990
    %v3993 = vpack.c.bf16 %v3991, %v3991
    %v3994 = vpack.c.bf16 %v3992, %v3992
    %3995 = vrot.lane.b32.xlu0 %v3869, 64
    %v3996 = vpop.permute.xlu0 %3995
    %v3998 = vsel %vm368, %v3993, 0
    %v4001 = vsel %vm398, %v3996, 0
    %4003 = vmatprep.subr.bf16.mxu0 0
    %4004 = vmatpush1.bf16.msra.mxu0 %v4001
    %4005 = vmatprep.subr.bf16.mxu0 0
    %4006 = vmatpush1.bf16.msra.mxu0 0
    %4007 = vmatprep.subr.bf16.mxu0 0
    %4008 = vmatpush1.bf16.msra.mxu0 0
    %4009 = vmatprep.subr.bf16.mxu0 0
    %4010 = vmatpush1.bf16.msra.mxu0 0
    %4011 = vmatprep.subr.bf16.mxu0 0
    %4012 = vmatpush1.bf16.msra.mxu0 0
    %4013 = vmatprep.subr.bf16.mxu0 0
    %4014 = vmatpush1.bf16.msra.mxu0 0
    %4015 = vmatprep.subr.bf16.mxu0 0
    %4016 = vmatpush1.bf16.msra.mxu0 0
    %4017 = vmatprep.subr.bf16.mxu0 0
    %4018 = vmatpush1.bf16.msra.mxu0 0
    %4019 = vmatprep.subr.bf16.mxu0 0
    %4020 = vmatpush1.bf16.msra.mxu0 0
    %4021 = vmatprep.subr.bf16.mxu0 0
    %4022 = vmatpush1.bf16.msra.mxu0 0
    %4023 = vmatprep.subr.bf16.mxu0 0
    %4024 = vmatpush1.bf16.msra.mxu0 0
    %4025 = vmatprep.subr.bf16.mxu0 0
    %4026 = vmatpush1.bf16.msra.mxu0 0
    %4027 = vmatprep.subr.bf16.mxu0 0
    %4028 = vmatpush1.bf16.msra.mxu0 0
    %4029 = vmatprep.subr.bf16.mxu0 0
    %4030 = vmatpush1.bf16.msra.mxu0 0
    %4031 = vmatprep.subr.bf16.mxu0 0
    %4032 = vmatpush1.bf16.msra.mxu0 0
    %4033 = vmatprep.subr.bf16.mxu0 0
    %4034 = vmatpush1.bf16.msra.mxu0 0
    %4035 = vmatprep.mubr.bf16.mxu0 0
    %4036 = vmatmul.mubr.bf16.gmra.mrb[0].mxu0 %v3998
    %v4037 = vpop.f32.mrb[0].mxu0
    %v4038 = vadd.f32 0.0, %v4037
    %v4039 = vpop.f32.mrb[0].mxu0
    %v4040 = vpop.f32.mrb[0].mxu0
    %v4041 = vpop.f32.mrb[0].mxu0
    %4042 = vdwg.mxu0
    %4043 = vrot.lane.b32.xlu0 %v3870, 64
    %v4044 = vpop.permute.xlu0 %4043
    %v4046 = vsel %vm368, %v3994, 0
    %v4049 = vsel %vm398, %v4044, 0
    %4051 = vmatprep.subr.bf16.mxu0 0
    %4052 = vmatpush1.bf16.msra.mxu0 %v4049
    %4053 = vmatprep.subr.bf16.mxu0 0
    %4054 = vmatpush1.bf16.msra.mxu0 0
    %4055 = vmatprep.subr.bf16.mxu0 0
    %4056 = vmatpush1.bf16.msra.mxu0 0
    %4057 = vmatprep.subr.bf16.mxu0 0
    %4058 = vmatpush1.bf16.msra.mxu0 0
    %4059 = vmatprep.subr.bf16.mxu0 0
    %4060 = vmatpush1.bf16.msra.mxu0 0
    %4061 = vmatprep.subr.bf16.mxu0 0
    %4062 = vmatpush1.bf16.msra.mxu0 0
    %4063 = vmatprep.subr.bf16.mxu0 0
    %4064 = vmatpush1.bf16.msra.mxu0 0
    %4065 = vmatprep.subr.bf16.mxu0 0
    %4066 = vmatpush1.bf16.msra.mxu0 0
    %4067 = vmatprep.subr.bf16.mxu0 0
    %4068 = vmatpush1.bf16.msra.mxu0 0
    %4069 = vmatprep.subr.bf16.mxu0 0
    %4070 = vmatpush1.bf16.msra.mxu0 0
    %4071 = vmatprep.subr.bf16.mxu0 0
    %4072 = vmatpush1.bf16.msra.mxu0 0
    %4073 = vmatprep.subr.bf16.mxu0 0
    %4074 = vmatpush1.bf16.msra.mxu0 0
    %4075 = vmatprep.subr.bf16.mxu0 0
    %4076 = vmatpush1.bf16.msra.mxu0 0
    %4077 = vmatprep.subr.bf16.mxu0 0
    %4078 = vmatpush1.bf16.msra.mxu0 0
    %4079 = vmatprep.subr.bf16.mxu0 0
    %4080 = vmatpush1.bf16.msra.mxu0 0
    %4081 = vmatprep.subr.bf16.mxu0 0
    %4082 = vmatpush1.bf16.msra.mxu0 0
    %4083 = vmatprep.mubr.bf16.mxu0 0
    %4084 = vmatmul.mubr.bf16.gmra.mrb[0].mxu0 %v4046
    %v4085 = vpop.f32.mrb[0].mxu0
    %v4086 = vadd.f32 0.0, %v4085
    %v4087 = vpop.f32.mrb[0].mxu0
    %v4088 = vpop.f32.mrb[0].mxu0
    %v4089 = vpop.f32.mrb[0].mxu0
    %4090 = vdwg.mxu0
    %v4091 = vpack.c.bf16 %v4086, %v4038
    %v4092 = vld [vmem:[#allocation2 + $0x1a0] sm:$0xf]
    %v4093 = vld [vmem:[#allocation2 + $0x1a4] sm:$0xf]
    %v4094 = vld [vmem:[#allocation2 + $0x1a8] sm:$0xf]
    %v4095 = vld [vmem:[#allocation2 + $0x1ac] sm:$0xf]
    %v4096 = vld [vmem:[%s3 + $0xe] sm:$0x1]
    %v4097 = vlaneseq
    %v4098 = vshrl.u32 %v4097, 7
    %v4099 = vsub.s32 0, %v4098
    %v4100 = vrot.slane %v4096, %v4099
    %v4105 = vunpack.c.l.b16 %v4092
    %v4106 = vunpack.c.l.b16 %v4093
    %v4107 = vunpack.c.l.b16 %v4094
    %v4108 = vunpack.c.l.b16 %v4095
    %v4109 = vpack.c.b16 %v4106, %v4105
    %v4110 = vpack.c.b16 %v4108, %v4107
    %v4114 = vsel %vm744, %v4091, 0
    %4116 = vmatprep.subr.bf16.mxu0 0
    %4117 = vmatpush1.bf16.msra.mxu0 %v4109
    %4118 = vmatprep.subr.bf16.mxu0 0
    %4119 = vmatpush1.bf16.msra.mxu0 %v4110
    %4120 = vmatprep.subr.bf16.mxu0 0
    %4121 = vmatpush1.bf16.msra.mxu0 0
    %4122 = vmatprep.subr.bf16.mxu0 0
    %4123 = vmatpush1.bf16.msra.mxu0 0
    %4124 = vmatprep.subr.bf16.mxu0 0
    %4125 = vmatpush1.bf16.msra.mxu0 0
    %4126 = vmatprep.subr.bf16.mxu0 0
    %4127 = vmatpush1.bf16.msra.mxu0 0
    %4128 = vmatprep.subr.bf16.mxu0 0
    %4129 = vmatpush1.bf16.msra.mxu0 0
    %4130 = vmatprep.subr.bf16.mxu0 0
    %4131 = vmatpush1.bf16.msra.mxu0 0
    %4132 = vmatprep.subr.bf16.mxu0 0
    %4133 = vmatpush1.bf16.msra.mxu0 0
    %4134 = vmatprep.subr.bf16.mxu0 0
    %4135 = vmatpush1.bf16.msra.mxu0 0
    %4136 = vmatprep.subr.bf16.mxu0 0
    %4137 = vmatpush1.bf16.msra.mxu0 0
    %4138 = vmatprep.subr.bf16.mxu0 0
    %4139 = vmatpush1.bf16.msra.mxu0 0
    %4140 = vmatprep.subr.bf16.mxu0 0
    %4141 = vmatpush1.bf16.msra.mxu0 0
    %4142 = vmatprep.subr.bf16.mxu0 0
    %4143 = vmatpush1.bf16.msra.mxu0 0
    %4144 = vmatprep.subr.bf16.mxu0 0
    %4145 = vmatpush1.bf16.msra.mxu0 0
    %4146 = vmatprep.subr.bf16.mxu0 0
    %4147 = vmatpush1.bf16.msra.mxu0 0
    %4148 = vmatprep.mubr.bf16.mxu0 0
    %4149 = vmatmul.mubr.bf16.gmra.mrb[0].mxu0 %v4114
    %v4150 = vpop.f32.mrb[0].mxu0
    %v4151 = vadd.f32 %v4100, %v4150
    %v4152 = vpop.f32.mrb[0].mxu0
    %v4153 = vpop.f32.mrb[0].mxu0
    %v4154 = vadd.f32 %v4100, %v4153
    %v4155 = vpop.f32.mrb[0].mxu0
    %4156 = vdwg.mxu0
    %v4157 = vadd.f32 %v3756, %v4151
    %v4158 = vadd.f32 %v3757, %v4154
    %4159 = vadd.xlane.f32.xlu0 %v4157
    %v4160 = vpop.xlane.xlu0 %4159
    %4161 = vadd.xlane.f32.xlu0 %v4158
    %v4162 = vpop.xlane.xlu0 %4161
    %v4163 = vmul.f32 %v4160, 0.03125
    %v4164 = vmul.f32 %v4162, 0.03125
    %v4165 = vmul.f32 %v4157, %v4157
    %v4166 = vmul.f32 %v4158, %v4158
    %4167 = vadd.xlane.f32.xlu0 %v4165
    %v4168 = vpop.xlane.xlu0 %4167
    %4169 = vadd.xlane.f32.xlu0 %v4166
    %v4170 = vpop.xlane.xlu0 %4169
    %v4171 = vmul.f32 %v4168, 0.03125
    %v4172 = vmul.f32 %v4170, 0.03125
    %v4173 = vmul.f32 %v4163, %v4163
    %v4174 = vmul.f32 %v4164, %v4164
    %v4175 = vsub.f32 %v4171, %v4173
    %v4176 = vsub.f32 %v4172, %v4174
    %v4177 = vsub.f32 %v4157, %v4163
    %v4178 = vsub.f32 %v4158, %v4164
    %v4179 = vadd.f32 %v4175, 1e-05
    %v4180 = vadd.f32 %v4176, 1e-05
    %v4181 = vrsqrt.pop %v4179
    %v4182 = vrsqrt.pop %v4180
    %v4183 = vmul.f32 %v4177, %v4181
    %v4184 = vmul.f32 %v4178, %v4182
    %v4185 = vld [vmem:[%s3 + $0xf] sm:$0x1]
    %v4186 = vlaneseq
    %v4187 = vshrl.u32 %v4186, 7
    %v4188 = vsub.s32 0, %v4187
    %v4189 = vrot.slane %v4185, %v4188
    %v4190 = vmul.f32 %v4183, %v4189
    %v4191 = vmul.f32 %v4184, %v4189
    %v4192 = vld [vmem:[%s3 + $0x10] sm:$0x1]
    %v4193 = vlaneseq
    %v4194 = vshrl.u32 %v4193, 7
    %v4195 = vsub.s32 0, %v4194
    %v4196 = vrot.slane %v4192, %v4195
    %v4197 = vadd.f32 %v4190, %v4196
    %v4198 = vadd.f32 %v4191, %v4196
    %v4199 = vpack.c.bf16 %v4198, %v4197
    %v4200 = vld [vmem:[#allocation2 + $0x1b0] sm:$0xf]
    %v4201 = vld [vmem:[#allocation2 + $0x1b4] sm:$0xf]
    %v4202 = vld [vmem:[#allocation2 + $0x1b8] sm:$0xf]
    %v4203 = vld [vmem:[#allocation2 + $0x1bc] sm:$0xf]
    %v4204 = vld [vmem:[#allocation2 + $0x1c0] sm:$0xf]
    %v4205 = vld [vmem:[#allocation2 + $0x1c4] sm:$0xf]
    %v4206 = vld [vmem:[#allocation2 + $0x1c8] sm:$0xf]
    %v4207 = vld [vmem:[#allocation2 + $0x1cc] sm:$0xf]
    %v4208 = vld [vmem:[#allocation2 + $0x1d0] sm:$0xf]
    %v4209 = vld [vmem:[#allocation2 + $0x1d4] sm:$0xf]
    %v4210 = vld [vmem:[#allocation2 + $0x1d8] sm:$0xf]
    %v4211 = vld [vmem:[#allocation2 + $0x1dc] sm:$0xf]
    %v4212 = vld [vmem:[#allocation2 + $0x1e0] sm:$0xf]
    %v4213 = vld [vmem:[#allocation2 + $0x1e4] sm:$0xf]
    %v4214 = vld [vmem:[#allocation2 + $0x1e8] sm:$0xf]
    %v4215 = vld [vmem:[#allocation2 + $0x1ec] sm:$0xf]
    %v4216 = vld [vmem:[%s3 + $0x11] sm:$0x1]
    %v4217 = vlaneseq
    %v4218 = vshrl.u32 %v4217, 7
    %v4219 = vsub.s32 0, %v4218
    %v4220 = vrot.slane %v4216, %v4219
    %v4237 = vunpack.c.l.b16 %v4200
    %v4238 = vunpack.c.l.b16 %v4201
    %v4239 = vunpack.c.l.b16 %v4202
    %v4240 = vunpack.c.l.b16 %v4203
    %v4241 = vunpack.c.l.b16 %v4204
    %v4242 = vunpack.c.l.b16 %v4205
    %v4243 = vunpack.c.l.b16 %v4206
    %v4244 = vunpack.c.l.b16 %v4207
    %v4245 = vunpack.c.l.b16 %v4208
    %v4246 = vunpack.c.l.b16 %v4209
    %v4247 = vunpack.c.l.b16 %v4210
    %v4248 = vunpack.c.l.b16 %v4211
    %v4249 = vunpack.c.l.b16 %v4212
    %v4250 = vunpack.c.l.b16 %v4213
    %v4251 = vunpack.c.l.b16 %v4214
    %v4252 = vunpack.c.l.b16 %v4215
    %v4253 = vpack.c.b16 %v4238, %v4237
    %v4254 = vpack.c.b16 %v4240, %v4239
    %v4255 = vpack.c.b16 %v4242, %v4241
    %v4256 = vpack.c.b16 %v4244, %v4243
    %v4257 = vpack.c.b16 %v4246, %v4245
    %v4258 = vpack.c.b16 %v4248, %v4247
    %v4259 = vpack.c.b16 %v4250, %v4249
    %v4260 = vpack.c.b16 %v4252, %v4251
    %4269 = vmatprep.subr.bf16.mxu0 0
    %4270 = vmatpush1.bf16.msra.mxu0 %v4253
    %4271 = vmatprep.subr.bf16.mxu0 0
    %4272 = vmatpush1.bf16.msra.mxu0 %v4254
    %4273 = vmatprep.subr.bf16.mxu0 0
    %4274 = vmatpush1.bf16.msra.mxu0 %v4255
    %4275 = vmatprep.subr.bf16.mxu0 0
    %4276 = vmatpush1.bf16.msra.mxu0 %v4256
    %4277 = vmatprep.subr.bf16.mxu0 0
    %4278 = vmatpush1.bf16.msra.mxu0 %v4257
    %4279 = vmatprep.subr.bf16.mxu0 0
    %4280 = vmatpush1.bf16.msra.mxu0 %v4258
    %4281 = vmatprep.subr.bf16.mxu0 0
    %4282 = vmatpush1.bf16.msra.mxu0 %v4259
    %4283 = vmatprep.subr.bf16.mxu0 0
    %4284 = vmatpush1.bf16.msra.mxu0 %v4260
    %4285 = vmatprep.subr.bf16.mxu0 0
    %4286 = vmatpush1.bf16.msra.mxu0 0
    %4287 = vmatprep.subr.bf16.mxu0 0
    %4288 = vmatpush1.bf16.msra.mxu0 0
    %4289 = vmatprep.subr.bf16.mxu0 0
    %4290 = vmatpush1.bf16.msra.mxu0 0
    %4291 = vmatprep.subr.bf16.mxu0 0
    %4292 = vmatpush1.bf16.msra.mxu0 0
    %4293 = vmatprep.subr.bf16.mxu0 0
    %4294 = vmatpush1.bf16.msra.mxu0 0
    %4295 = vmatprep.subr.bf16.mxu0 0
    %4296 = vmatpush1.bf16.msra.mxu0 0
    %4297 = vmatprep.subr.bf16.mxu0 0
    %4298 = vmatpush1.bf16.msra.mxu0 0
    %4299 = vmatprep.subr.bf16.mxu0 0
    %4300 = vmatpush1.bf16.msra.mxu0 0
    %4301 = vmatprep.mubr.bf16.mxu0 0
    %4302 = vmatmul.mubr.bf16.gmra.mrb[0].mxu0 %v4199
    %v4303 = vpop.f32.mrb[0].mxu0
    %v4304 = vadd.f32 %v4220, %v4303
    %v4305 = vpop.f32.mrb[0].mxu0
    %v4306 = vpop.f32.mrb[0].mxu0
    %v4307 = vadd.f32 %v4220, %v4306
    %v4308 = vpop.f32.mrb[0].mxu0
    %4309 = vdwg.mxu0
    %v4310 = vmax.f32 %v4304, 0.0
    %v4311 = vmax.f32 %v4307, 0.0
    %v4312 = vpack.c.bf16 %v4311, %v4310
    %v4313 = vld [vmem:[#allocation2 + $0x1f0] sm:$0xf]
    %v4314 = vld [vmem:[#allocation2 + $0x1f4] sm:$0xf]
    %v4315 = vld [vmem:[#allocation2 + $0x1f8] sm:$0xf]
    %v4316 = vld [vmem:[#allocation2 + $0x1fc] sm:$0xf]
    %v4317 = vld [vmem:[#allocation2 + $0x200] sm:$0xf]
    %v4318 = vld [vmem:[#allocation2 + $0x204] sm:$0xf]
    %v4319 = vld [vmem:[#allocation2 + $0x208] sm:$0xf]
    %v4320 = vld [vmem:[#allocation2 + $0x20c] sm:$0xf]
    %v4321 = vld [vmem:[#allocation2 + $0x210] sm:$0xf]
    %v4322 = vld [vmem:[#allocation2 + $0x214] sm:$0xf]
    %v4323 = vld [vmem:[#allocation2 + $0x218] sm:$0xf]
    %v4324 = vld [vmem:[#allocation2 + $0x21c] sm:$0xf]
    %v4325 = vld [vmem:[#allocation2 + $0x220] sm:$0xf]
    %v4326 = vld [vmem:[#allocation2 + $0x224] sm:$0xf]
    %v4327 = vld [vmem:[#allocation2 + $0x228] sm:$0xf]
    %v4328 = vld [vmem:[#allocation2 + $0x22c] sm:$0xf]
    %v4329 = vld [vmem:[%s3 + $0x12] sm:$0x1]
    %v4330 = vlaneseq
    %v4331 = vshrl.u32 %v4330, 7
    %v4332 = vsub.s32 0, %v4331
    %v4333 = vrot.slane %v4329, %v4332
    %v4350 = vunpack.c.l.b16 %v4313
    %v4351 = vunpack.c.l.b16 %v4314
    %v4352 = vunpack.c.l.b16 %v4315
    %v4353 = vunpack.c.l.b16 %v4316
    %v4354 = vunpack.c.l.b16 %v4317
    %v4355 = vunpack.c.l.b16 %v4318
    %v4356 = vunpack.c.l.b16 %v4319
    %v4357 = vunpack.c.l.b16 %v4320
    %v4358 = vunpack.c.l.b16 %v4321
    %v4359 = vunpack.c.l.b16 %v4322
    %v4360 = vunpack.c.l.b16 %v4323
    %v4361 = vunpack.c.l.b16 %v4324
    %v4362 = vunpack.c.l.b16 %v4325
    %v4363 = vunpack.c.l.b16 %v4326
    %v4364 = vunpack.c.l.b16 %v4327
    %v4365 = vunpack.c.l.b16 %v4328
    %v4366 = vpack.c.b16 %v4351, %v4350
    %v4367 = vpack.c.b16 %v4353, %v4352
    %v4368 = vpack.c.b16 %v4355, %v4354
    %v4369 = vpack.c.b16 %v4357, %v4356
    %v4370 = vpack.c.b16 %v4359, %v4358
    %v4371 = vpack.c.b16 %v4361, %v4360
    %v4372 = vpack.c.b16 %v4363, %v4362
    %v4373 = vpack.c.b16 %v4365, %v4364
    %4382 = vmatprep.subr.bf16.mxu0 0
    %4383 = vmatpush1.bf16.msra.mxu0 %v4366
    %4384 = vmatprep.subr.bf16.mxu0 0
    %4385 = vmatpush1.bf16.msra.mxu0 %v4367
    %4386 = vmatprep.subr.bf16.mxu0 0
    %4387 = vmatpush1.bf16.msra.mxu0 %v4368
    %4388 = vmatprep.subr.bf16.mxu0 0
    %4389 = vmatpush1.bf16.msra.mxu0 %v4369
    %4390 = vmatprep.subr.bf16.mxu0 0
    %4391 = vmatpush1.bf16.msra.mxu0 %v4370
    %4392 = vmatprep.subr.bf16.mxu0 0
    %4393 = vmatpush1.bf16.msra.mxu0 %v4371
    %4394 = vmatprep.subr.bf16.mxu0 0
    %4395 = vmatpush1.bf16.msra.mxu0 %v4372
    %4396 = vmatprep.subr.bf16.mxu0 0
    %4397 = vmatpush1.bf16.msra.mxu0 %v4373
    %4398 = vmatprep.subr.bf16.mxu0 0
    %4399 = vmatpush1.bf16.msra.mxu0 0
    %4400 = vmatprep.subr.bf16.mxu0 0
    %4401 = vmatpush1.bf16.msra.mxu0 0
    %4402 = vmatprep.subr.bf16.mxu0 0
    %4403 = vmatpush1.bf16.msra.mxu0 0
    %4404 = vmatprep.subr.bf16.mxu0 0
    %4405 = vmatpush1.bf16.msra.mxu0 0
    %4406 = vmatprep.subr.bf16.mxu0 0
    %4407 = vmatpush1.bf16.msra.mxu0 0
    %4408 = vmatprep.subr.bf16.mxu0 0
    %4409 = vmatpush1.bf16.msra.mxu0 0
    %4410 = vmatprep.subr.bf16.mxu0 0
    %4411 = vmatpush1.bf16.msra.mxu0 0
    %4412 = vmatprep.subr.bf16.mxu0 0
    %4413 = vmatpush1.bf16.msra.mxu0 0
    %4414 = vmatprep.mubr.bf16.mxu0 0
    %4415 = vmatmul.mubr.bf16.gmra.mrb[0].mxu0 %v4312
    %v4416 = vpop.f32.mrb[0].mxu0
    %v4417 = vadd.f32 %v4333, %v4416
    %v4418 = vpop.f32.mrb[0].mxu0
    %v4419 = vpop.f32.mrb[0].mxu0
    %v4420 = vadd.f32 %v4333, %v4419
    %v4421 = vpop.f32.mrb[0].mxu0
    %4422 = vdwg.mxu0
    %v4423 = vadd.f32 %v4197, %v4417
    %v4424 = vadd.f32 %v4198, %v4420
    %4425 = vadd.xlane.f32.xlu0 %v4423
    %v4426 = vpop.xlane.xlu0 %4425
    %4427 = vadd.xlane.f32.xlu0 %v4424
    %v4428 = vpop.xlane.xlu0 %4427
    %v4429 = vmul.f32 %v4426, 0.03125
    %v4430 = vmul.f32 %v4428, 0.03125
    %v4431 = vmul.f32 %v4423, %v4423
    %v4432 = vmul.f32 %v4424, %v4424
    %4433 = vadd.xlane.f32.xlu0 %v4431
    %v4434 = vpop.xlane.xlu0 %4433
    %4435 = vadd.xlane.f32.xlu0 %v4432
    %v4436 = vpop.xlane.xlu0 %4435
    %v4437 = vmul.f32 %v4434, 0.03125
    %v4438 = vmul.f32 %v4436, 0.03125
    %v4439 = vmul.f32 %v4429, %v4429
    %v4440 = vmul.f32 %v4430, %v4430
    %v4441 = vsub.f32 %v4437, %v4439
    %v4442 = vsub.f32 %v4438, %v4440
    %v4443 = vsub.f32 %v4423, %v4429
    %v4444 = vsub.f32 %v4424, %v4430
    %v4445 = vadd.f32 %v4441, 1e-05
    %v4446 = vadd.f32 %v4442, 1e-05
    %v4447 = vrsqrt.pop %v4445
    %v4448 = vrsqrt.pop %v4446
    %v4449 = vmul.f32 %v4443, %v4447
    %v4450 = vmul.f32 %v4444, %v4448
    %v4451 = vld [vmem:[%s3 + $0x13] sm:$0x1]
    %v4452 = vlaneseq
    %v4453 = vshrl.u32 %v4452, 7
    %v4454 = vsub.s32 0, %v4453
    %v4455 = vrot.slane %v4451, %v4454
    %v4456 = vmul.f32 %v4449, %v4455
    %v4457 = vmul.f32 %v4450, %v4455
    %v4458 = vld [vmem:[%s3 + $0x14] sm:$0x1]
    %v4459 = vlaneseq
    %v4460 = vshrl.u32 %v4459, 7
    %v4461 = vsub.s32 0, %v4460
    %v4462 = vrot.slane %v4458, %v4461
    %v4463 = vadd.f32 %v4456, %v4462
    %v4464 = vadd.f32 %v4457, %v4462
    %4465 = vst [vmem:[%s4] sm:$0xff] %v4463
    %4466 = vst [vmem:[%s4 + $0x8] sm:$0xff] %v4464
    %vm4467 = vcmask 1040384
    %v4468 = vsel %vm4467, %v1977, %v3755
    %4469 = vst [vmem:[#allocation5] sm:$0x3] %v4468
    // Predicated region
    $region22: #{reasoning_engine_forward.1} parent=1 // pred_check
      _
    $region23: #{reasoning_engine_forward.1} parent=1 // pred_check_branch
      %4471 = sbr.rel (0) target = $region25
    $region24: #{reasoning_engine_forward.1} parent=1 // pred_region
      _
    $region25: #{reasoning_engine_forward.1} parent=1 // pred_fallthru
      _
    // Predicated region
    $region26: #{reasoning_engine_forward.1} parent=1 // pred_check
      _
    $region27: #{reasoning_engine_forward.1} parent=1 // pred_check_branch
      %4473 = sbr.rel (0) target = $region29
    $region28: #{reasoning_engine_forward.1} parent=1 // pred_region
      %s4475 = ssub.s32 32, 32
      %4476 = vsyncadd [#allocation4], %s4475
      %s4478 = sshll.u32 [#allocation5], 4
      %s4479 = int_to_ptr.vmem [resolvable:$true] %s4478
      %4481 = dma.vmem_to_hbm [thread:$0]  %s4479, 32, %s5, [#allocation4]
    $region29: #{reasoning_engine_forward.1} parent=1 // pred_fallthru
      _
    // Predicated region
    $region30: #{reasoning_engine_forward.1} parent=1 // pred_check
      _
    $region31: #{reasoning_engine_forward.1} parent=1 // pred_check_branch
      %4483 = sbr.rel (0) target = $region33
    $region32: #{reasoning_engine_forward.1} parent=1 // pred_region
      _
    $region33: #{reasoning_engine_forward.1} parent=1 // pred_fallthru
      _
    // Predicated region
    $region34: #{reasoning_engine_forward.1} parent=1 // pred_check
      _
    $region35: #{reasoning_engine_forward.1} parent=1 // pred_check_branch
      %4485 = sbr.rel (0) target = $region37
    $region36: #{reasoning_engine_forward.1} parent=1 // pred_region
      %4486 = dma.done [#allocation4], 32
    $region37: #{reasoning_engine_forward.1} parent=1 // pred_fallthru
      _
    %4487 = vsyncpa [#allocation3], 1
    %4488 = vsyncpa [#allocation4], 1

</llo_original>
